<compile_context>
chip_gen: v7x
topology: tpu7x:2x2x1
jax: 0.10.0
libtpu: 0.0.40
codegen_flags: <defaults>
</compile_context>

<pallas_src>
import functools
import math

import jax
import jax.numpy as jnp
from jax.experimental import pallas as pl
from jax.experimental.pallas import tpu as pltpu


def _node_extractor_kernel(u_ref, usel_ref, nb_ref,
                           w1_ref, b1_ref, w2_ref, b2_ref,
                           wc_ref, bc_ref, out_ref,
                           x2_acc, x3_acc, *, n_cols):
    tn, tk, f = u_ref.shape           # (row tile, column tile, in_feat)
    k = pl.program_id(1)
    nk = pl.num_programs(1)

    # ---- init running accumulators at the start of the reduction axis -----
    @pl.when(k == 0)
    def _init():
        x2_acc[...] = jnp.zeros_like(x2_acc)
        x3_acc[...] = jnp.full_like(x3_acc, -jnp.inf)

    # ---- per-chunk: m = relu(u @ W1 + b1) @ W2   (b2 deferred) ------------
    # bf16 operands into the MXU, f32 accumulation.
    u2d = u_ref[...].reshape(tn * tk, f)                               # bf16
    h = jnp.dot(u2d, w1_ref[...], preferred_element_type=jnp.float32)
    h = jnp.maximum(h + b1_ref[...], 0.0)                              # f32
    m = jnp.dot(h.astype(jnp.bfloat16), w2_ref[...],
                preferred_element_type=jnp.float32).reshape(tn, tk, f)

    # ---- running sum (x2) and running max (x3) ----------------------------
    x2_acc[...] += jnp.sum(m, axis=1)
    x3_acc[...] = jnp.maximum(x3_acc[...], jnp.max(m, axis=1))

    # ---- finalize: x1 MLP on gathered rows, bias fix-up, combine1, store --
    @pl.when(k == nk - 1)
    def _finalize():
        b2 = b2_ref[...]                                               # (1, f)
        # x1: tiny MLP on the pre-gathered rows u[i, coloring[i], :].
        h1 = jnp.dot(usel_ref[...], w1_ref[...],
                     preferred_element_type=jnp.float32)
        h1 = jnp.maximum(h1 + b1_ref[...], 0.0)
        x1 = jnp.dot(h1.astype(jnp.bfloat16), w2_ref[...],
                     preferred_element_type=jnp.float32) + b2
        inv_nb = pl.reciprocal(nb_ref[...], approx=True)               # EUP
        x2 = (x2_acc[...] + jnp.float32(n_cols) * b2) * inv_nb         # N*b2!
        x3 = x3_acc[...] + b2
        xf = jnp.concatenate([x1, x2, x3], axis=1)                     # (tn, 3f)
        out = jnp.dot(xf, wc_ref[...], preferred_element_type=jnp.float32)
        out_ref[...] = (out + bc_ref[...]).astype(out_ref.dtype)


def _vmem_capacity_bytes():
    try:
        return int(pltpu.get_tpu_info().vmem_capacity_bytes)
    except Exception:
        return 64 * 1024 * 1024            # v7x-safe fallback


def _pick_tiles(n, f, u_block_budget):
    """Row tile tn and column tile tk (both divisors of n)."""
    aligned = [d for d in range(16, n + 1, 16) if n % d == 0]
    if not aligned:
        return n, n                        # tiny / odd N: one full block
    # >= 2 row steps keeps both v7x TensorCores busy on the "parallel" axis.
    tn_opts = [d for d in aligned if d <= 256 and n // d >= 2]
    tn = max(tn_opts) if tn_opts else n
    # Whole column axis if the double-buffered bf16 u block fits the budget
    # (kills the reduction axis); else the largest aligned chunk that fits.
    def fits(tk):
        return tn * tk * f * 2 * 2 <= u_block_budget
    if fits(n):
        tk = n
    else:
        tk_opts = [d for d in aligned if fits(d)]
        tk = max(tk_opts) if tk_opts else aligned[0]
    return tn, tk


def node_extractor(u, coloring, n_batch, params, *, tn=None, tk=None):
    """u: (N, N, F) f32, coloring: (N, 1) i32, n_batch: (N, 1) f32."""
    N, N2, F = u.shape
    assert N == N2
    F_out = params["bc"].shape[-1]

    vmem_cap = _vmem_capacity_bytes()
    vmem_limit = min(int(vmem_cap * 3 // 4), 96 * 1024 * 1024)   # 48 MiB on v7x
    auto_tn, auto_tk = _pick_tiles(N, F, u_block_budget=vmem_limit // 2)
    tn = auto_tn if tn is None else tn
    tk = auto_tk if tk is None else tk
    assert N % tn == 0 and N % tk == 0
    assert tn % 16 == 0 or tn == N         # bf16 sublane packing alignment
    assert tk % 16 == 0 or tk == N

    # bf16 for the HBM-dominant tensor and the MXU matmul operands.
    u_bf = u.astype(jnp.bfloat16)
    w1 = params["w1"].astype(jnp.bfloat16)
    w2 = params["w2"].astype(jnp.bfloat16)
    # x1 gather hoisted out of the kernel: tiny (N, F) slab done by XLA.
    u_sel = u_bf[jnp.arange(N), coloring[:, 0], :]

    grid = (N // tn, N // tk)
    kernel = functools.partial(_node_extractor_kernel, n_cols=N)
    out = pl.pallas_call(
        kernel,
        out_shape=jax.ShapeDtypeStruct((N, F_out), jnp.float32),
        grid_spec=pltpu.PrefetchScalarGridSpec(
            num_scalar_prefetch=0,
            grid=grid,
            in_specs=[
                pl.BlockSpec((tn, tk, F), lambda i, k: (i, k, 0)),    # u (bf16)
                pl.BlockSpec((tn, F), lambda i, k: (i, 0)),           # u_sel (bf16)
                pl.BlockSpec((tn, 1), lambda i, k: (i, 0)),           # n_batch
                pl.BlockSpec((F, F), lambda i, k: (0, 0)),            # W1 (bf16)
                pl.BlockSpec((1, F), lambda i, k: (0, 0)),            # b1
                pl.BlockSpec((F, F), lambda i, k: (0, 0)),            # W2 (bf16)
                pl.BlockSpec((1, F), lambda i, k: (0, 0)),            # b2
                pl.BlockSpec((3 * F, F_out), lambda i, k: (0, 0)),    # Wc
                pl.BlockSpec((1, F_out), lambda i, k: (0, 0)),        # bc
            ],
            out_specs=pl.BlockSpec((tn, F_out), lambda i, k: (i, 0)),
            scratch_shapes=[
                pltpu.VMEM((tn, F), jnp.float32),   # x2 running sum
                pltpu.VMEM((tn, F), jnp.float32),   # x3 running max
            ],
        ),
        compiler_params=pltpu.CompilerParams(
            dimension_semantics=("parallel", "arbitrary"),
            vmem_limit_bytes=vmem_limit,
        ),
    )(u_bf, u_sel, n_batch,
      w1, params["b1"], w2, params["b2"],
      params["wc"], params["bc"])
    return out


def node_extractor_reference_f32(u, coloring, n_batch, p):
    """Plain-JAX f32 reference matching the PyTorch forward exactly."""
    h = jax.nn.relu(u @ p["w1"] + p["b1"][0])
    new_u = h @ p["w2"] + p["b2"][0]
    N = u.shape[0]
    x1 = new_u[jnp.arange(N), coloring[:, 0], :]
    x2 = jnp.sum(new_u / n_batch[:, :, None], axis=1)
    x3 = jnp.max(new_u, axis=1)
    x_full = jnp.concatenate([x1, x2, x3], axis=1)
    return x_full @ p["wc"] + p["bc"][0]


def node_extractor_reference_bf16(u, coloring, n_batch, p):
    """Reference mirroring the kernel's intentional bf16 quantization."""
    f32 = jnp.float32
    u_q = u.astype(jnp.bfloat16).astype(f32)
    w1_q = p["w1"].astype(jnp.bfloat16).astype(f32)
    w2_q = p["w2"].astype(jnp.bfloat16).astype(f32)
    h = jax.nn.relu(u_q @ w1_q + p["b1"][0])
    h = h.astype(jnp.bfloat16).astype(f32)
    new_u = h @ w2_q + p["b2"][0]
    N = u.shape[0]
    x1 = new_u[jnp.arange(N), coloring[:, 0], :]
    x2 = jnp.sum(new_u, axis=1) / n_batch          # row-constant divisor
    x3 = jnp.max(new_u, axis=1)
    x_full = jnp.concatenate([x1, x2, x3], axis=1)
    return x_full @ p["wc"] + p["bc"][0]


def init_params(key, in_features, out_features):
    ks = jax.random.split(key, 6)
    lim_in = 1.0 / math.sqrt(in_features)
    lim_c = 1.0 / math.sqrt(3 * in_features)
    return {
        "w1": jax.random.uniform(ks[0], (in_features, in_features),
                                 jnp.float32, -lim_in, lim_in),
        "b1": jax.random.uniform(ks[1], (1, in_features),
                                 jnp.float32, -lim_in, lim_in),
        "w2": jax.random.uniform(ks[2], (in_features, in_features),
                                 jnp.float32, -lim_in, lim_in),
        "b2": jax.random.uniform(ks[3], (1, in_features),
                                 jnp.float32, -lim_in, lim_in),
        "wc": jax.random.uniform(ks[4], (3 * in_features, out_features),
                                 jnp.float32, -lim_c, lim_c),
        "bc": jax.random.uniform(ks[5], (1, out_features),
                                 jnp.float32, -lim_c, lim_c),
    }


if __name__ == "__main__":
    N = 64          # num_nodes
    F_IN = 32       # in_features_u
    F_OUT = 32      # out_features_u

    key = jax.random.PRNGKey(0)
    k_u, k_c, k_p = jax.random.split(key, 3)

    u = jax.random.normal(k_u, (N, N, F_IN), dtype=jnp.float32)
    coloring = jax.random.randint(k_c, (N, 1), 0, N, dtype=jnp.int32)
    n_batch = jnp.full((N, 1), float(N), dtype=jnp.float32)

    params = init_params(k_p, F_IN, F_OUT)

    # Auto tiling: tn=32 (2 "parallel" row steps -> both v7x cores),
    # tk=N=64 (whole column axis -> single reduction step, no extra grid
    # overhead), grid (2, 1); each MXU matmul sees tn*tk = 2048 rows.
    out = node_extractor(u, coloring, n_batch, params)
    out = jax.block_until_ready(out)

    ref_q = node_extractor_reference_bf16(u, coloring, n_batch, params)
    ref_f = node_extractor_reference_f32(u, coloring, n_batch, params)

    assert out.shape == (N, F_OUT)
    err_q = float(jnp.max(jnp.abs(out - ref_q)))
    err_f = float(jnp.max(jnp.abs(out - ref_f)))
    assert jnp.allclose(out, ref_q, rtol=1e-2, atol=1e-2), (
        f"bf16-matched max abs err {err_q}")
    assert jnp.allclose(out, ref_f, rtol=5e-2, atol=5e-2), (
        f"f32 reference max abs err {err_f}")

    print("KERNEL_OK")
</pallas_src>

<mosaic_0001>
module attributes {stable_mosaic.version = 11 : i64} {
  func.func @_node_extractor_kernel(%arg0: i32, %arg1: i32, %arg2: memref<32x64x32xbf16, #tpu.memory_space<vmem>>, %arg3: memref<32x32xbf16, #tpu.memory_space<vmem>>, %arg4: memref<32x1xf32, #tpu.memory_space<vmem>>, %arg5: memref<32x32xbf16, #tpu.memory_space<vmem>>, %arg6: memref<1x32xf32, #tpu.memory_space<vmem>>, %arg7: memref<32x32xbf16, #tpu.memory_space<vmem>>, %arg8: memref<1x32xf32, #tpu.memory_space<vmem>>, %arg9: memref<96x32xf32, #tpu.memory_space<vmem>>, %arg10: memref<1x32xf32, #tpu.memory_space<vmem>>, %arg11: memref<32x32xf32, #tpu.memory_space<vmem>>, %arg12: memref<32x32xf32, #tpu.memory_space<vmem>>, %arg13: memref<32x32xf32, #tpu.memory_space<vmem>>) attributes {dimension_semantics = [#tpu.dimension_semantics<parallel>, #tpu.dimension_semantics<arbitrary>], iteration_bounds = array<i64: 2, 1>, scalar_prefetch = 0 : i64, scratch_operands = 2 : i64, tpu.core_type = #tpu.core_type<tc>, window_params = [{transform_indices = @transform_0, window_bounds = array<i64: 32, 64, 32>}, {transform_indices = @transform_1, window_bounds = array<i64: 32, 32>}, {transform_indices = @transform_2, window_bounds = array<i64: 32, 1>}, {pipeline_mode = #tpu.pipeline_mode<synchronous>, transform_indices = @transform_3, window_bounds = array<i64: 32, 32>}, {pipeline_mode = #tpu.pipeline_mode<synchronous>, transform_indices = @transform_4, window_bounds = array<i64: 1, 32>}, {pipeline_mode = #tpu.pipeline_mode<synchronous>, transform_indices = @transform_5, window_bounds = array<i64: 32, 32>}, {pipeline_mode = #tpu.pipeline_mode<synchronous>, transform_indices = @transform_6, window_bounds = array<i64: 1, 32>}, {pipeline_mode = #tpu.pipeline_mode<synchronous>, transform_indices = @transform_7, window_bounds = array<i64: 96, 32>}, {pipeline_mode = #tpu.pipeline_mode<synchronous>, transform_indices = @transform_8, window_bounds = array<i64: 1, 32>}, {transform_indices = @transform_9, window_bounds = array<i64: 32, 32>}]} {
    %c0_i32 = arith.constant 0 : i32
    %0 = arith.cmpi eq, %arg1, %c0_i32 : i32
    %1 = arith.extui %0 : i1 to i32
    %c0_i32_0 = arith.constant 0 : i32
    %2 = arith.cmpi ne, %1, %c0_i32_0 : i32
    scf.if %2 {
      %cst_23 = arith.constant 0.000000e+00 : f32
      %27 = vector.broadcast %cst_23 : f32 to vector<32x32xf32>
      %c0_24 = arith.constant 0 : index
      %c0_25 = arith.constant 0 : index
      %28 = vector.load %arg12[%c0_24, %c0_25] : memref<32x32xf32, #tpu.memory_space<vmem>>, vector<32x32xf32>
      tpu.vector_store %arg12[%c0_24, %c0_25], %27 {strides = array<i32>} : memref<32x32xf32, #tpu.memory_space<vmem>>, vector<32x32xf32>,
      %cst_26 = arith.constant 0xFF800000 : f32
      %29 = vector.broadcast %cst_26 : f32 to vector<32x32xf32>
      %c0_27 = arith.constant 0 : index
      %c0_28 = arith.constant 0 : index
      %30 = vector.load %arg13[%c0_27, %c0_28] : memref<32x32xf32, #tpu.memory_space<vmem>>, vector<32x32xf32>
      tpu.vector_store %arg13[%c0_27, %c0_28], %29 {strides = array<i32>} : memref<32x32xf32, #tpu.memory_space<vmem>>, vector<32x32xf32>,
    } else {
    }
    %c0 = arith.constant 0 : index
    %c0_1 = arith.constant 0 : index
    %c0_2 = arith.constant 0 : index
    %3 = vector.load %arg2[%c0, %c0_1, %c0_2] : memref<32x64x32xbf16, #tpu.memory_space<vmem>>, vector<32x64x32xbf16>
    %4 = vector.shape_cast %3 : vector<32x64x32xbf16> to vector<2048x32xbf16>
    %c0_3 = arith.constant 0 : index
    %c0_4 = arith.constant 0 : index
    %5 = vector.load %arg5[%c0_3, %c0_4] : memref<32x32xbf16, #tpu.memory_space<vmem>>, vector<32x32xbf16>
    %cst = arith.constant dense<0.000000e+00> : vector<2048x32xf32>
    %6 = tpu.matmul %4, %5, %cst {dimension_numbers = #tpu.dot_dimension_numbers<[1], [0], [0], [1], [0, 0, 1, 1], [], []>} : vector<2048x32xbf16>, vector<32x32xbf16>, vector<2048x32xf32> -> vector<2048x32xf32>
    %c0_5 = arith.constant 0 : index
    %c0_6 = arith.constant 0 : index
    %7 = vector.load %arg6[%c0_5, %c0_6] : memref<1x32xf32, #tpu.memory_space<vmem>>, vector<1x32xf32>
    %8 = vector.broadcast %7 : vector<1x32xf32> to vector<2048x32xf32>
    %9 = arith.addf %6, %8 : vector<2048x32xf32>
    %cst_7 = arith.constant 0.000000e+00 : f32
    %10 = vector.broadcast %cst_7 : f32 to vector<2048x32xf32>
    %11 = arith.maximumf %9, %10 : vector<2048x32xf32>
    %12 = arith.truncf %11 : vector<2048x32xf32> to vector<2048x32xbf16>
    %c0_8 = arith.constant 0 : index
    %c0_9 = arith.constant 0 : index
    %13 = vector.load %arg7[%c0_8, %c0_9] : memref<32x32xbf16, #tpu.memory_space<vmem>>, vector<32x32xbf16>
    %cst_10 = arith.constant dense<0.000000e+00> : vector<2048x32xf32>
    %14 = tpu.matmul %12, %13, %cst_10 {dimension_numbers = #tpu.dot_dimension_numbers<[1], [0], [0], [1], [0, 0, 1, 1], [], []>} : vector<2048x32xbf16>, vector<32x32xbf16>, vector<2048x32xf32> -> vector<2048x32xf32>
    %15 = vector.shape_cast %14 : vector<2048x32xf32> to vector<32x64x32xf32>
    %c0_11 = arith.constant 0 : index
    %c0_12 = arith.constant 0 : index
    %16 = vector.load %arg12[%c0_11, %c0_12] : memref<32x32xf32, #tpu.memory_space<vmem>>, vector<32x32xf32>
    %cst_13 = arith.constant dense<0.000000e+00> : vector<32x32xf32>
    %17 = vector.multi_reduction <add>, %15, %cst_13 [1] : vector<32x64x32xf32> to vector<32x32xf32>
    %18 = arith.addf %16, %17 : vector<32x32xf32>
    %c0_14 = arith.constant 0 : index
    %c0_15 = arith.constant 0 : index
    %19 = vector.load %arg12[%c0_14, %c0_15] : memref<32x32xf32, #tpu.memory_space<vmem>>, vector<32x32xf32>
    tpu.vector_store %arg12[%c0_14, %c0_15], %18 {strides = array<i32>} : memref<32x32xf32, #tpu.memory_space<vmem>>, vector<32x32xf32>,
    %c0_16 = arith.constant 0 : index
    %c0_17 = arith.constant 0 : index
    %20 = vector.load %arg13[%c0_16, %c0_17] : memref<32x32xf32, #tpu.memory_space<vmem>>, vector<32x32xf32>
    %cst_18 = arith.constant dense<0xFF800000> : vector<32x32xf32>
    %21 = vector.multi_reduction <maximumf>, %15, %cst_18 [1] : vector<32x64x32xf32> to vector<32x32xf32>
    %22 = arith.maximumf %20, %21 : vector<32x32xf32>
    %c0_19 = arith.constant 0 : index
    %c0_20 = arith.constant 0 : index
    %23 = vector.load %arg13[%c0_19, %c0_20] : memref<32x32xf32, #tpu.memory_space<vmem>>, vector<32x32xf32>
    tpu.vector_store %arg13[%c0_19, %c0_20], %22 {strides = array<i32>} : memref<32x32xf32, #tpu.memory_space<vmem>>, vector<32x32xf32>,
    %c0_i32_21 = arith.constant 0 : i32
    %24 = arith.cmpi eq, %arg1, %c0_i32_21 : i32
    %25 = arith.extui %24 : i1 to i32
    %c0_i32_22 = arith.constant 0 : i32
    %26 = arith.cmpi ne, %25, %c0_i32_22 : i32
    scf.if %26 {
      %c0_23 = arith.constant 0 : index
      %c0_24 = arith.constant 0 : index
      %27 = vector.load %arg8[%c0_23, %c0_24] : memref<1x32xf32, #tpu.memory_space<vmem>>, vector<1x32xf32>
      %c0_25 = arith.constant 0 : index
      %c0_26 = arith.constant 0 : index
      %28 = vector.load %arg3[%c0_25, %c0_26] : memref<32x32xbf16, #tpu.memory_space<vmem>>, vector<32x32xbf16>
      %c0_27 = arith.constant 0 : index
      %c0_28 = arith.constant 0 : index
      %29 = vector.load %arg5[%c0_27, %c0_28] : memref<32x32xbf16, #tpu.memory_space<vmem>>, vector<32x32xbf16>
      %cst_29 = arith.constant dense<0.000000e+00> : vector<32x32xf32>
      %30 = tpu.matmul %28, %29, %cst_29 {dimension_numbers = #tpu.dot_dimension_numbers<[1], [0], [0], [1], [0, 0, 1, 1], [], []>} : vector<32x32xbf16>, vector<32x32xbf16>, vector<32x32xf32> -> vector<32x32xf32>
      %c0_30 = arith.constant 0 : index
      %c0_31 = arith.constant 0 : index
      %31 = vector.load %arg6[%c0_30, %c0_31] : memref<1x32xf32, #tpu.memory_space<vmem>>, vector<1x32xf32>
      %32 = vector.broadcast %31 : vector<1x32xf32> to vector<32x32xf32>
      %33 = arith.addf %30, %32 : vector<32x32xf32>
      %cst_32 = arith.constant 0.000000e+00 : f32
      %34 = vector.broadcast %cst_32 : f32 to vector<32x32xf32>
      %35 = arith.maximumf %33, %34 : vector<32x32xf32>
      %36 = arith.truncf %35 : vector<32x32xf32> to vector<32x32xbf16>
      %c0_33 = arith.constant 0 : index
      %c0_34 = arith.constant 0 : index
      %37 = vector.load %arg7[%c0_33, %c0_34] : memref<32x32xbf16, #tpu.memory_space<vmem>>, vector<32x32xbf16>
      %cst_35 = arith.constant dense<0.000000e+00> : vector<32x32xf32>
      %38 = tpu.matmul %36, %37, %cst_35 {dimension_numbers = #tpu.dot_dimension_numbers<[1], [0], [0], [1], [0, 0, 1, 1], [], []>} : vector<32x32xbf16>, vector<32x32xbf16>, vector<32x32xf32> -> vector<32x32xf32>
      %39 = vector.broadcast %27 : vector<1x32xf32> to vector<32x32xf32>
      %40 = arith.addf %38, %39 : vector<32x32xf32>
      %c0_36 = arith.constant 0 : index
      %c0_37 = arith.constant 0 : index
      %41 = vector.load %arg4[%c0_36, %c0_37] : memref<32x1xf32, #tpu.memory_space<vmem>>, vector<32x1xf32>
      %42 = tpu.reciprocal %41 {approx = true} : vector<32x1xf32> -> vector<32x1xf32>
      %c0_38 = arith.constant 0 : index
      %c0_39 = arith.constant 0 : index
      %43 = vector.load %arg12[%c0_38, %c0_39] : memref<32x32xf32, #tpu.memory_space<vmem>>, vector<32x32xf32>
      %cst_40 = arith.constant 6.400000e+01 : f32
      %44 = vector.broadcast %cst_40 : f32 to vector<1x32xf32>
      %45 = arith.mulf %44, %27 : vector<1x32xf32>
      %46 = vector.broadcast %45 : vector<1x32xf32> to vector<32x32xf32>
      %47 = arith.addf %43, %46 : vector<32x32xf32>
      %48 = vector.broadcast %42 : vector<32x1xf32> to vector<32x32xf32>
      %49 = arith.mulf %47, %48 : vector<32x32xf32>
      %c0_41 = arith.constant 0 : index
      %c0_42 = arith.constant 0 : index
      %50 = vector.load %arg13[%c0_41, %c0_42] : memref<32x32xf32, #tpu.memory_space<vmem>>, vector<32x32xf32>
      %51 = vector.broadcast %27 : vector<1x32xf32> to vector<32x32xf32>
      %52 = arith.addf %50, %51 : vector<32x32xf32>
      %53 = tpu.concatenate %40, %49, %52 in 1 : vector<32x32xf32>, vector<32x32xf32>, vector<32x32xf32> -> vector<32x96xf32>
      %c0_43 = arith.constant 0 : index
      %c0_44 = arith.constant 0 : index
      %54 = vector.load %arg9[%c0_43, %c0_44] : memref<96x32xf32, #tpu.memory_space<vmem>>, vector<96x32xf32>
      %cst_45 = arith.constant dense<0.000000e+00> : vector<32x32xf32>
      %55 = tpu.matmul %53, %54, %cst_45 {dimension_numbers = #tpu.dot_dimension_numbers<[1], [0], [0], [1], [0, 0, 1, 1], [], []>} : vector<32x96xf32>, vector<96x32xf32>, vector<32x32xf32> -> vector<32x32xf32>
      %c0_46 = arith.constant 0 : index
      %c0_47 = arith.constant 0 : index
      %56 = vector.load %arg10[%c0_46, %c0_47] : memref<1x32xf32, #tpu.memory_space<vmem>>, vector<1x32xf32>
      %57 = vector.broadcast %56 : vector<1x32xf32> to vector<32x32xf32>
      %58 = arith.addf %55, %57 : vector<32x32xf32>
      %c0_48 = arith.constant 0 : index
      %c0_49 = arith.constant 0 : index
      %59 = vector.load %arg11[%c0_48, %c0_49] : memref<32x32xf32, #tpu.memory_space<vmem>>, vector<32x32xf32>
      tpu.vector_store %arg11[%c0_48, %c0_49], %58 {strides = array<i32>} : memref<32x32xf32, #tpu.memory_space<vmem>>, vector<32x32xf32>,
    } else {
    }
    return
  }
  func.func @transform_0(%arg0: i32, %arg1: i32) -> (i32, i32, i32) {
    %c0_i32 = arith.constant 0 : i32
    %c0_i32_0 = arith.constant 0 : i32
    return %arg0, %arg1, %c0_i32 : i32, i32, i32
  }
  func.func @transform_1(%arg0: i32, %arg1: i32) -> (i32, i32) {
    %c0_i32 = arith.constant 0 : i32
    %c0_i32_0 = arith.constant 0 : i32
    return %arg0, %c0_i32 : i32, i32
  }
  func.func @transform_2(%arg0: i32, %arg1: i32) -> (i32, i32) {
    %c0_i32 = arith.constant 0 : i32
    %c0_i32_0 = arith.constant 0 : i32
    return %arg0, %c0_i32 : i32, i32
  }
  func.func @transform_3(%arg0: i32, %arg1: i32) -> (i32, i32) {
    %c0_i32 = arith.constant 0 : i32
    %c0_i32_0 = arith.constant 0 : i32
    %c0_i32_1 = arith.constant 0 : i32
    return %c0_i32, %c0_i32_0 : i32, i32
  }
  func.func @transform_4(%arg0: i32, %arg1: i32) -> (i32, i32) {
    %c0_i32 = arith.constant 0 : i32
    %c0_i32_0 = arith.constant 0 : i32
    %c0_i32_1 = arith.constant 0 : i32
    return %c0_i32, %c0_i32_0 : i32, i32
  }
  func.func @transform_5(%arg0: i32, %arg1: i32) -> (i32, i32) {
    %c0_i32 = arith.constant 0 : i32
    %c0_i32_0 = arith.constant 0 : i32
    %c0_i32_1 = arith.constant 0 : i32
    return %c0_i32, %c0_i32_0 : i32, i32
  }
  func.func @transform_6(%arg0: i32, %arg1: i32) -> (i32, i32) {
    %c0_i32 = arith.constant 0 : i32
    %c0_i32_0 = arith.constant 0 : i32
    %c0_i32_1 = arith.constant 0 : i32
    return %c0_i32, %c0_i32_0 : i32, i32
  }
  func.func @transform_7(%arg0: i32, %arg1: i32) -> (i32, i32) {
    %c0_i32 = arith.constant 0 : i32
    %c0_i32_0 = arith.constant 0 : i32
    %c0_i32_1 = arith.constant 0 : i32
    return %c0_i32, %c0_i32_0 : i32, i32
  }
  func.func @transform_8(%arg0: i32, %arg1: i32) -> (i32, i32) {
    %c0_i32 = arith.constant 0 : i32
    %c0_i32_0 = arith.constant 0 : i32
    %c0_i32_1 = arith.constant 0 : i32
    return %c0_i32, %c0_i32_0 : i32, i32
  }
  func.func @transform_9(%arg0: i32, %arg1: i32) -> (i32, i32) {
    %c0_i32 = arith.constant 0 : i32
    %c0_i32_0 = arith.constant 0 : i32
    return %arg0, %c0_i32 : i32, i32
  }
}

</mosaic_0001>

<llo_original>
// kernel: tpu_custom_call.1
$region0: #{tpu_custom_call.1}
  #allocation0 [shape = 'u32[]', space=smem, size = 0x4, offset = 0x4, fixed_abs, tag = 'smem constant byte address 0x4 - core index']
  #allocation1 [shape = 'u32[144,128]{1,0:T(1,128)}', space=vmem, size = 0x12000, scoped, tag = 'internal scratch']
  #allocation2 [shape = 'f32[32,32]{1,0:T(8,128)}', space=vmem, size = 0x4000, scoped, tag = 'scratch operand']
  #allocation3 [shape = 'f32[32,32]{1,0:T(8,128)}', space=vmem, size = 0x4000, scoped, tag = 'scratch operand']
  %s0 = inlined_call_operand.vmem [shape: bf16[64,64,32], index: 0, kind: input, shape index: {}]
  %s1 = inlined_call_operand.vmem [shape: bf16[64,32], index: 1, kind: input, shape index: {}]
  %s2 = inlined_call_operand.vmem [shape: f32[64,1], index: 2, kind: input, shape index: {}]
  %s3 = inlined_call_operand.vmem [shape: bf16[32,32], index: 3, kind: input, shape index: {}]
  %s4 = inlined_call_operand.vmem [shape: f32[1,32], index: 4, kind: input, shape index: {}]
  %s5 = inlined_call_operand.vmem [shape: bf16[32,32], index: 5, kind: input, shape index: {}]
  %s6 = inlined_call_operand.vmem [shape: f32[1,32], index: 6, kind: input, shape index: {}]
  %s7 = inlined_call_operand.vmem [shape: f32[96,32], index: 7, kind: input, shape index: {}]
  %s8 = inlined_call_operand.vmem [shape: f32[1,32], index: 8, kind: input, shape index: {}]
  %s9 = inlined_call_operand.vmem [shape: f32[64,32], index: 9, kind: output, shape index: {}]
  %s10 = sld [smem:[#allocation0]]
  $region77: #{tpu_custom_call.1} parent=0
    _
  %s12 = ssub.s32 1, %s10
  %s13 = scalar_select 0, %s12, %s10
  loop: start=0, step=1, limit=4
  $region2: #{tpu_custom_call.1} parent=0 // loop_pre_header
    _
  $region3: #{tpu_custom_call.1} parent=0 // loop_header
    %s15 = sphi 0, %s19
    %p16 = scmp.ge.s32.totalorder %s15, 4
    %s22 = sphi 0, %s34
    %s23 = sphi 0, %s30
    %s24 = sphi 0, %s22
    %s25 = sphi 0, %s23
    %s26 = sphi 0, %s24
    %s27 = sphi 0, %s25
    %s39 = sphi 0, %s41
    %s42 = sphi 0, %s39
    %s43 = sphi 0, %s42
    %s59 = sphi 0, %s43
    %s65 = sphi 0, %s67
    %s68 = sphi 0, %s65
    %s69 = sphi 0, %s68
    %s85 = sphi 0, %s69
    %s91 = sphi 0, %s93
    %s94 = sphi 0, %s91
    %s95 = sphi 0, %s94
    %s111 = sphi 0, %s95
    %s115 = sphi 0, %s115
    %s117 = sphi 0, %s115
    %s118 = sphi 0, %s117
    %s132 = sphi 0, %s118
    %s136 = sphi 0, %s136
    %s138 = sphi 0, %s136
    %s139 = sphi 0, %s138
    %s153 = sphi 0, %s139
    %s157 = sphi 0, %s157
    %s159 = sphi 0, %s157
    %s160 = sphi 0, %s159
    %s174 = sphi 0, %s160
    %s178 = sphi 0, %s178
    %s180 = sphi 0, %s178
    %s181 = sphi 0, %s180
    %s195 = sphi 0, %s181
    %s199 = sphi 0, %s199
    %s201 = sphi 0, %s199
    %s202 = sphi 0, %s201
    %s216 = sphi 0, %s202
    %s220 = sphi 0, %s220
    %s222 = sphi 0, %s220
    %s223 = sphi 0, %s222
    %s237 = sphi 0, %s223
    %s243 = sphi 0, %s245
    %s246 = sphi 0, %s243
    %s247 = sphi 0, %s246
    %s263 = sphi 0, %s247
  $region4: #{tpu_custom_call.1} parent=0 // loop_header_branch
    %18 = sbr.rel (%p16) target = $region8
  $region5: #{tpu_custom_call.1} parent=0 // loop_body
    %s20 = ssub.s32 %s15, 1
    %s21 = ssub.s32 %s15, 2
    %s28 = sadd.s32 1, %s23
    %p29 = scmp.ge.s32.totalorder %s28, 1
    %s30 = scalar_select %p29, 0, %s28
    %s31 = sadd.s32 1, %s22
    %s32 = scalar_select %p29, %s31, %s22
    %p33 = scmp.ge.s32.totalorder %s32, 2
    %s34 = scalar_select %p33, 0, %s32
    %s35 = ssub.s32 %s22, %s34
    %s36 = ssub.s32 %s23, %s30
    %s37 = sor.u32 %s35, %s36
    %p38 = scmp.eq.s32.totalorder %s37, 0
    %s40 = sadd.s32 %s39, 1
    %s41 = scalar_select %p38, %s39, %s40
    %p44 = pneg %p38
    %p45 = scmp.eq.s32.totalorder %s15, 1
    %p46 = por %p44, %p45
    %p47 = scmp.ne.s32.totalorder %s39, %s42
    %p48 = scmp.eq.s32.totalorder %s15, 0
    %p49 = por %p47, %p48
    %p50 = scmp.ne.s32.totalorder %s39, %s42
    %p51 = scmp.eq.s32.totalorder %s20, 1
    %p52 = por %p50, %p51
    %p53 = scmp.ne.s32.totalorder %s42, %s43
    %p54 = scmp.eq.s32.totalorder %s20, 0
    %p55 = por %p53, %p54
    %p56 = scmp.ne.s32.totalorder %s42, %s43
    %p57 = scmp.eq.s32.totalorder %s21, 1
    %p58 = por %p56, %p57
    %p60 = scmp.ne.s32.totalorder %s43, %s59
    %p61 = scmp.eq.s32.totalorder %s21, 0
    %p62 = por %p60, %p61
    %s63 = ssub.s32 %s22, %s34
    %p64 = scmp.eq.s32.totalorder %s63, 0
    %s66 = sadd.s32 %s65, 1
    %s67 = scalar_select %p64, %s65, %s66
    %p70 = pneg %p64
    %p71 = scmp.eq.s32.totalorder %s15, 1
    %p72 = por %p70, %p71
    %p73 = scmp.ne.s32.totalorder %s65, %s68
    %p74 = scmp.eq.s32.totalorder %s15, 0
    %p75 = por %p73, %p74
    %p76 = scmp.ne.s32.totalorder %s65, %s68
    %p77 = scmp.eq.s32.totalorder %s20, 1
    %p78 = por %p76, %p77
    %p79 = scmp.ne.s32.totalorder %s68, %s69
    %p80 = scmp.eq.s32.totalorder %s20, 0
    %p81 = por %p79, %p80
    %p82 = scmp.ne.s32.totalorder %s68, %s69
    %p83 = scmp.eq.s32.totalorder %s21, 1
    %p84 = por %p82, %p83
    %p86 = scmp.ne.s32.totalorder %s69, %s85
    %p87 = scmp.eq.s32.totalorder %s21, 0
    %p88 = por %p86, %p87
    %s89 = ssub.s32 %s22, %s34
    %p90 = scmp.eq.s32.totalorder %s89, 0
    %s92 = sadd.s32 %s91, 1
    %s93 = scalar_select %p90, %s91, %s92
    %p96 = pneg %p90
    %p97 = scmp.eq.s32.totalorder %s15, 1
    %p98 = por %p96, %p97
    %p99 = scmp.ne.s32.totalorder %s91, %s94
    %p100 = scmp.eq.s32.totalorder %s15, 0
    %p101 = por %p99, %p100
    %p102 = scmp.ne.s32.totalorder %s91, %s94
    %p103 = scmp.eq.s32.totalorder %s20, 1
    %p104 = por %p102, %p103
    %p105 = scmp.ne.s32.totalorder %s94, %s95
    %p106 = scmp.eq.s32.totalorder %s20, 0
    %p107 = por %p105, %p106
    %p108 = scmp.ne.s32.totalorder %s94, %s95
    %p109 = scmp.eq.s32.totalorder %s21, 1
    %p110 = por %p108, %p109
    %p112 = scmp.ne.s32.totalorder %s95, %s111
    %p113 = scmp.eq.s32.totalorder %s21, 0
    %p114 = por %p112, %p113
    %s116 = sadd.s32 %s115, 1
    %p119 = scmp.eq.s32.totalorder %s15, 1
    %p120 = scmp.ne.s32.totalorder %s115, %s117
    %p121 = scmp.eq.s32.totalorder %s15, 0
    %p122 = por %p120, %p121
    %p123 = scmp.ne.s32.totalorder %s115, %s117
    %p124 = scmp.eq.s32.totalorder %s20, 1
    %p125 = por %p123, %p124
    %p126 = scmp.ne.s32.totalorder %s117, %s118
    %p127 = scmp.eq.s32.totalorder %s20, 0
    %p128 = por %p126, %p127
    %p129 = scmp.ne.s32.totalorder %s117, %s118
    %p130 = scmp.eq.s32.totalorder %s21, 1
    %p131 = por %p129, %p130
    %p133 = scmp.ne.s32.totalorder %s118, %s132
    %p134 = scmp.eq.s32.totalorder %s21, 0
    %p135 = por %p133, %p134
    %s137 = sadd.s32 %s136, 1
    %p140 = scmp.eq.s32.totalorder %s15, 1
    %p141 = scmp.ne.s32.totalorder %s136, %s138
    %p142 = scmp.eq.s32.totalorder %s15, 0
    %p143 = por %p141, %p142
    %p144 = scmp.ne.s32.totalorder %s136, %s138
    %p145 = scmp.eq.s32.totalorder %s20, 1
    %p146 = por %p144, %p145
    %p147 = scmp.ne.s32.totalorder %s138, %s139
    %p148 = scmp.eq.s32.totalorder %s20, 0
    %p149 = por %p147, %p148
    %p150 = scmp.ne.s32.totalorder %s138, %s139
    %p151 = scmp.eq.s32.totalorder %s21, 1
    %p152 = por %p150, %p151
    %p154 = scmp.ne.s32.totalorder %s139, %s153
    %p155 = scmp.eq.s32.totalorder %s21, 0
    %p156 = por %p154, %p155
    %s158 = sadd.s32 %s157, 1
    %p161 = scmp.eq.s32.totalorder %s15, 1
    %p162 = scmp.ne.s32.totalorder %s157, %s159
    %p163 = scmp.eq.s32.totalorder %s15, 0
    %p164 = por %p162, %p163
    %p165 = scmp.ne.s32.totalorder %s157, %s159
    %p166 = scmp.eq.s32.totalorder %s20, 1
    %p167 = por %p165, %p166
    %p168 = scmp.ne.s32.totalorder %s159, %s160
    %p169 = scmp.eq.s32.totalorder %s20, 0
    %p170 = por %p168, %p169
    %p171 = scmp.ne.s32.totalorder %s159, %s160
    %p172 = scmp.eq.s32.totalorder %s21, 1
    %p173 = por %p171, %p172
    %p175 = scmp.ne.s32.totalorder %s160, %s174
    %p176 = scmp.eq.s32.totalorder %s21, 0
    %p177 = por %p175, %p176
    %s179 = sadd.s32 %s178, 1
    %p182 = scmp.eq.s32.totalorder %s15, 1
    %p183 = scmp.ne.s32.totalorder %s178, %s180
    %p184 = scmp.eq.s32.totalorder %s15, 0
    %p185 = por %p183, %p184
    %p186 = scmp.ne.s32.totalorder %s178, %s180
    %p187 = scmp.eq.s32.totalorder %s20, 1
    %p188 = por %p186, %p187
    %p189 = scmp.ne.s32.totalorder %s180, %s181
    %p190 = scmp.eq.s32.totalorder %s20, 0
    %p191 = por %p189, %p190
    %p192 = scmp.ne.s32.totalorder %s180, %s181
    %p193 = scmp.eq.s32.totalorder %s21, 1
    %p194 = por %p192, %p193
    %p196 = scmp.ne.s32.totalorder %s181, %s195
    %p197 = scmp.eq.s32.totalorder %s21, 0
    %p198 = por %p196, %p197
    %s200 = sadd.s32 %s199, 1
    %p203 = scmp.eq.s32.totalorder %s15, 1
    %p204 = scmp.ne.s32.totalorder %s199, %s201
    %p205 = scmp.eq.s32.totalorder %s15, 0
    %p206 = por %p204, %p205
    %p207 = scmp.ne.s32.totalorder %s199, %s201
    %p208 = scmp.eq.s32.totalorder %s20, 1
    %p209 = por %p207, %p208
    %p210 = scmp.ne.s32.totalorder %s201, %s202
    %p211 = scmp.eq.s32.totalorder %s20, 0
    %p212 = por %p210, %p211
    %p213 = scmp.ne.s32.totalorder %s201, %s202
    %p214 = scmp.eq.s32.totalorder %s21, 1
    %p215 = por %p213, %p214
    %p217 = scmp.ne.s32.totalorder %s202, %s216
    %p218 = scmp.eq.s32.totalorder %s21, 0
    %p219 = por %p217, %p218
    %s221 = sadd.s32 %s220, 1
    %p224 = scmp.eq.s32.totalorder %s15, 1
    %p225 = scmp.ne.s32.totalorder %s220, %s222
    %p226 = scmp.eq.s32.totalorder %s15, 0
    %p227 = por %p225, %p226
    %p228 = scmp.ne.s32.totalorder %s220, %s222
    %p229 = scmp.eq.s32.totalorder %s20, 1
    %p230 = por %p228, %p229
    %p231 = scmp.ne.s32.totalorder %s222, %s223
    %p232 = scmp.eq.s32.totalorder %s20, 0
    %p233 = por %p231, %p232
    %p234 = scmp.ne.s32.totalorder %s222, %s223
    %p235 = scmp.eq.s32.totalorder %s21, 1
    %p236 = por %p234, %p235
    %p238 = scmp.ne.s32.totalorder %s223, %s237
    %p239 = scmp.eq.s32.totalorder %s21, 0
    %p240 = por %p238, %p239
    %s241 = ssub.s32 %s22, %s34
    %p242 = scmp.eq.s32.totalorder %s241, 0
    %s244 = sadd.s32 %s243, 1
    %s245 = scalar_select %p242, %s243, %s244
    %p248 = pneg %p242
    %p249 = scmp.eq.s32.totalorder %s15, 1
    %p250 = por %p248, %p249
    %p251 = scmp.ne.s32.totalorder %s243, %s246
    %p252 = scmp.eq.s32.totalorder %s15, 0
    %p253 = por %p251, %p252
    %p254 = scmp.ne.s32.totalorder %s243, %s246
    %p255 = scmp.eq.s32.totalorder %s20, 1
    %p256 = por %p254, %p255
    %p257 = scmp.ne.s32.totalorder %s246, %s247
    %p258 = scmp.eq.s32.totalorder %s20, 0
    %p259 = por %p257, %p258
    %p260 = scmp.ne.s32.totalorder %s246, %s247
    %p261 = scmp.eq.s32.totalorder %s21, 1
    %p262 = por %p260, %p261
    %p264 = scmp.ne.s32.totalorder %s247, %s263
    %p265 = scmp.eq.s32.totalorder %s21, 0
    %p266 = por %p264, %p265
    %p267 = scmp.le.s32.totalorder 1, %s15
    %p268 = scmp.lt.s32.totalorder %s15, 3
    %p269 = pnand %p267, %p268
    %p270 = pneg %p269
    // Predicated region
    $region9: #{tpu_custom_call.1} parent=5 // pred_check
      _
    $region10: #{tpu_custom_call.1} parent=5 // pred_check_branch
      %272 = sbr.rel (%p269) target = $region12
    $region11: #{tpu_custom_call.1} parent=5 // pred_region
      %s273 = ssub.s32 %s15, 1
      // Predicated region
      $region13: #{tpu_custom_call.1} parent=11 // pred_check
        %p274 = pneg %p128
      $region14: #{tpu_custom_call.1} parent=11 // pred_check_branch
        %276 = sbr.rel (%p274) target = $region16
      $region15: #{tpu_custom_call.1} parent=11 // pred_region
        _
      $region16: #{tpu_custom_call.1} parent=11 // pred_fallthru
        _
      // Predicated region
      $region17: #{tpu_custom_call.1} parent=11 // pred_check
        %p277 = pneg %p149
      $region18: #{tpu_custom_call.1} parent=11 // pred_check_branch
        %279 = sbr.rel (%p277) target = $region20
      $region19: #{tpu_custom_call.1} parent=11 // pred_region
        _
      $region20: #{tpu_custom_call.1} parent=11 // pred_fallthru
        _
      // Predicated region
      $region21: #{tpu_custom_call.1} parent=11 // pred_check
        %p280 = pneg %p170
      $region22: #{tpu_custom_call.1} parent=11 // pred_check_branch
        %282 = sbr.rel (%p280) target = $region24
      $region23: #{tpu_custom_call.1} parent=11 // pred_region
        _
      $region24: #{tpu_custom_call.1} parent=11 // pred_fallthru
        _
      // Predicated region
      $region25: #{tpu_custom_call.1} parent=11 // pred_check
        %p283 = pneg %p191
      $region26: #{tpu_custom_call.1} parent=11 // pred_check_branch
        %285 = sbr.rel (%p283) target = $region28
      $region27: #{tpu_custom_call.1} parent=11 // pred_region
        _
      $region28: #{tpu_custom_call.1} parent=11 // pred_fallthru
        _
      // Predicated region
      $region29: #{tpu_custom_call.1} parent=11 // pred_check
        %p286 = pneg %p212
      $region30: #{tpu_custom_call.1} parent=11 // pred_check_branch
        %288 = sbr.rel (%p286) target = $region32
      $region31: #{tpu_custom_call.1} parent=11 // pred_region
        _
      $region32: #{tpu_custom_call.1} parent=11 // pred_fallthru
        _
      // Predicated region
      $region33: #{tpu_custom_call.1} parent=11 // pred_check
        %p289 = pneg %p233
      $region34: #{tpu_custom_call.1} parent=11 // pred_check_branch
        %291 = sbr.rel (%p289) target = $region36
      $region35: #{tpu_custom_call.1} parent=11 // pred_region
        _
      $region36: #{tpu_custom_call.1} parent=11 // pred_fallthru
        _
    $region12: #{tpu_custom_call.1} parent=5 // pred_fallthru
      _
    %p292 = scmp.lt.s32.totalorder %s15, 2
    // Predicated region
    $region37: #{tpu_custom_call.1} parent=5 // pred_check
      %p293 = pneg %p292
    $region38: #{tpu_custom_call.1} parent=5 // pred_check_branch
      %295 = sbr.rel (%p293) target = $region40
    $region39: #{tpu_custom_call.1} parent=5 // pred_region
      // Predicated region
      $region41: #{tpu_custom_call.1} parent=39 // pred_check
        %p296 = pneg %p49
      $region42: #{tpu_custom_call.1} parent=39 // pred_check_branch
        %298 = sbr.rel (%p296) target = $region44
      $region43: #{tpu_custom_call.1} parent=39 // pred_region
        %s299 = smul.u32 32, %s22
        %s300 = smul.u32 8, %s23
        %p301 = scmp.lt.s32.totalorder %s299, 63
        %s302 = scalar_select %p301, %s299, 63
        %p303 = scmp.lt.s32.totalorder %s300, 7
        %s304 = scalar_select %p303, %s300, 7
        %s305 = smul.addr %s302, 8
        %s306 = sadd.s32 %s304, %s305
        %s307 = smul.addr %s306, 4
        %s308 = scalar_lea.vmem %s0, %s307
        %s309 = smul.u32 32, %s22
        %s310 = smul.u32 8, %s23
      $region44: #{tpu_custom_call.1} parent=39 // pred_fallthru
        _
      // Predicated region
      $region45: #{tpu_custom_call.1} parent=39 // pred_check
        %p311 = pneg %p75
      $region46: #{tpu_custom_call.1} parent=39 // pred_check_branch
        %313 = sbr.rel (%p311) target = $region48
      $region47: #{tpu_custom_call.1} parent=39 // pred_region
        %s314 = smul.u32 4, %s22
        %p315 = scmp.lt.s32.totalorder %s314, 7
        %s316 = scalar_select %p315, %s314, 7
        %s317 = smul.addr %s316, 4
        %s318 = scalar_lea.vmem %s1, %s317
        %s319 = smul.u32 4, %s22
      $region48: #{tpu_custom_call.1} parent=39 // pred_fallthru
        _
      // Predicated region
      $region49: #{tpu_custom_call.1} parent=39 // pred_check
        %p320 = pneg %p101
      $region50: #{tpu_custom_call.1} parent=39 // pred_check_branch
        %322 = sbr.rel (%p320) target = $region52
      $region51: #{tpu_custom_call.1} parent=39 // pred_region
        %s323 = smul.u32 4, %s22
        %p324 = scmp.lt.s32.totalorder %s323, 7
        %s325 = scalar_select %p324, %s323, 7
        %s326 = smul.addr %s325, 8
        %s327 = scalar_lea.vmem %s2, %s326
        %s328 = smul.u32 4, %s22
      $region52: #{tpu_custom_call.1} parent=39 // pred_fallthru
        _
    $region40: #{tpu_custom_call.1} parent=5 // pred_fallthru
      _
    %p329 = scmp.le.s32.totalorder 1, %s15
    %p330 = scmp.lt.s32.totalorder %s15, 3
    %p331 = pnand %p329, %p330
    %p332 = pneg %p331
    // Predicated region
    $region53: #{tpu_custom_call.1} parent=5 // pred_check
      _
    $region54: #{tpu_custom_call.1} parent=5 // pred_check_branch
      %334 = sbr.rel (%p331) target = $region56
    $region55: #{tpu_custom_call.1} parent=5 // pred_region
      %s335 = ssub.s32 %s15, 1
      %s336 = smul.u32 32, %s24
      %s337 = smul.u32 8, %s25
      %p338 = scmp.lt.s32.totalorder %s336, 63
      %s339 = scalar_select %p338, %s336, 63
      %p340 = scmp.lt.s32.totalorder %s337, 7
      %s341 = scalar_select %p340, %s337, 7
      %s342 = smul.addr %s339, 8
      %s343 = sadd.s32 %s341, %s342
      %s344 = smul.addr %s343, 4
      %s345 = scalar_lea.vmem %s0, %s344
      %p346 = pneg %p55
      %p347 = pneg %p52
      %s348 = smul.u32 4, %s24
      %p349 = scmp.lt.s32.totalorder %s348, 7
      %s350 = scalar_select %p349, %s348, 7
      %s351 = smul.addr %s350, 4
      %s352 = scalar_lea.vmem %s1, %s351
      %p353 = pneg %p81
      %p354 = pneg %p78
      %s355 = smul.u32 4, %s24
      %p356 = scmp.lt.s32.totalorder %s355, 7
      %s357 = scalar_select %p356, %s355, 7
      %s358 = smul.addr %s357, 8
      %s359 = scalar_lea.vmem %s2, %s358
      %p360 = pneg %p107
      %p361 = pneg %p104
      %p362 = pneg %p128
      %p363 = pneg %p125
      %p364 = pneg %p149
      %p365 = pneg %p146
      %p366 = pneg %p170
      %p367 = pneg %p167
      %p368 = pneg %p191
      %p369 = pneg %p188
      %p370 = pneg %p212
      %p371 = pneg %p209
      %p372 = pneg %p233
      %p373 = pneg %p230
      %p374 = pneg %p259
      %p375 = pneg %p256
      %s376 = smul.u32 4, %s24
      %p377 = scmp.lt.s32.totalorder %s376, 7
      %s378 = scalar_select %p377, %s376, 7
      %s379 = smul.addr %s378, 8
      %s380 = scalar_lea.vmem %s9, %s379
      %s381 = smul.u32 32, %s24
      %s382 = smul.u32 8, %s25
      %p383 = scmp.lt.s32.totalorder %s381, 63
      %s384 = scalar_select %p383, %s381, 63
      %p385 = scmp.lt.s32.totalorder %s382, 7
      %s386 = scalar_select %p385, %s382, 7
      %s387 = smul.addr %s384, 8
      %s388 = sadd.s32 %s386, %s387
      %s389 = smul.addr %s388, 4
      %s390 = scalar_lea.vmem %s0, %s389
      %s391 = smul.u32 32, %s24
      %s392 = smul.u32 8, %s25
      %s393 = smul.u32 4, %s24
      %p394 = scmp.lt.s32.totalorder %s393, 7
      %s395 = scalar_select %p394, %s393, 7
      %s396 = smul.addr %s395, 4
      %s397 = scalar_lea.vmem %s1, %s396
      %s398 = smul.u32 4, %s24
      %s399 = smul.u32 4, %s24
      %p400 = scmp.lt.s32.totalorder %s399, 7
      %s401 = scalar_select %p400, %s399, 7
      %s402 = smul.addr %s401, 8
      %s403 = scalar_lea.vmem %s2, %s402
      %s404 = smul.u32 4, %s24
      %s405 = smul.u32 4, %s24
      %p406 = scmp.lt.s32.totalorder %s405, 7
      %s407 = scalar_select %p406, %s405, 7
      %s408 = smul.addr %s407, 8
      %s409 = scalar_lea.vmem %s9, %s408
      %s410 = smul.u32 4, %s24
      %p412 = scmp.eq.s32.totalorder %s25, 0
      // Predicated region
      $region57: #{tpu_custom_call.1} parent=55 // pred_check
        %p413 = pneg %p412
      $region58: #{tpu_custom_call.1} parent=55 // pred_check_branch
        %415 = sbr.rel (%p413) target = $region60
      $region59: #{tpu_custom_call.1} parent=55 // pred_region
        %vm416 = vcmask 261120
        %417 = vst.msk [vmem:[#allocation2] sm:$0xff] %vm416, 0.0
        %418 = vst.msk [vmem:[#allocation2 + $0x8] sm:$0xff] %vm416, 0.0
        %419 = vst.msk [vmem:[#allocation2 + $0x10] sm:$0xff] %vm416, 0.0
        %420 = vst.msk [vmem:[#allocation2 + $0x18] sm:$0xff] %vm416, 0.0
        %421 = vst.msk [vmem:[#allocation3] sm:$0xff] %vm416, -inf
        %422 = vst.msk [vmem:[#allocation3 + $0x8] sm:$0xff] %vm416, -inf
        %423 = vst.msk [vmem:[#allocation3 + $0x10] sm:$0xff] %vm416, -inf
        %424 = vst.msk [vmem:[#allocation3 + $0x18] sm:$0xff] %vm416, -inf
      $region60: #{tpu_custom_call.1} parent=55 // pred_fallthru
        _
      %v425 = vld [vmem:[%s390] sm:$0xf]
      %v426 = vld [vmem:[%s390 + $0x4] sm:$0xf]
      %v427 = vld [vmem:[%s390 + $0x8] sm:$0xf]
      %v428 = vld [vmem:[%s390 + $0xc] sm:$0xf]
      %v429 = vld [vmem:[%s390 + $0x10] sm:$0xf]
      %v430 = vld [vmem:[%s390 + $0x14] sm:$0xf]
      %v431 = vld [vmem:[%s390 + $0x18] sm:$0xf]
      %v432 = vld [vmem:[%s390 + $0x1c] sm:$0xf]
      %v433 = vld [vmem:[%s390 + $0x20] sm:$0xf]
      %v434 = vld [vmem:[%s390 + $0x24] sm:$0xf]
      %v435 = vld [vmem:[%s390 + $0x28] sm:$0xf]
      %v436 = vld [vmem:[%s390 + $0x2c] sm:$0xf]
      %v437 = vld [vmem:[%s390 + $0x30] sm:$0xf]
      %v438 = vld [vmem:[%s390 + $0x34] sm:$0xf]
      %v439 = vld [vmem:[%s390 + $0x38] sm:$0xf]
      %v440 = vld [vmem:[%s390 + $0x3c] sm:$0xf]
      %v441 = vld [vmem:[%s390 + $0x40] sm:$0xf]
      %v442 = vld [vmem:[%s390 + $0x44] sm:$0xf]
      %v443 = vld [vmem:[%s390 + $0x48] sm:$0xf]
      %v444 = vld [vmem:[%s390 + $0x4c] sm:$0xf]
      %v445 = vld [vmem:[%s390 + $0x50] sm:$0xf]
      %v446 = vld [vmem:[%s390 + $0x54] sm:$0xf]
      %v447 = vld [vmem:[%s390 + $0x58] sm:$0xf]
      %v448 = vld [vmem:[%s390 + $0x5c] sm:$0xf]
      %v449 = vld [vmem:[%s390 + $0x60] sm:$0xf]
      %v450 = vld [vmem:[%s390 + $0x64] sm:$0xf]
      %v451 = vld [vmem:[%s390 + $0x68] sm:$0xf]
      %v452 = vld [vmem:[%s390 + $0x6c] sm:$0xf]
      %v453 = vld [vmem:[%s390 + $0x70] sm:$0xf]
      %v454 = vld [vmem:[%s390 + $0x74] sm:$0xf]
      %v455 = vld [vmem:[%s390 + $0x78] sm:$0xf]
      %v456 = vld [vmem:[%s390 + $0x7c] sm:$0xf]
      %v457 = vld [vmem:[%s390 + $0x80] sm:$0xf]
      %v458 = vld [vmem:[%s390 + $0x84] sm:$0xf]
      %v459 = vld [vmem:[%s390 + $0x88] sm:$0xf]
      %v460 = vld [vmem:[%s390 + $0x8c] sm:$0xf]
      %v461 = vld [vmem:[%s390 + $0x90] sm:$0xf]
      %v462 = vld [vmem:[%s390 + $0x94] sm:$0xf]
      %v463 = vld [vmem:[%s390 + $0x98] sm:$0xf]
      %v464 = vld [vmem:[%s390 + $0x9c] sm:$0xf]
      %v465 = vld [vmem:[%s390 + $0xa0] sm:$0xf]
      %v466 = vld [vmem:[%s390 + $0xa4] sm:$0xf]
      %v467 = vld [vmem:[%s390 + $0xa8] sm:$0xf]
      %v468 = vld [vmem:[%s390 + $0xac] sm:$0xf]
      %v469 = vld [vmem:[%s390 + $0xb0] sm:$0xf]
      %v470 = vld [vmem:[%s390 + $0xb4] sm:$0xf]
      %v471 = vld [vmem:[%s390 + $0xb8] sm:$0xf]
      %v472 = vld [vmem:[%s390 + $0xbc] sm:$0xf]
      %v473 = vld [vmem:[%s390 + $0xc0] sm:$0xf]
      %v474 = vld [vmem:[%s390 + $0xc4] sm:$0xf]
      %v475 = vld [vmem:[%s390 + $0xc8] sm:$0xf]
      %v476 = vld [vmem:[%s390 + $0xcc] sm:$0xf]
      %v477 = vld [vmem:[%s390 + $0xd0] sm:$0xf]
      %v478 = vld [vmem:[%s390 + $0xd4] sm:$0xf]
      %v479 = vld [vmem:[%s390 + $0xd8] sm:$0xf]
      %v480 = vld [vmem:[%s390 + $0xdc] sm:$0xf]
      %v481 = vld [vmem:[%s390 + $0xe0] sm:$0xf]
      %v482 = vld [vmem:[%s390 + $0xe4] sm:$0xf]
      %v483 = vld [vmem:[%s390 + $0xe8] sm:$0xf]
      %v484 = vld [vmem:[%s390 + $0xec] sm:$0xf]
      %v485 = vld [vmem:[%s390 + $0xf0] sm:$0xf]
      %v486 = vld [vmem:[%s390 + $0xf4] sm:$0xf]
      %v487 = vld [vmem:[%s390 + $0xf8] sm:$0xf]
      %v488 = vld [vmem:[%s390 + $0xfc] sm:$0xf]
      %v489 = vld [vmem:[%s390 + $0x100] sm:$0xf]
      %v490 = vld [vmem:[%s390 + $0x104] sm:$0xf]
      %v491 = vld [vmem:[%s390 + $0x108] sm:$0xf]
      %v492 = vld [vmem:[%s390 + $0x10c] sm:$0xf]
      %v493 = vld [vmem:[%s390 + $0x110] sm:$0xf]
      %v494 = vld [vmem:[%s390 + $0x114] sm:$0xf]
      %v495 = vld [vmem:[%s390 + $0x118] sm:$0xf]
      %v496 = vld [vmem:[%s390 + $0x11c] sm:$0xf]
      %v497 = vld [vmem:[%s390 + $0x120] sm:$0xf]
      %v498 = vld [vmem:[%s390 + $0x124] sm:$0xf]
      %v499 = vld [vmem:[%s390 + $0x128] sm:$0xf]
      %v500 = vld [vmem:[%s390 + $0x12c] sm:$0xf]
      %v501 = vld [vmem:[%s390 + $0x130] sm:$0xf]
      %v502 = vld [vmem:[%s390 + $0x134] sm:$0xf]
      %v503 = vld [vmem:[%s390 + $0x138] sm:$0xf]
      %v504 = vld [vmem:[%s390 + $0x13c] sm:$0xf]
      %v505 = vld [vmem:[%s390 + $0x140] sm:$0xf]
      %v506 = vld [vmem:[%s390 + $0x144] sm:$0xf]
      %v507 = vld [vmem:[%s390 + $0x148] sm:$0xf]
      %v508 = vld [vmem:[%s390 + $0x14c] sm:$0xf]
      %v509 = vld [vmem:[%s390 + $0x150] sm:$0xf]
      %v510 = vld [vmem:[%s390 + $0x154] sm:$0xf]
      %v511 = vld [vmem:[%s390 + $0x158] sm:$0xf]
      %v512 = vld [vmem:[%s390 + $0x15c] sm:$0xf]
      %v513 = vld [vmem:[%s390 + $0x160] sm:$0xf]
      %v514 = vld [vmem:[%s390 + $0x164] sm:$0xf]
      %v515 = vld [vmem:[%s390 + $0x168] sm:$0xf]
      %v516 = vld [vmem:[%s390 + $0x16c] sm:$0xf]
      %v517 = vld [vmem:[%s390 + $0x170] sm:$0xf]
      %v518 = vld [vmem:[%s390 + $0x174] sm:$0xf]
      %v519 = vld [vmem:[%s390 + $0x178] sm:$0xf]
      %v520 = vld [vmem:[%s390 + $0x17c] sm:$0xf]
      %v521 = vld [vmem:[%s390 + $0x180] sm:$0xf]
      %v522 = vld [vmem:[%s390 + $0x184] sm:$0xf]
      %v523 = vld [vmem:[%s390 + $0x188] sm:$0xf]
      %v524 = vld [vmem:[%s390 + $0x18c] sm:$0xf]
      %v525 = vld [vmem:[%s390 + $0x190] sm:$0xf]
      %v526 = vld [vmem:[%s390 + $0x194] sm:$0xf]
      %v527 = vld [vmem:[%s390 + $0x198] sm:$0xf]
      %v528 = vld [vmem:[%s390 + $0x19c] sm:$0xf]
      %v529 = vld [vmem:[%s390 + $0x1a0] sm:$0xf]
      %v530 = vld [vmem:[%s390 + $0x1a4] sm:$0xf]
      %v531 = vld [vmem:[%s390 + $0x1a8] sm:$0xf]
      %v532 = vld [vmem:[%s390 + $0x1ac] sm:$0xf]
      %v533 = vld [vmem:[%s390 + $0x1b0] sm:$0xf]
      %v534 = vld [vmem:[%s390 + $0x1b4] sm:$0xf]
      %v535 = vld [vmem:[%s390 + $0x1b8] sm:$0xf]
      %v536 = vld [vmem:[%s390 + $0x1bc] sm:$0xf]
      %v537 = vld [vmem:[%s390 + $0x1c0] sm:$0xf]
      %v538 = vld [vmem:[%s390 + $0x1c4] sm:$0xf]
      %v539 = vld [vmem:[%s390 + $0x1c8] sm:$0xf]
      %v540 = vld [vmem:[%s390 + $0x1cc] sm:$0xf]
      %v541 = vld [vmem:[%s390 + $0x1d0] sm:$0xf]
      %v542 = vld [vmem:[%s390 + $0x1d4] sm:$0xf]
      %v543 = vld [vmem:[%s390 + $0x1d8] sm:$0xf]
      %v544 = vld [vmem:[%s390 + $0x1dc] sm:$0xf]
      %v545 = vld [vmem:[%s390 + $0x1e0] sm:$0xf]
      %v546 = vld [vmem:[%s390 + $0x1e4] sm:$0xf]
      %v547 = vld [vmem:[%s390 + $0x1e8] sm:$0xf]
      %v548 = vld [vmem:[%s390 + $0x1ec] sm:$0xf]
      %v549 = vld [vmem:[%s390 + $0x1f0] sm:$0xf]
      %v550 = vld [vmem:[%s390 + $0x1f4] sm:$0xf]
      %v551 = vld [vmem:[%s390 + $0x1f8] sm:$0xf]
      %v552 = vld [vmem:[%s390 + $0x1fc] sm:$0xf]
      %v553 = vld [vmem:[%s390 + $0x200] sm:$0xf]
      %v554 = vld [vmem:[%s390 + $0x204] sm:$0xf]
      %v555 = vld [vmem:[%s390 + $0x208] sm:$0xf]
      %v556 = vld [vmem:[%s390 + $0x20c] sm:$0xf]
      %v557 = vld [vmem:[%s390 + $0x210] sm:$0xf]
      %v558 = vld [vmem:[%s390 + $0x214] sm:$0xf]
      %v559 = vld [vmem:[%s390 + $0x218] sm:$0xf]
      %v560 = vld [vmem:[%s390 + $0x21c] sm:$0xf]
      %v561 = vld [vmem:[%s390 + $0x220] sm:$0xf]
      %v562 = vld [vmem:[%s390 + $0x224] sm:$0xf]
      %v563 = vld [vmem:[%s390 + $0x228] sm:$0xf]
      %v564 = vld [vmem:[%s390 + $0x22c] sm:$0xf]
      %v565 = vld [vmem:[%s390 + $0x230] sm:$0xf]
      %v566 = vld [vmem:[%s390 + $0x234] sm:$0xf]
      %v567 = vld [vmem:[%s390 + $0x238] sm:$0xf]
      %v568 = vld [vmem:[%s390 + $0x23c] sm:$0xf]
      %v569 = vld [vmem:[%s390 + $0x240] sm:$0xf]
      %v570 = vld [vmem:[%s390 + $0x244] sm:$0xf]
      %v571 = vld [vmem:[%s390 + $0x248] sm:$0xf]
      %v572 = vld [vmem:[%s390 + $0x24c] sm:$0xf]
      %v573 = vld [vmem:[%s390 + $0x250] sm:$0xf]
      %v574 = vld [vmem:[%s390 + $0x254] sm:$0xf]
      %v575 = vld [vmem:[%s390 + $0x258] sm:$0xf]
      %v576 = vld [vmem:[%s390 + $0x25c] sm:$0xf]
      %v577 = vld [vmem:[%s390 + $0x260] sm:$0xf]
      %v578 = vld [vmem:[%s390 + $0x264] sm:$0xf]
      %v579 = vld [vmem:[%s390 + $0x268] sm:$0xf]
      %v580 = vld [vmem:[%s390 + $0x26c] sm:$0xf]
      %v581 = vld [vmem:[%s390 + $0x270] sm:$0xf]
      %v582 = vld [vmem:[%s390 + $0x274] sm:$0xf]
      %v583 = vld [vmem:[%s390 + $0x278] sm:$0xf]
      %v584 = vld [vmem:[%s390 + $0x27c] sm:$0xf]
      %v585 = vld [vmem:[%s390 + $0x280] sm:$0xf]
      %v586 = vld [vmem:[%s390 + $0x284] sm:$0xf]
      %v587 = vld [vmem:[%s390 + $0x288] sm:$0xf]
      %v588 = vld [vmem:[%s390 + $0x28c] sm:$0xf]
      %v589 = vld [vmem:[%s390 + $0x290] sm:$0xf]
      %v590 = vld [vmem:[%s390 + $0x294] sm:$0xf]
      %v591 = vld [vmem:[%s390 + $0x298] sm:$0xf]
      %v592 = vld [vmem:[%s390 + $0x29c] sm:$0xf]
      %v593 = vld [vmem:[%s390 + $0x2a0] sm:$0xf]
      %v594 = vld [vmem:[%s390 + $0x2a4] sm:$0xf]
      %v595 = vld [vmem:[%s390 + $0x2a8] sm:$0xf]
      %v596 = vld [vmem:[%s390 + $0x2ac] sm:$0xf]
      %v597 = vld [vmem:[%s390 + $0x2b0] sm:$0xf]
      %v598 = vld [vmem:[%s390 + $0x2b4] sm:$0xf]
      %v599 = vld [vmem:[%s390 + $0x2b8] sm:$0xf]
      %v600 = vld [vmem:[%s390 + $0x2bc] sm:$0xf]
      %v601 = vld [vmem:[%s390 + $0x2c0] sm:$0xf]
      %v602 = vld [vmem:[%s390 + $0x2c4] sm:$0xf]
      %v603 = vld [vmem:[%s390 + $0x2c8] sm:$0xf]
      %v604 = vld [vmem:[%s390 + $0x2cc] sm:$0xf]
      %v605 = vld [vmem:[%s390 + $0x2d0] sm:$0xf]
      %v606 = vld [vmem:[%s390 + $0x2d4] sm:$0xf]
      %v607 = vld [vmem:[%s390 + $0x2d8] sm:$0xf]
      %v608 = vld [vmem:[%s390 + $0x2dc] sm:$0xf]
      %v609 = vld [vmem:[%s390 + $0x2e0] sm:$0xf]
      %v610 = vld [vmem:[%s390 + $0x2e4] sm:$0xf]
      %v611 = vld [vmem:[%s390 + $0x2e8] sm:$0xf]
      %v612 = vld [vmem:[%s390 + $0x2ec] sm:$0xf]
      %v613 = vld [vmem:[%s390 + $0x2f0] sm:$0xf]
      %v614 = vld [vmem:[%s390 + $0x2f4] sm:$0xf]
      %v615 = vld [vmem:[%s390 + $0x2f8] sm:$0xf]
      %v616 = vld [vmem:[%s390 + $0x2fc] sm:$0xf]
      %v617 = vld [vmem:[%s390 + $0x300] sm:$0xf]
      %v618 = vld [vmem:[%s390 + $0x304] sm:$0xf]
      %v619 = vld [vmem:[%s390 + $0x308] sm:$0xf]
      %v620 = vld [vmem:[%s390 + $0x30c] sm:$0xf]
      %v621 = vld [vmem:[%s390 + $0x310] sm:$0xf]
      %v622 = vld [vmem:[%s390 + $0x314] sm:$0xf]
      %v623 = vld [vmem:[%s390 + $0x318] sm:$0xf]
      %v624 = vld [vmem:[%s390 + $0x31c] sm:$0xf]
      %v625 = vld [vmem:[%s390 + $0x320] sm:$0xf]
      %v626 = vld [vmem:[%s390 + $0x324] sm:$0xf]
      %v627 = vld [vmem:[%s390 + $0x328] sm:$0xf]
      %v628 = vld [vmem:[%s390 + $0x32c] sm:$0xf]
      %v629 = vld [vmem:[%s390 + $0x330] sm:$0xf]
      %v630 = vld [vmem:[%s390 + $0x334] sm:$0xf]
      %v631 = vld [vmem:[%s390 + $0x338] sm:$0xf]
      %v632 = vld [vmem:[%s390 + $0x33c] sm:$0xf]
      %v633 = vld [vmem:[%s390 + $0x340] sm:$0xf]
      %v634 = vld [vmem:[%s390 + $0x344] sm:$0xf]
      %v635 = vld [vmem:[%s390 + $0x348] sm:$0xf]
      %v636 = vld [vmem:[%s390 + $0x34c] sm:$0xf]
      %v637 = vld [vmem:[%s390 + $0x350] sm:$0xf]
      %v638 = vld [vmem:[%s390 + $0x354] sm:$0xf]
      %v639 = vld [vmem:[%s390 + $0x358] sm:$0xf]
      %v640 = vld [vmem:[%s390 + $0x35c] sm:$0xf]
      %v641 = vld [vmem:[%s390 + $0x360] sm:$0xf]
      %v642 = vld [vmem:[%s390 + $0x364] sm:$0xf]
      %v643 = vld [vmem:[%s390 + $0x368] sm:$0xf]
      %v644 = vld [vmem:[%s390 + $0x36c] sm:$0xf]
      %v645 = vld [vmem:[%s390 + $0x370] sm:$0xf]
      %v646 = vld [vmem:[%s390 + $0x374] sm:$0xf]
      %v647 = vld [vmem:[%s390 + $0x378] sm:$0xf]
      %v648 = vld [vmem:[%s390 + $0x37c] sm:$0xf]
      %v649 = vld [vmem:[%s390 + $0x380] sm:$0xf]
      %v650 = vld [vmem:[%s390 + $0x384] sm:$0xf]
      %v651 = vld [vmem:[%s390 + $0x388] sm:$0xf]
      %v652 = vld [vmem:[%s390 + $0x38c] sm:$0xf]
      %v653 = vld [vmem:[%s390 + $0x390] sm:$0xf]
      %v654 = vld [vmem:[%s390 + $0x394] sm:$0xf]
      %v655 = vld [vmem:[%s390 + $0x398] sm:$0xf]
      %v656 = vld [vmem:[%s390 + $0x39c] sm:$0xf]
      %v657 = vld [vmem:[%s390 + $0x3a0] sm:$0xf]
      %v658 = vld [vmem:[%s390 + $0x3a4] sm:$0xf]
      %v659 = vld [vmem:[%s390 + $0x3a8] sm:$0xf]
      %v660 = vld [vmem:[%s390 + $0x3ac] sm:$0xf]
      %v661 = vld [vmem:[%s390 + $0x3b0] sm:$0xf]
      %v662 = vld [vmem:[%s390 + $0x3b4] sm:$0xf]
      %v663 = vld [vmem:[%s390 + $0x3b8] sm:$0xf]
      %v664 = vld [vmem:[%s390 + $0x3bc] sm:$0xf]
      %v665 = vld [vmem:[%s390 + $0x3c0] sm:$0xf]
      %v666 = vld [vmem:[%s390 + $0x3c4] sm:$0xf]
      %v667 = vld [vmem:[%s390 + $0x3c8] sm:$0xf]
      %v668 = vld [vmem:[%s390 + $0x3cc] sm:$0xf]
      %v669 = vld [vmem:[%s390 + $0x3d0] sm:$0xf]
      %v670 = vld [vmem:[%s390 + $0x3d4] sm:$0xf]
      %v671 = vld [vmem:[%s390 + $0x3d8] sm:$0xf]
      %v672 = vld [vmem:[%s390 + $0x3dc] sm:$0xf]
      %v673 = vld [vmem:[%s390 + $0x3e0] sm:$0xf]
      %v674 = vld [vmem:[%s390 + $0x3e4] sm:$0xf]
      %v675 = vld [vmem:[%s390 + $0x3e8] sm:$0xf]
      %v676 = vld [vmem:[%s390 + $0x3ec] sm:$0xf]
      %v677 = vld [vmem:[%s390 + $0x3f0] sm:$0xf]
      %v678 = vld [vmem:[%s390 + $0x3f4] sm:$0xf]
      %v679 = vld [vmem:[%s390 + $0x3f8] sm:$0xf]
      %v680 = vld [vmem:[%s390 + $0x3fc] sm:$0xf]
      %v681 = vld [vmem:[%s3] sm:$0xf]
      %v682 = vld [vmem:[%s3 + $0x4] sm:$0xf]
      %v683 = vld [vmem:[%s3 + $0x8] sm:$0xf]
      %v684 = vld [vmem:[%s3 + $0xc] sm:$0xf]
      %v685 = vld [vmem:[%s4] sm:$0x1]
      %v687 = vlaneseq
      %v688 = vshrl.u32 %v687, 7
      %v689 = vsub.s32 0, %v688
      %v690 = vrot.slane %v685, %v689
      %v948 = vunpack.c.l.b16 %v425
      %v949 = vunpack.c.l.b16 %v426
      %v950 = vunpack.c.l.b16 %v427
      %v951 = vunpack.c.l.b16 %v428
      %v952 = vunpack.c.l.b16 %v429
      %v953 = vunpack.c.l.b16 %v430
      %v954 = vunpack.c.l.b16 %v431
      %v955 = vunpack.c.l.b16 %v432
      %v956 = vunpack.c.l.b16 %v433
      %v957 = vunpack.c.l.b16 %v434
      %v958 = vunpack.c.l.b16 %v435
      %v959 = vunpack.c.l.b16 %v436
      %v960 = vunpack.c.l.b16 %v437
      %v961 = vunpack.c.l.b16 %v438
      %v962 = vunpack.c.l.b16 %v439
      %v963 = vunpack.c.l.b16 %v440
      %v964 = vunpack.c.l.b16 %v441
      %v965 = vunpack.c.l.b16 %v442
      %v966 = vunpack.c.l.b16 %v443
      %v967 = vunpack.c.l.b16 %v444
      %v968 = vunpack.c.l.b16 %v445
      %v969 = vunpack.c.l.b16 %v446
      %v970 = vunpack.c.l.b16 %v447
      %v971 = vunpack.c.l.b16 %v448
      %v972 = vunpack.c.l.b16 %v449
      %v973 = vunpack.c.l.b16 %v450
      %v974 = vunpack.c.l.b16 %v451
      %v975 = vunpack.c.l.b16 %v452
      %v976 = vunpack.c.l.b16 %v453
      %v977 = vunpack.c.l.b16 %v454
      %v978 = vunpack.c.l.b16 %v455
      %v979 = vunpack.c.l.b16 %v456
      %v980 = vunpack.c.l.b16 %v457
      %v981 = vunpack.c.l.b16 %v458
      %v982 = vunpack.c.l.b16 %v459
      %v983 = vunpack.c.l.b16 %v460
      %v984 = vunpack.c.l.b16 %v461
      %v985 = vunpack.c.l.b16 %v462
      %v986 = vunpack.c.l.b16 %v463
      %v987 = vunpack.c.l.b16 %v464
      %v988 = vunpack.c.l.b16 %v465
      %v989 = vunpack.c.l.b16 %v466
      %v990 = vunpack.c.l.b16 %v467
      %v991 = vunpack.c.l.b16 %v468
      %v992 = vunpack.c.l.b16 %v469
      %v993 = vunpack.c.l.b16 %v470
      %v994 = vunpack.c.l.b16 %v471
      %v995 = vunpack.c.l.b16 %v472
      %v996 = vunpack.c.l.b16 %v473
      %v997 = vunpack.c.l.b16 %v474
      %v998 = vunpack.c.l.b16 %v475
      %v999 = vunpack.c.l.b16 %v476
      %v1000 = vunpack.c.l.b16 %v477
      %v1001 = vunpack.c.l.b16 %v478
      %v1002 = vunpack.c.l.b16 %v479
      %v1003 = vunpack.c.l.b16 %v480
      %v1004 = vunpack.c.l.b16 %v481
      %v1005 = vunpack.c.l.b16 %v482
      %v1006 = vunpack.c.l.b16 %v483
      %v1007 = vunpack.c.l.b16 %v484
      %v1008 = vunpack.c.l.b16 %v485
      %v1009 = vunpack.c.l.b16 %v486
      %v1010 = vunpack.c.l.b16 %v487
      %v1011 = vunpack.c.l.b16 %v488
      %v1012 = vunpack.c.l.b16 %v489
      %v1013 = vunpack.c.l.b16 %v490
      %v1014 = vunpack.c.l.b16 %v491
      %v1015 = vunpack.c.l.b16 %v492
      %v1016 = vunpack.c.l.b16 %v493
      %v1017 = vunpack.c.l.b16 %v494
      %v1018 = vunpack.c.l.b16 %v495
      %v1019 = vunpack.c.l.b16 %v496
      %v1020 = vunpack.c.l.b16 %v497
      %v1021 = vunpack.c.l.b16 %v498
      %v1022 = vunpack.c.l.b16 %v499
      %v1023 = vunpack.c.l.b16 %v500
      %v1024 = vunpack.c.l.b16 %v501
      %v1025 = vunpack.c.l.b16 %v502
      %v1026 = vunpack.c.l.b16 %v503
      %v1027 = vunpack.c.l.b16 %v504
      %v1028 = vunpack.c.l.b16 %v505
      %v1029 = vunpack.c.l.b16 %v506
      %v1030 = vunpack.c.l.b16 %v507
      %v1031 = vunpack.c.l.b16 %v508
      %v1032 = vunpack.c.l.b16 %v509
      %v1033 = vunpack.c.l.b16 %v510
      %v1034 = vunpack.c.l.b16 %v511
      %v1035 = vunpack.c.l.b16 %v512
      %v1036 = vunpack.c.l.b16 %v513
      %v1037 = vunpack.c.l.b16 %v514
      %v1038 = vunpack.c.l.b16 %v515
      %v1039 = vunpack.c.l.b16 %v516
      %v1040 = vunpack.c.l.b16 %v517
      %v1041 = vunpack.c.l.b16 %v518
      %v1042 = vunpack.c.l.b16 %v519
      %v1043 = vunpack.c.l.b16 %v520
      %v1044 = vunpack.c.l.b16 %v521
      %v1045 = vunpack.c.l.b16 %v522
      %v1046 = vunpack.c.l.b16 %v523
      %v1047 = vunpack.c.l.b16 %v524
      %v1048 = vunpack.c.l.b16 %v525
      %v1049 = vunpack.c.l.b16 %v526
      %v1050 = vunpack.c.l.b16 %v527
      %v1051 = vunpack.c.l.b16 %v528
      %v1052 = vunpack.c.l.b16 %v529
      %v1053 = vunpack.c.l.b16 %v530
      %v1054 = vunpack.c.l.b16 %v531
      %v1055 = vunpack.c.l.b16 %v532
      %v1056 = vunpack.c.l.b16 %v533
      %v1057 = vunpack.c.l.b16 %v534
      %v1058 = vunpack.c.l.b16 %v535
      %v1059 = vunpack.c.l.b16 %v536
      %v1060 = vunpack.c.l.b16 %v537
      %v1061 = vunpack.c.l.b16 %v538
      %v1062 = vunpack.c.l.b16 %v539
      %v1063 = vunpack.c.l.b16 %v540
      %v1064 = vunpack.c.l.b16 %v541
      %v1065 = vunpack.c.l.b16 %v542
      %v1066 = vunpack.c.l.b16 %v543
      %v1067 = vunpack.c.l.b16 %v544
      %v1068 = vunpack.c.l.b16 %v545
      %v1069 = vunpack.c.l.b16 %v546
      %v1070 = vunpack.c.l.b16 %v547
      %v1071 = vunpack.c.l.b16 %v548
      %v1072 = vunpack.c.l.b16 %v549
      %v1073 = vunpack.c.l.b16 %v550
      %v1074 = vunpack.c.l.b16 %v551
      %v1075 = vunpack.c.l.b16 %v552
      %v1076 = vunpack.c.l.b16 %v553
      %v1077 = vunpack.c.l.b16 %v554
      %v1078 = vunpack.c.l.b16 %v555
      %v1079 = vunpack.c.l.b16 %v556
      %v1080 = vunpack.c.l.b16 %v557
      %v1081 = vunpack.c.l.b16 %v558
      %v1082 = vunpack.c.l.b16 %v559
      %v1083 = vunpack.c.l.b16 %v560
      %v1084 = vunpack.c.l.b16 %v561
      %v1085 = vunpack.c.l.b16 %v562
      %v1086 = vunpack.c.l.b16 %v563
      %v1087 = vunpack.c.l.b16 %v564
      %v1088 = vunpack.c.l.b16 %v565
      %v1089 = vunpack.c.l.b16 %v566
      %v1090 = vunpack.c.l.b16 %v567
      %v1091 = vunpack.c.l.b16 %v568
      %v1092 = vunpack.c.l.b16 %v569
      %v1093 = vunpack.c.l.b16 %v570
      %v1094 = vunpack.c.l.b16 %v571
      %v1095 = vunpack.c.l.b16 %v572
      %v1096 = vunpack.c.l.b16 %v573
      %v1097 = vunpack.c.l.b16 %v574
      %v1098 = vunpack.c.l.b16 %v575
      %v1099 = vunpack.c.l.b16 %v576
      %v1100 = vunpack.c.l.b16 %v577
      %v1101 = vunpack.c.l.b16 %v578
      %v1102 = vunpack.c.l.b16 %v579
      %v1103 = vunpack.c.l.b16 %v580
      %v1104 = vunpack.c.l.b16 %v581
      %v1105 = vunpack.c.l.b16 %v582
      %v1106 = vunpack.c.l.b16 %v583
      %v1107 = vunpack.c.l.b16 %v584
      %v1108 = vunpack.c.l.b16 %v585
      %v1109 = vunpack.c.l.b16 %v586
      %v1110 = vunpack.c.l.b16 %v587
      %v1111 = vunpack.c.l.b16 %v588
      %v1112 = vunpack.c.l.b16 %v589
      %v1113 = vunpack.c.l.b16 %v590
      %v1114 = vunpack.c.l.b16 %v591
      %v1115 = vunpack.c.l.b16 %v592
      %v1116 = vunpack.c.l.b16 %v593
      %v1117 = vunpack.c.l.b16 %v594
      %v1118 = vunpack.c.l.b16 %v595
      %v1119 = vunpack.c.l.b16 %v596
      %v1120 = vunpack.c.l.b16 %v597
      %v1121 = vunpack.c.l.b16 %v598
      %v1122 = vunpack.c.l.b16 %v599
      %v1123 = vunpack.c.l.b16 %v600
      %v1124 = vunpack.c.l.b16 %v601
      %v1125 = vunpack.c.l.b16 %v602
      %v1126 = vunpack.c.l.b16 %v603
      %v1127 = vunpack.c.l.b16 %v604
      %v1128 = vunpack.c.l.b16 %v605
      %v1129 = vunpack.c.l.b16 %v606
      %v1130 = vunpack.c.l.b16 %v607
      %v1131 = vunpack.c.l.b16 %v608
      %v1132 = vunpack.c.l.b16 %v609
      %v1133 = vunpack.c.l.b16 %v610
      %v1134 = vunpack.c.l.b16 %v611
      %v1135 = vunpack.c.l.b16 %v612
      %v1136 = vunpack.c.l.b16 %v613
      %v1137 = vunpack.c.l.b16 %v614
      %v1138 = vunpack.c.l.b16 %v615
      %v1139 = vunpack.c.l.b16 %v616
      %v1140 = vunpack.c.l.b16 %v617
      %v1141 = vunpack.c.l.b16 %v618
      %v1142 = vunpack.c.l.b16 %v619
      %v1143 = vunpack.c.l.b16 %v620
      %v1144 = vunpack.c.l.b16 %v621
      %v1145 = vunpack.c.l.b16 %v622
      %v1146 = vunpack.c.l.b16 %v623
      %v1147 = vunpack.c.l.b16 %v624
      %v1148 = vunpack.c.l.b16 %v625
      %v1149 = vunpack.c.l.b16 %v626
      %v1150 = vunpack.c.l.b16 %v627
      %v1151 = vunpack.c.l.b16 %v628
      %v1152 = vunpack.c.l.b16 %v629
      %v1153 = vunpack.c.l.b16 %v630
      %v1154 = vunpack.c.l.b16 %v631
      %v1155 = vunpack.c.l.b16 %v632
      %v1156 = vunpack.c.l.b16 %v633
      %v1157 = vunpack.c.l.b16 %v634
      %v1158 = vunpack.c.l.b16 %v635
      %v1159 = vunpack.c.l.b16 %v636
      %v1160 = vunpack.c.l.b16 %v637
      %v1161 = vunpack.c.l.b16 %v638
      %v1162 = vunpack.c.l.b16 %v639
      %v1163 = vunpack.c.l.b16 %v640
      %v1164 = vunpack.c.l.b16 %v641
      %v1165 = vunpack.c.l.b16 %v642
      %v1166 = vunpack.c.l.b16 %v643
      %v1167 = vunpack.c.l.b16 %v644
      %v1168 = vunpack.c.l.b16 %v645
      %v1169 = vunpack.c.l.b16 %v646
      %v1170 = vunpack.c.l.b16 %v647
      %v1171 = vunpack.c.l.b16 %v648
      %v1172 = vunpack.c.l.b16 %v649
      %v1173 = vunpack.c.l.b16 %v650
      %v1174 = vunpack.c.l.b16 %v651
      %v1175 = vunpack.c.l.b16 %v652
      %v1176 = vunpack.c.l.b16 %v653
      %v1177 = vunpack.c.l.b16 %v654
      %v1178 = vunpack.c.l.b16 %v655
      %v1179 = vunpack.c.l.b16 %v656
      %v1180 = vunpack.c.l.b16 %v657
      %v1181 = vunpack.c.l.b16 %v658
      %v1182 = vunpack.c.l.b16 %v659
      %v1183 = vunpack.c.l.b16 %v660
      %v1184 = vunpack.c.l.b16 %v661
      %v1185 = vunpack.c.l.b16 %v662
      %v1186 = vunpack.c.l.b16 %v663
      %v1187 = vunpack.c.l.b16 %v664
      %v1188 = vunpack.c.l.b16 %v665
      %v1189 = vunpack.c.l.b16 %v666
      %v1190 = vunpack.c.l.b16 %v667
      %v1191 = vunpack.c.l.b16 %v668
      %v1192 = vunpack.c.l.b16 %v669
      %v1193 = vunpack.c.l.b16 %v670
      %v1194 = vunpack.c.l.b16 %v671
      %v1195 = vunpack.c.l.b16 %v672
      %v1196 = vunpack.c.l.b16 %v673
      %v1197 = vunpack.c.l.b16 %v674
      %v1198 = vunpack.c.l.b16 %v675
      %v1199 = vunpack.c.l.b16 %v676
      %v1200 = vunpack.c.l.b16 %v677
      %v1201 = vunpack.c.l.b16 %v678
      %v1202 = vunpack.c.l.b16 %v679
      %v1203 = vunpack.c.l.b16 %v680
      %v1204 = vpack.c.b16 %v949, %v948
      %v1205 = vpack.c.b16 %v951, %v950
      %v1206 = vpack.c.b16 %v953, %v952
      %v1207 = vpack.c.b16 %v955, %v954
      %v1208 = vpack.c.b16 %v957, %v956
      %v1209 = vpack.c.b16 %v959, %v958
      %v1210 = vpack.c.b16 %v961, %v960
      %v1211 = vpack.c.b16 %v963, %v962
      %v1212 = vpack.c.b16 %v965, %v964
      %v1213 = vpack.c.b16 %v967, %v966
      %v1214 = vpack.c.b16 %v969, %v968
      %v1215 = vpack.c.b16 %v971, %v970
      %v1216 = vpack.c.b16 %v973, %v972
      %v1217 = vpack.c.b16 %v975, %v974
      %v1218 = vpack.c.b16 %v977, %v976
      %v1219 = vpack.c.b16 %v979, %v978
      %v1220 = vpack.c.b16 %v981, %v980
      %v1221 = vpack.c.b16 %v983, %v982
      %v1222 = vpack.c.b16 %v985, %v984
      %v1223 = vpack.c.b16 %v987, %v986
      %v1224 = vpack.c.b16 %v989, %v988
      %v1225 = vpack.c.b16 %v991, %v990
      %v1226 = vpack.c.b16 %v993, %v992
      %v1227 = vpack.c.b16 %v995, %v994
      %v1228 = vpack.c.b16 %v997, %v996
      %v1229 = vpack.c.b16 %v999, %v998
      %v1230 = vpack.c.b16 %v1001, %v1000
      %v1231 = vpack.c.b16 %v1003, %v1002
      %v1232 = vpack.c.b16 %v1005, %v1004
      %v1233 = vpack.c.b16 %v1007, %v1006
      %v1234 = vpack.c.b16 %v1009, %v1008
      %v1235 = vpack.c.b16 %v1011, %v1010
      %v1236 = vpack.c.b16 %v1013, %v1012
      %v1237 = vpack.c.b16 %v1015, %v1014
      %v1238 = vpack.c.b16 %v1017, %v1016
      %v1239 = vpack.c.b16 %v1019, %v1018
      %v1240 = vpack.c.b16 %v1021, %v1020
      %v1241 = vpack.c.b16 %v1023, %v1022
      %v1242 = vpack.c.b16 %v1025, %v1024
      %v1243 = vpack.c.b16 %v1027, %v1026
      %v1244 = vpack.c.b16 %v1029, %v1028
      %v1245 = vpack.c.b16 %v1031, %v1030
      %v1246 = vpack.c.b16 %v1033, %v1032
      %v1247 = vpack.c.b16 %v1035, %v1034
      %v1248 = vpack.c.b16 %v1037, %v1036
      %v1249 = vpack.c.b16 %v1039, %v1038
      %v1250 = vpack.c.b16 %v1041, %v1040
      %v1251 = vpack.c.b16 %v1043, %v1042
      %v1252 = vpack.c.b16 %v1045, %v1044
      %v1253 = vpack.c.b16 %v1047, %v1046
      %v1254 = vpack.c.b16 %v1049, %v1048
      %v1255 = vpack.c.b16 %v1051, %v1050
      %v1256 = vpack.c.b16 %v1053, %v1052
      %v1257 = vpack.c.b16 %v1055, %v1054
      %v1258 = vpack.c.b16 %v1057, %v1056
      %v1259 = vpack.c.b16 %v1059, %v1058
      %v1260 = vpack.c.b16 %v1061, %v1060
      %v1261 = vpack.c.b16 %v1063, %v1062
      %v1262 = vpack.c.b16 %v1065, %v1064
      %v1263 = vpack.c.b16 %v1067, %v1066
      %v1264 = vpack.c.b16 %v1069, %v1068
      %v1265 = vpack.c.b16 %v1071, %v1070
      %v1266 = vpack.c.b16 %v1073, %v1072
      %v1267 = vpack.c.b16 %v1075, %v1074
      %v1268 = vpack.c.b16 %v1077, %v1076
      %v1269 = vpack.c.b16 %v1079, %v1078
      %v1270 = vpack.c.b16 %v1081, %v1080
      %v1271 = vpack.c.b16 %v1083, %v1082
      %v1272 = vpack.c.b16 %v1085, %v1084
      %v1273 = vpack.c.b16 %v1087, %v1086
      %v1274 = vpack.c.b16 %v1089, %v1088
      %v1275 = vpack.c.b16 %v1091, %v1090
      %v1276 = vpack.c.b16 %v1093, %v1092
      %v1277 = vpack.c.b16 %v1095, %v1094
      %v1278 = vpack.c.b16 %v1097, %v1096
      %v1279 = vpack.c.b16 %v1099, %v1098
      %v1280 = vpack.c.b16 %v1101, %v1100
      %v1281 = vpack.c.b16 %v1103, %v1102
      %v1282 = vpack.c.b16 %v1105, %v1104
      %v1283 = vpack.c.b16 %v1107, %v1106
      %v1284 = vpack.c.b16 %v1109, %v1108
      %v1285 = vpack.c.b16 %v1111, %v1110
      %v1286 = vpack.c.b16 %v1113, %v1112
      %v1287 = vpack.c.b16 %v1115, %v1114
      %v1288 = vpack.c.b16 %v1117, %v1116
      %v1289 = vpack.c.b16 %v1119, %v1118
      %v1290 = vpack.c.b16 %v1121, %v1120
      %v1291 = vpack.c.b16 %v1123, %v1122
      %v1292 = vpack.c.b16 %v1125, %v1124
      %v1293 = vpack.c.b16 %v1127, %v1126
      %v1294 = vpack.c.b16 %v1129, %v1128
      %v1295 = vpack.c.b16 %v1131, %v1130
      %v1296 = vpack.c.b16 %v1133, %v1132
      %v1297 = vpack.c.b16 %v1135, %v1134
      %v1298 = vpack.c.b16 %v1137, %v1136
      %v1299 = vpack.c.b16 %v1139, %v1138
      %v1300 = vpack.c.b16 %v1141, %v1140
      %v1301 = vpack.c.b16 %v1143, %v1142
      %v1302 = vpack.c.b16 %v1145, %v1144
      %v1303 = vpack.c.b16 %v1147, %v1146
      %v1304 = vpack.c.b16 %v1149, %v1148
      %v1305 = vpack.c.b16 %v1151, %v1150
      %v1306 = vpack.c.b16 %v1153, %v1152
      %v1307 = vpack.c.b16 %v1155, %v1154
      %v1308 = vpack.c.b16 %v1157, %v1156
      %v1309 = vpack.c.b16 %v1159, %v1158
      %v1310 = vpack.c.b16 %v1161, %v1160
      %v1311 = vpack.c.b16 %v1163, %v1162
      %v1312 = vpack.c.b16 %v1165, %v1164
      %v1313 = vpack.c.b16 %v1167, %v1166
      %v1314 = vpack.c.b16 %v1169, %v1168
      %v1315 = vpack.c.b16 %v1171, %v1170
      %v1316 = vpack.c.b16 %v1173, %v1172
      %v1317 = vpack.c.b16 %v1175, %v1174
      %v1318 = vpack.c.b16 %v1177, %v1176
      %v1319 = vpack.c.b16 %v1179, %v1178
      %v1320 = vpack.c.b16 %v1181, %v1180
      %v1321 = vpack.c.b16 %v1183, %v1182
      %v1322 = vpack.c.b16 %v1185, %v1184
      %v1323 = vpack.c.b16 %v1187, %v1186
      %v1324 = vpack.c.b16 %v1189, %v1188
      %v1325 = vpack.c.b16 %v1191, %v1190
      %v1326 = vpack.c.b16 %v1193, %v1192
      %v1327 = vpack.c.b16 %v1195, %v1194
      %v1328 = vpack.c.b16 %v1197, %v1196
      %v1329 = vpack.c.b16 %v1199, %v1198
      %v1330 = vpack.c.b16 %v1201, %v1200
      %v1331 = vpack.c.b16 %v1203, %v1202
      %v1336 = vunpack.c.l.b16 %v681
      %v1337 = vunpack.c.l.b16 %v682
      %v1338 = vunpack.c.l.b16 %v683
      %v1339 = vunpack.c.l.b16 %v684
      %v1340 = vpack.c.b16 %v1337, %v1336
      %v1341 = vpack.c.b16 %v1339, %v1338
      %vm1344 = vcmask 261120
      %v1346 = vsel %vm1344, %v1204, 0
      %v1349 = vsel %vm1344, %v1205, 0
      %v1352 = vsel %vm1344, %v1206, 0
      %v1355 = vsel %vm1344, %v1207, 0
      %v1358 = vsel %vm1344, %v1208, 0
      %v1361 = vsel %vm1344, %v1209, 0
      %v1364 = vsel %vm1344, %v1210, 0
      %v1367 = vsel %vm1344, %v1211, 0
      %v1370 = vsel %vm1344, %v1212, 0
      %v1373 = vsel %vm1344, %v1213, 0
      %v1376 = vsel %vm1344, %v1214, 0
      %v1379 = vsel %vm1344, %v1215, 0
      %v1382 = vsel %vm1344, %v1216, 0
      %v1385 = vsel %vm1344, %v1217, 0
      %v1388 = vsel %vm1344, %v1218, 0
      %v1391 = vsel %vm1344, %v1219, 0
      %v1394 = vsel %vm1344, %v1220, 0
      %v1397 = vsel %vm1344, %v1221, 0
      %v1400 = vsel %vm1344, %v1222, 0
      %v1403 = vsel %vm1344, %v1223, 0
      %v1406 = vsel %vm1344, %v1224, 0
      %v1409 = vsel %vm1344, %v1225, 0
      %v1412 = vsel %vm1344, %v1226, 0
      %v1415 = vsel %vm1344, %v1227, 0
      %v1418 = vsel %vm1344, %v1228, 0
      %v1421 = vsel %vm1344, %v1229, 0
      %v1424 = vsel %vm1344, %v1230, 0
      %v1427 = vsel %vm1344, %v1231, 0
      %v1430 = vsel %vm1344, %v1232, 0
      %v1433 = vsel %vm1344, %v1233, 0
      %v1436 = vsel %vm1344, %v1234, 0
      %v1439 = vsel %vm1344, %v1235, 0
      %v1442 = vsel %vm1344, %v1236, 0
      %v1445 = vsel %vm1344, %v1237, 0
      %v1448 = vsel %vm1344, %v1238, 0
      %v1451 = vsel %vm1344, %v1239, 0
      %v1454 = vsel %vm1344, %v1240, 0
      %v1457 = vsel %vm1344, %v1241, 0
      %v1460 = vsel %vm1344, %v1242, 0
      %v1463 = vsel %vm1344, %v1243, 0
      %v1466 = vsel %vm1344, %v1244, 0
      %v1469 = vsel %vm1344, %v1245, 0
      %v1472 = vsel %vm1344, %v1246, 0
      %v1475 = vsel %vm1344, %v1247, 0
      %v1478 = vsel %vm1344, %v1248, 0
      %v1481 = vsel %vm1344, %v1249, 0
      %v1484 = vsel %vm1344, %v1250, 0
      %v1487 = vsel %vm1344, %v1251, 0
      %v1490 = vsel %vm1344, %v1252, 0
      %v1493 = vsel %vm1344, %v1253, 0
      %v1496 = vsel %vm1344, %v1254, 0
      %v1499 = vsel %vm1344, %v1255, 0
      %v1502 = vsel %vm1344, %v1256, 0
      %v1505 = vsel %vm1344, %v1257, 0
      %v1508 = vsel %vm1344, %v1258, 0
      %v1511 = vsel %vm1344, %v1259, 0
      %v1514 = vsel %vm1344, %v1260, 0
      %v1517 = vsel %vm1344, %v1261, 0
      %v1520 = vsel %vm1344, %v1262, 0
      %v1523 = vsel %vm1344, %v1263, 0
      %v1526 = vsel %vm1344, %v1264, 0
      %v1529 = vsel %vm1344, %v1265, 0
      %v1532 = vsel %vm1344, %v1266, 0
      %v1535 = vsel %vm1344, %v1267, 0
      %v1538 = vsel %vm1344, %v1268, 0
      %v1541 = vsel %vm1344, %v1269, 0
      %v1544 = vsel %vm1344, %v1270, 0
      %v1547 = vsel %vm1344, %v1271, 0
      %v1550 = vsel %vm1344, %v1272, 0
      %v1553 = vsel %vm1344, %v1273, 0
      %v1556 = vsel %vm1344, %v1274, 0
      %v1559 = vsel %vm1344, %v1275, 0
      %v1562 = vsel %vm1344, %v1276, 0
      %v1565 = vsel %vm1344, %v1277, 0
      %v1568 = vsel %vm1344, %v1278, 0
      %v1571 = vsel %vm1344, %v1279, 0
      %v1574 = vsel %vm1344, %v1280, 0
      %v1577 = vsel %vm1344, %v1281, 0
      %v1580 = vsel %vm1344, %v1282, 0
      %v1583 = vsel %vm1344, %v1283, 0
      %v1586 = vsel %vm1344, %v1284, 0
      %v1589 = vsel %vm1344, %v1285, 0
      %v1592 = vsel %vm1344, %v1286, 0
      %v1595 = vsel %vm1344, %v1287, 0
      %v1598 = vsel %vm1344, %v1288, 0
      %v1601 = vsel %vm1344, %v1289, 0
      %v1604 = vsel %vm1344, %v1290, 0
      %v1607 = vsel %vm1344, %v1291, 0
      %v1610 = vsel %vm1344, %v1292, 0
      %v1613 = vsel %vm1344, %v1293, 0
      %v1616 = vsel %vm1344, %v1294, 0
      %v1619 = vsel %vm1344, %v1295, 0
      %v1622 = vsel %vm1344, %v1296, 0
      %v1625 = vsel %vm1344, %v1297, 0
      %v1628 = vsel %vm1344, %v1298, 0
      %v1631 = vsel %vm1344, %v1299, 0
      %v1634 = vsel %vm1344, %v1300, 0
      %v1637 = vsel %vm1344, %v1301, 0
      %v1640 = vsel %vm1344, %v1302, 0
      %v1643 = vsel %vm1344, %v1303, 0
      %v1646 = vsel %vm1344, %v1304, 0
      %v1649 = vsel %vm1344, %v1305, 0
      %v1652 = vsel %vm1344, %v1306, 0
      %v1655 = vsel %vm1344, %v1307, 0
      %v1658 = vsel %vm1344, %v1308, 0
      %v1661 = vsel %vm1344, %v1309, 0
      %v1664 = vsel %vm1344, %v1310, 0
      %v1667 = vsel %vm1344, %v1311, 0
      %v1670 = vsel %vm1344, %v1312, 0
      %v1673 = vsel %vm1344, %v1313, 0
      %v1676 = vsel %vm1344, %v1314, 0
      %v1679 = vsel %vm1344, %v1315, 0
      %v1682 = vsel %vm1344, %v1316, 0
      %v1685 = vsel %vm1344, %v1317, 0
      %v1688 = vsel %vm1344, %v1318, 0
      %v1691 = vsel %vm1344, %v1319, 0
      %v1694 = vsel %vm1344, %v1320, 0
      %v1697 = vsel %vm1344, %v1321, 0
      %v1700 = vsel %vm1344, %v1322, 0
      %v1703 = vsel %vm1344, %v1323, 0
      %v1706 = vsel %vm1344, %v1324, 0
      %v1709 = vsel %vm1344, %v1325, 0
      %v1712 = vsel %vm1344, %v1326, 0
      %v1715 = vsel %vm1344, %v1327, 0
      %v1718 = vsel %vm1344, %v1328, 0
      %v1721 = vsel %vm1344, %v1329, 0
      %v1724 = vsel %vm1344, %v1330, 0
      %v1727 = vsel %vm1344, %v1331, 0
      %1729 = vmatprep.subr.bf16.mxu0 0
      %1730 = vmatpush1.bf16.msra.mxu0 %v1340
      %1731 = vmatprep.subr.bf16.mxu0 0
      %1732 = vmatpush1.bf16.msra.mxu0 %v1341
      %1733 = vmatprep.subr.bf16.mxu0 0
      %1734 = vmatpush1.bf16.msra.mxu0 0
      %1735 = vmatprep.subr.bf16.mxu0 0
      %1736 = vmatpush1.bf16.msra.mxu0 0
      %1737 = vmatprep.subr.bf16.mxu0 0
      %1738 = vmatpush1.bf16.msra.mxu0 0
      %1739 = vmatprep.subr.bf16.mxu0 0
      %1740 = vmatpush1.bf16.msra.mxu0 0
      %1741 = vmatprep.subr.bf16.mxu0 0
      %1742 = vmatpush1.bf16.msra.mxu0 0
      %1743 = vmatprep.subr.bf16.mxu0 0
      %1744 = vmatpush1.bf16.msra.mxu0 0
      %1745 = vmatprep.subr.bf16.mxu0 0
      %1746 = vmatpush1.bf16.msra.mxu0 0
      %1747 = vmatprep.subr.bf16.mxu0 0
      %1748 = vmatpush1.bf16.msra.mxu0 0
      %1749 = vmatprep.subr.bf16.mxu0 0
      %1750 = vmatpush1.bf16.msra.mxu0 0
      %1751 = vmatprep.subr.bf16.mxu0 0
      %1752 = vmatpush1.bf16.msra.mxu0 0
      %1753 = vmatprep.subr.bf16.mxu0 0
      %1754 = vmatpush1.bf16.msra.mxu0 0
      %1755 = vmatprep.subr.bf16.mxu0 0
      %1756 = vmatpush1.bf16.msra.mxu0 0
      %1757 = vmatprep.subr.bf16.mxu0 0
      %1758 = vmatpush1.bf16.msra.mxu0 0
      %1759 = vmatprep.subr.bf16.mxu0 0
      %1760 = vmatpush1.bf16.msra.mxu0 0
      %1761 = vmatprep.mubr.bf16.mxu0 0
      %1762 = vmatmul.mubr.bf16.gmra.mrb[0].mxu0 %v1346
      %v1763 = vpop.f32.mrb[0].mxu0
      %v1764 = vadd.f32 %v690, %v1763
      %v1765 = vpop.f32.mrb[0].mxu0
      %v1766 = vpop.f32.mrb[0].mxu0
      %v1767 = vadd.f32 %v690, %v1766
      %v1768 = vpop.f32.mrb[0].mxu0
      %1769 = vmatprep.mubr.bf16.mxu0 0
      %1770 = vmatmul.mubr.bf16.gmra.mrb[0].mxu0 %v1349
      %v1771 = vpop.f32.mrb[0].mxu0
      %v1772 = vadd.f32 %v690, %v1771
      %v1773 = vpop.f32.mrb[0].mxu0
      %v1774 = vpop.f32.mrb[0].mxu0
      %v1775 = vadd.f32 %v690, %v1774
      %v1776 = vpop.f32.mrb[0].mxu0
      %1777 = vmatprep.mubr.bf16.mxu0 0
      %1778 = vmatmul.mubr.bf16.gmra.mrb[0].mxu0 %v1352
      %v1779 = vpop.f32.mrb[0].mxu0
      %v1780 = vadd.f32 %v690, %v1779
      %v1781 = vpop.f32.mrb[0].mxu0
      %v1782 = vpop.f32.mrb[0].mxu0
      %v1783 = vadd.f32 %v690, %v1782
      %v1784 = vpop.f32.mrb[0].mxu0
      %1785 = vmatprep.mubr.bf16.mxu0 0
      %1786 = vmatmul.mubr.bf16.gmra.mrb[0].mxu0 %v1355
      %v1787 = vpop.f32.mrb[0].mxu0
      %v1788 = vadd.f32 %v690, %v1787
      %v1789 = vpop.f32.mrb[0].mxu0
      %v1790 = vpop.f32.mrb[0].mxu0
      %v1791 = vadd.f32 %v690, %v1790
      %v1792 = vpop.f32.mrb[0].mxu0
      %1793 = vmatprep.mubr.bf16.mxu0 0
      %1794 = vmatmul.mubr.bf16.gmra.mrb[0].mxu0 %v1358
      %v1795 = vpop.f32.mrb[0].mxu0
      %v1796 = vadd.f32 %v690, %v1795
      %v1797 = vpop.f32.mrb[0].mxu0
      %v1798 = vpop.f32.mrb[0].mxu0
      %v1799 = vadd.f32 %v690, %v1798
      %v1800 = vpop.f32.mrb[0].mxu0
      %1801 = vmatprep.mubr.bf16.mxu0 0
      %1802 = vmatmul.mubr.bf16.gmra.mrb[0].mxu0 %v1361
      %v1803 = vpop.f32.mrb[0].mxu0
      %v1804 = vadd.f32 %v690, %v1803
      %v1805 = vpop.f32.mrb[0].mxu0
      %v1806 = vpop.f32.mrb[0].mxu0
      %v1807 = vadd.f32 %v690, %v1806
      %v1808 = vpop.f32.mrb[0].mxu0
      %1809 = vmatprep.mubr.bf16.mxu0 0
      %1810 = vmatmul.mubr.bf16.gmra.mrb[0].mxu0 %v1364
      %v1811 = vpop.f32.mrb[0].mxu0
      %v1812 = vadd.f32 %v690, %v1811
      %v1813 = vpop.f32.mrb[0].mxu0
      %v1814 = vpop.f32.mrb[0].mxu0
      %v1815 = vadd.f32 %v690, %v1814
      %v1816 = vpop.f32.mrb[0].mxu0
      %1817 = vmatprep.mubr.bf16.mxu0 0
      %1818 = vmatmul.mubr.bf16.gmra.mrb[0].mxu0 %v1367
      %v1819 = vpop.f32.mrb[0].mxu0
      %v1820 = vadd.f32 %v690, %v1819
      %v1821 = vpop.f32.mrb[0].mxu0
      %v1822 = vpop.f32.mrb[0].mxu0
      %v1823 = vadd.f32 %v690, %v1822
      %v1824 = vpop.f32.mrb[0].mxu0
      %1825 = vmatprep.mubr.bf16.mxu0 0
      %1826 = vmatmul.mubr.bf16.gmra.mrb[0].mxu0 %v1370
      %v1827 = vpop.f32.mrb[0].mxu0
      %v1828 = vadd.f32 %v690, %v1827
      %v1829 = vpop.f32.mrb[0].mxu0
      %v1830 = vpop.f32.mrb[0].mxu0
      %v1831 = vadd.f32 %v690, %v1830
      %v1832 = vpop.f32.mrb[0].mxu0
      %1833 = vmatprep.mubr.bf16.mxu0 0
      %1834 = vmatmul.mubr.bf16.gmra.mrb[0].mxu0 %v1373
      %v1835 = vpop.f32.mrb[0].mxu0
      %v1836 = vadd.f32 %v690, %v1835
      %v1837 = vpop.f32.mrb[0].mxu0
      %v1838 = vpop.f32.mrb[0].mxu0
      %v1839 = vadd.f32 %v690, %v1838
      %v1840 = vpop.f32.mrb[0].mxu0
      %1841 = vmatprep.mubr.bf16.mxu0 0
      %1842 = vmatmul.mubr.bf16.gmra.mrb[0].mxu0 %v1376
      %v1843 = vpop.f32.mrb[0].mxu0
      %v1844 = vadd.f32 %v690, %v1843
      %v1845 = vpop.f32.mrb[0].mxu0
      %v1846 = vpop.f32.mrb[0].mxu0
      %v1847 = vadd.f32 %v690, %v1846
      %v1848 = vpop.f32.mrb[0].mxu0
      %1849 = vmatprep.mubr.bf16.mxu0 0
      %1850 = vmatmul.mubr.bf16.gmra.mrb[0].mxu0 %v1379
      %v1851 = vpop.f32.mrb[0].mxu0
      %v1852 = vadd.f32 %v690, %v1851
      %v1853 = vpop.f32.mrb[0].mxu0
      %v1854 = vpop.f32.mrb[0].mxu0
      %v1855 = vadd.f32 %v690, %v1854
      %v1856 = vpop.f32.mrb[0].mxu0
      %1857 = vmatprep.mubr.bf16.mxu0 0
      %1858 = vmatmul.mubr.bf16.gmra.mrb[0].mxu0 %v1382
      %v1859 = vpop.f32.mrb[0].mxu0
      %v1860 = vadd.f32 %v690, %v1859
      %v1861 = vpop.f32.mrb[0].mxu0
      %v1862 = vpop.f32.mrb[0].mxu0
      %v1863 = vadd.f32 %v690, %v1862
      %v1864 = vpop.f32.mrb[0].mxu0
      %1865 = vmatprep.mubr.bf16.mxu0 0
      %1866 = vmatmul.mubr.bf16.gmra.mrb[0].mxu0 %v1385
      %v1867 = vpop.f32.mrb[0].mxu0
      %v1868 = vadd.f32 %v690, %v1867
      %v1869 = vpop.f32.mrb[0].mxu0
      %v1870 = vpop.f32.mrb[0].mxu0
      %v1871 = vadd.f32 %v690, %v1870
      %v1872 = vpop.f32.mrb[0].mxu0
      %1873 = vmatprep.mubr.bf16.mxu0 0
      %1874 = vmatmul.mubr.bf16.gmra.mrb[0].mxu0 %v1388
      %v1875 = vpop.f32.mrb[0].mxu0
      %v1876 = vadd.f32 %v690, %v1875
      %v1877 = vpop.f32.mrb[0].mxu0
      %v1878 = vpop.f32.mrb[0].mxu0
      %v1879 = vadd.f32 %v690, %v1878
      %v1880 = vpop.f32.mrb[0].mxu0
      %1881 = vmatprep.mubr.bf16.mxu0 0
      %1882 = vmatmul.mubr.bf16.gmra.mrb[0].mxu0 %v1391
      %v1883 = vpop.f32.mrb[0].mxu0
      %v1884 = vadd.f32 %v690, %v1883
      %v1885 = vpop.f32.mrb[0].mxu0
      %v1886 = vpop.f32.mrb[0].mxu0
      %v1887 = vadd.f32 %v690, %v1886
      %v1888 = vpop.f32.mrb[0].mxu0
      %1889 = vmatprep.mubr.bf16.mxu0 0
      %1890 = vmatmul.mubr.bf16.gmra.mrb[0].mxu0 %v1394
      %v1891 = vpop.f32.mrb[0].mxu0
      %v1892 = vadd.f32 %v690, %v1891
      %v1893 = vpop.f32.mrb[0].mxu0
      %v1894 = vpop.f32.mrb[0].mxu0
      %v1895 = vadd.f32 %v690, %v1894
      %v1896 = vpop.f32.mrb[0].mxu0
      %1897 = vmatprep.mubr.bf16.mxu0 0
      %1898 = vmatmul.mubr.bf16.gmra.mrb[0].mxu0 %v1397
      %v1899 = vpop.f32.mrb[0].mxu0
      %v1900 = vadd.f32 %v690, %v1899
      %v1901 = vpop.f32.mrb[0].mxu0
      %v1902 = vpop.f32.mrb[0].mxu0
      %v1903 = vadd.f32 %v690, %v1902
      %v1904 = vpop.f32.mrb[0].mxu0
      %1905 = vmatprep.mubr.bf16.mxu0 0
      %1906 = vmatmul.mubr.bf16.gmra.mrb[0].mxu0 %v1400
      %v1907 = vpop.f32.mrb[0].mxu0
      %v1908 = vadd.f32 %v690, %v1907
      %v1909 = vpop.f32.mrb[0].mxu0
      %v1910 = vpop.f32.mrb[0].mxu0
      %v1911 = vadd.f32 %v690, %v1910
      %v1912 = vpop.f32.mrb[0].mxu0
      %1913 = vmatprep.mubr.bf16.mxu0 0
      %1914 = vmatmul.mubr.bf16.gmra.mrb[0].mxu0 %v1403
      %v1915 = vpop.f32.mrb[0].mxu0
      %v1916 = vadd.f32 %v690, %v1915
      %v1917 = vpop.f32.mrb[0].mxu0
      %v1918 = vpop.f32.mrb[0].mxu0
      %v1919 = vadd.f32 %v690, %v1918
      %v1920 = vpop.f32.mrb[0].mxu0
      %1921 = vmatprep.mubr.bf16.mxu0 0
      %1922 = vmatmul.mubr.bf16.gmra.mrb[0].mxu0 %v1406
      %v1923 = vpop.f32.mrb[0].mxu0
      %v1924 = vadd.f32 %v690, %v1923
      %v1925 = vpop.f32.mrb[0].mxu0
      %v1926 = vpop.f32.mrb[0].mxu0
      %v1927 = vadd.f32 %v690, %v1926
      %v1928 = vpop.f32.mrb[0].mxu0
      %1929 = vmatprep.mubr.bf16.mxu0 0
      %1930 = vmatmul.mubr.bf16.gmra.mrb[0].mxu0 %v1409
      %v1931 = vpop.f32.mrb[0].mxu0
      %v1932 = vadd.f32 %v690, %v1931
      %v1933 = vpop.f32.mrb[0].mxu0
      %v1934 = vpop.f32.mrb[0].mxu0
      %v1935 = vadd.f32 %v690, %v1934
      %v1936 = vpop.f32.mrb[0].mxu0
      %1937 = vmatprep.mubr.bf16.mxu0 0
      %1938 = vmatmul.mubr.bf16.gmra.mrb[0].mxu0 %v1412
      %v1939 = vpop.f32.mrb[0].mxu0
      %v1940 = vadd.f32 %v690, %v1939
      %v1941 = vpop.f32.mrb[0].mxu0
      %v1942 = vpop.f32.mrb[0].mxu0
      %v1943 = vadd.f32 %v690, %v1942
      %v1944 = vpop.f32.mrb[0].mxu0
      %1945 = vmatprep.mubr.bf16.mxu0 0
      %1946 = vmatmul.mubr.bf16.gmra.mrb[0].mxu0 %v1415
      %v1947 = vpop.f32.mrb[0].mxu0
      %v1948 = vadd.f32 %v690, %v1947
      %v1949 = vpop.f32.mrb[0].mxu0
      %v1950 = vpop.f32.mrb[0].mxu0
      %v1951 = vadd.f32 %v690, %v1950
      %v1952 = vpop.f32.mrb[0].mxu0
      %1953 = vmatprep.mubr.bf16.mxu0 0
      %1954 = vmatmul.mubr.bf16.gmra.mrb[0].mxu0 %v1418
      %v1955 = vpop.f32.mrb[0].mxu0
      %v1956 = vadd.f32 %v690, %v1955
      %v1957 = vpop.f32.mrb[0].mxu0
      %v1958 = vpop.f32.mrb[0].mxu0
      %v1959 = vadd.f32 %v690, %v1958
      %v1960 = vpop.f32.mrb[0].mxu0
      %1961 = vmatprep.mubr.bf16.mxu0 0
      %1962 = vmatmul.mubr.bf16.gmra.mrb[0].mxu0 %v1421
      %v1963 = vpop.f32.mrb[0].mxu0
      %v1964 = vadd.f32 %v690, %v1963
      %v1965 = vpop.f32.mrb[0].mxu0
      %v1966 = vpop.f32.mrb[0].mxu0
      %v1967 = vadd.f32 %v690, %v1966
      %v1968 = vpop.f32.mrb[0].mxu0
      %1969 = vmatprep.mubr.bf16.mxu0 0
      %1970 = vmatmul.mubr.bf16.gmra.mrb[0].mxu0 %v1424
      %v1971 = vpop.f32.mrb[0].mxu0
      %v1972 = vadd.f32 %v690, %v1971
      %v1973 = vpop.f32.mrb[0].mxu0
      %v1974 = vpop.f32.mrb[0].mxu0
      %v1975 = vadd.f32 %v690, %v1974
      %v1976 = vpop.f32.mrb[0].mxu0
      %1977 = vmatprep.mubr.bf16.mxu0 0
      %1978 = vmatmul.mubr.bf16.gmra.mrb[0].mxu0 %v1427
      %v1979 = vpop.f32.mrb[0].mxu0
      %v1980 = vadd.f32 %v690, %v1979
      %v1981 = vpop.f32.mrb[0].mxu0
      %v1982 = vpop.f32.mrb[0].mxu0
      %v1983 = vadd.f32 %v690, %v1982
      %v1984 = vpop.f32.mrb[0].mxu0
      %1985 = vmatprep.mubr.bf16.mxu0 0
      %1986 = vmatmul.mubr.bf16.gmra.mrb[0].mxu0 %v1430
      %v1987 = vpop.f32.mrb[0].mxu0
      %v1988 = vadd.f32 %v690, %v1987
      %v1989 = vpop.f32.mrb[0].mxu0
      %v1990 = vpop.f32.mrb[0].mxu0
      %v1991 = vadd.f32 %v690, %v1990
      %v1992 = vpop.f32.mrb[0].mxu0
      %1993 = vmatprep.mubr.bf16.mxu0 0
      %1994 = vmatmul.mubr.bf16.gmra.mrb[0].mxu0 %v1433
      %v1995 = vpop.f32.mrb[0].mxu0
      %v1996 = vadd.f32 %v690, %v1995
      %v1997 = vpop.f32.mrb[0].mxu0
      %v1998 = vpop.f32.mrb[0].mxu0
      %v1999 = vadd.f32 %v690, %v1998
      %v2000 = vpop.f32.mrb[0].mxu0
      %2001 = vmatprep.mubr.bf16.mxu0 0
      %2002 = vmatmul.mubr.bf16.gmra.mrb[0].mxu0 %v1436
      %v2003 = vpop.f32.mrb[0].mxu0
      %v2004 = vadd.f32 %v690, %v2003
      %v2005 = vpop.f32.mrb[0].mxu0
      %v2006 = vpop.f32.mrb[0].mxu0
      %v2007 = vadd.f32 %v690, %v2006
      %v2008 = vpop.f32.mrb[0].mxu0
      %2009 = vmatprep.mubr.bf16.mxu0 0
      %2010 = vmatmul.mubr.bf16.gmra.mrb[0].mxu0 %v1439
      %v2011 = vpop.f32.mrb[0].mxu0
      %v2012 = vadd.f32 %v690, %v2011
      %v2013 = vpop.f32.mrb[0].mxu0
      %v2014 = vpop.f32.mrb[0].mxu0
      %v2015 = vadd.f32 %v690, %v2014
      %v2016 = vpop.f32.mrb[0].mxu0
      %2017 = vmatprep.mubr.bf16.mxu0 0
      %2018 = vmatmul.mubr.bf16.gmra.mrb[0].mxu0 %v1442
      %v2019 = vpop.f32.mrb[0].mxu0
      %v2020 = vadd.f32 %v690, %v2019
      %v2021 = vpop.f32.mrb[0].mxu0
      %v2022 = vpop.f32.mrb[0].mxu0
      %v2023 = vadd.f32 %v690, %v2022
      %v2024 = vpop.f32.mrb[0].mxu0
      %2025 = vmatprep.mubr.bf16.mxu0 0
      %2026 = vmatmul.mubr.bf16.gmra.mrb[0].mxu0 %v1445
      %v2027 = vpop.f32.mrb[0].mxu0
      %v2028 = vadd.f32 %v690, %v2027
      %v2029 = vpop.f32.mrb[0].mxu0
      %v2030 = vpop.f32.mrb[0].mxu0
      %v2031 = vadd.f32 %v690, %v2030
      %v2032 = vpop.f32.mrb[0].mxu0
      %2033 = vmatprep.mubr.bf16.mxu0 0
      %2034 = vmatmul.mubr.bf16.gmra.mrb[0].mxu0 %v1448
      %v2035 = vpop.f32.mrb[0].mxu0
      %v2036 = vadd.f32 %v690, %v2035
      %v2037 = vpop.f32.mrb[0].mxu0
      %v2038 = vpop.f32.mrb[0].mxu0
      %v2039 = vadd.f32 %v690, %v2038
      %v2040 = vpop.f32.mrb[0].mxu0
      %2041 = vmatprep.mubr.bf16.mxu0 0
      %2042 = vmatmul.mubr.bf16.gmra.mrb[0].mxu0 %v1451
      %v2043 = vpop.f32.mrb[0].mxu0
      %v2044 = vadd.f32 %v690, %v2043
      %v2045 = vpop.f32.mrb[0].mxu0
      %v2046 = vpop.f32.mrb[0].mxu0
      %v2047 = vadd.f32 %v690, %v2046
      %v2048 = vpop.f32.mrb[0].mxu0
      %2049 = vmatprep.mubr.bf16.mxu0 0
      %2050 = vmatmul.mubr.bf16.gmra.mrb[0].mxu0 %v1454
      %v2051 = vpop.f32.mrb[0].mxu0
      %v2052 = vadd.f32 %v690, %v2051
      %v2053 = vpop.f32.mrb[0].mxu0
      %v2054 = vpop.f32.mrb[0].mxu0
      %v2055 = vadd.f32 %v690, %v2054
      %v2056 = vpop.f32.mrb[0].mxu0
      %2057 = vmatprep.mubr.bf16.mxu0 0
      %2058 = vmatmul.mubr.bf16.gmra.mrb[0].mxu0 %v1457
      %v2059 = vpop.f32.mrb[0].mxu0
      %v2060 = vadd.f32 %v690, %v2059
      %v2061 = vpop.f32.mrb[0].mxu0
      %v2062 = vpop.f32.mrb[0].mxu0
      %v2063 = vadd.f32 %v690, %v2062
      %v2064 = vpop.f32.mrb[0].mxu0
      %2065 = vmatprep.mubr.bf16.mxu0 0
      %2066 = vmatmul.mubr.bf16.gmra.mrb[0].mxu0 %v1460
      %v2067 = vpop.f32.mrb[0].mxu0
      %v2068 = vadd.f32 %v690, %v2067
      %v2069 = vpop.f32.mrb[0].mxu0
      %v2070 = vpop.f32.mrb[0].mxu0
      %v2071 = vadd.f32 %v690, %v2070
      %v2072 = vpop.f32.mrb[0].mxu0
      %2073 = vmatprep.mubr.bf16.mxu0 0
      %2074 = vmatmul.mubr.bf16.gmra.mrb[0].mxu0 %v1463
      %v2075 = vpop.f32.mrb[0].mxu0
      %v2076 = vadd.f32 %v690, %v2075
      %v2077 = vpop.f32.mrb[0].mxu0
      %v2078 = vpop.f32.mrb[0].mxu0
      %v2079 = vadd.f32 %v690, %v2078
      %v2080 = vpop.f32.mrb[0].mxu0
      %2081 = vmatprep.mubr.bf16.mxu0 0
      %2082 = vmatmul.mubr.bf16.gmra.mrb[0].mxu0 %v1466
      %v2083 = vpop.f32.mrb[0].mxu0
      %v2084 = vadd.f32 %v690, %v2083
      %v2085 = vpop.f32.mrb[0].mxu0
      %v2086 = vpop.f32.mrb[0].mxu0
      %v2087 = vadd.f32 %v690, %v2086
      %v2088 = vpop.f32.mrb[0].mxu0
      %2089 = vmatprep.mubr.bf16.mxu0 0
      %2090 = vmatmul.mubr.bf16.gmra.mrb[0].mxu0 %v1469
      %v2091 = vpop.f32.mrb[0].mxu0
      %v2092 = vadd.f32 %v690, %v2091
      %v2093 = vpop.f32.mrb[0].mxu0
      %v2094 = vpop.f32.mrb[0].mxu0
      %v2095 = vadd.f32 %v690, %v2094
      %v2096 = vpop.f32.mrb[0].mxu0
      %2097 = vmatprep.mubr.bf16.mxu0 0
      %2098 = vmatmul.mubr.bf16.gmra.mrb[0].mxu0 %v1472
      %v2099 = vpop.f32.mrb[0].mxu0
      %v2100 = vadd.f32 %v690, %v2099
      %v2101 = vpop.f32.mrb[0].mxu0
      %v2102 = vpop.f32.mrb[0].mxu0
      %v2103 = vadd.f32 %v690, %v2102
      %v2104 = vpop.f32.mrb[0].mxu0
      %2105 = vmatprep.mubr.bf16.mxu0 0
      %2106 = vmatmul.mubr.bf16.gmra.mrb[0].mxu0 %v1475
      %v2107 = vpop.f32.mrb[0].mxu0
      %v2108 = vadd.f32 %v690, %v2107
      %v2109 = vpop.f32.mrb[0].mxu0
      %v2110 = vpop.f32.mrb[0].mxu0
      %v2111 = vadd.f32 %v690, %v2110
      %v2112 = vpop.f32.mrb[0].mxu0
      %2113 = vmatprep.mubr.bf16.mxu0 0
      %2114 = vmatmul.mubr.bf16.gmra.mrb[0].mxu0 %v1478
      %v2115 = vpop.f32.mrb[0].mxu0
      %v2116 = vadd.f32 %v690, %v2115
      %v2117 = vpop.f32.mrb[0].mxu0
      %v2118 = vpop.f32.mrb[0].mxu0
      %v2119 = vadd.f32 %v690, %v2118
      %v2120 = vpop.f32.mrb[0].mxu0
      %2121 = vmatprep.mubr.bf16.mxu0 0
      %2122 = vmatmul.mubr.bf16.gmra.mrb[0].mxu0 %v1481
      %v2123 = vpop.f32.mrb[0].mxu0
      %v2124 = vadd.f32 %v690, %v2123
      %v2125 = vpop.f32.mrb[0].mxu0
      %v2126 = vpop.f32.mrb[0].mxu0
      %v2127 = vadd.f32 %v690, %v2126
      %v2128 = vpop.f32.mrb[0].mxu0
      %2129 = vmatprep.mubr.bf16.mxu0 0
      %2130 = vmatmul.mubr.bf16.gmra.mrb[0].mxu0 %v1484
      %v2131 = vpop.f32.mrb[0].mxu0
      %v2132 = vadd.f32 %v690, %v2131
      %v2133 = vpop.f32.mrb[0].mxu0
      %v2134 = vpop.f32.mrb[0].mxu0
      %v2135 = vadd.f32 %v690, %v2134
      %v2136 = vpop.f32.mrb[0].mxu0
      %2137 = vmatprep.mubr.bf16.mxu0 0
      %2138 = vmatmul.mubr.bf16.gmra.mrb[0].mxu0 %v1487
      %v2139 = vpop.f32.mrb[0].mxu0
      %v2140 = vadd.f32 %v690, %v2139
      %v2141 = vpop.f32.mrb[0].mxu0
      %v2142 = vpop.f32.mrb[0].mxu0
      %v2143 = vadd.f32 %v690, %v2142
      %v2144 = vpop.f32.mrb[0].mxu0
      %2145 = vmatprep.mubr.bf16.mxu0 0
      %2146 = vmatmul.mubr.bf16.gmra.mrb[0].mxu0 %v1490
      %v2147 = vpop.f32.mrb[0].mxu0
      %v2148 = vadd.f32 %v690, %v2147
      %v2149 = vpop.f32.mrb[0].mxu0
      %v2150 = vpop.f32.mrb[0].mxu0
      %v2151 = vadd.f32 %v690, %v2150
      %v2152 = vpop.f32.mrb[0].mxu0
      %2153 = vmatprep.mubr.bf16.mxu0 0
      %2154 = vmatmul.mubr.bf16.gmra.mrb[0].mxu0 %v1493
      %v2155 = vpop.f32.mrb[0].mxu0
      %v2156 = vadd.f32 %v690, %v2155
      %v2157 = vpop.f32.mrb[0].mxu0
      %v2158 = vpop.f32.mrb[0].mxu0
      %v2159 = vadd.f32 %v690, %v2158
      %v2160 = vpop.f32.mrb[0].mxu0
      %2161 = vmatprep.mubr.bf16.mxu0 0
      %2162 = vmatmul.mubr.bf16.gmra.mrb[0].mxu0 %v1496
      %v2163 = vpop.f32.mrb[0].mxu0
      %v2164 = vadd.f32 %v690, %v2163
      %v2165 = vpop.f32.mrb[0].mxu0
      %v2166 = vpop.f32.mrb[0].mxu0
      %v2167 = vadd.f32 %v690, %v2166
      %v2168 = vpop.f32.mrb[0].mxu0
      %2169 = vmatprep.mubr.bf16.mxu0 0
      %2170 = vmatmul.mubr.bf16.gmra.mrb[0].mxu0 %v1499
      %v2171 = vpop.f32.mrb[0].mxu0
      %v2172 = vadd.f32 %v690, %v2171
      %v2173 = vpop.f32.mrb[0].mxu0
      %v2174 = vpop.f32.mrb[0].mxu0
      %v2175 = vadd.f32 %v690, %v2174
      %v2176 = vpop.f32.mrb[0].mxu0
      %2177 = vmatprep.mubr.bf16.mxu0 0
      %2178 = vmatmul.mubr.bf16.gmra.mrb[0].mxu0 %v1502
      %v2179 = vpop.f32.mrb[0].mxu0
      %v2180 = vadd.f32 %v690, %v2179
      %v2181 = vpop.f32.mrb[0].mxu0
      %v2182 = vpop.f32.mrb[0].mxu0
      %v2183 = vadd.f32 %v690, %v2182
      %v2184 = vpop.f32.mrb[0].mxu0
      %2185 = vmatprep.mubr.bf16.mxu0 0
      %2186 = vmatmul.mubr.bf16.gmra.mrb[0].mxu0 %v1505
      %v2187 = vpop.f32.mrb[0].mxu0
      %v2188 = vadd.f32 %v690, %v2187
      %v2189 = vpop.f32.mrb[0].mxu0
      %v2190 = vpop.f32.mrb[0].mxu0
      %v2191 = vadd.f32 %v690, %v2190
      %v2192 = vpop.f32.mrb[0].mxu0
      %2193 = vmatprep.mubr.bf16.mxu0 0
      %2194 = vmatmul.mubr.bf16.gmra.mrb[0].mxu0 %v1508
      %v2195 = vpop.f32.mrb[0].mxu0
      %v2196 = vadd.f32 %v690, %v2195
      %v2197 = vpop.f32.mrb[0].mxu0
      %v2198 = vpop.f32.mrb[0].mxu0
      %v2199 = vadd.f32 %v690, %v2198
      %v2200 = vpop.f32.mrb[0].mxu0
      %2201 = vmatprep.mubr.bf16.mxu0 0
      %2202 = vmatmul.mubr.bf16.gmra.mrb[0].mxu0 %v1511
      %v2203 = vpop.f32.mrb[0].mxu0
      %v2204 = vadd.f32 %v690, %v2203
      %v2205 = vpop.f32.mrb[0].mxu0
      %v2206 = vpop.f32.mrb[0].mxu0
      %v2207 = vadd.f32 %v690, %v2206
      %v2208 = vpop.f32.mrb[0].mxu0
      %2209 = vmatprep.mubr.bf16.mxu0 0
      %2210 = vmatmul.mubr.bf16.gmra.mrb[0].mxu0 %v1514
      %v2211 = vpop.f32.mrb[0].mxu0
      %v2212 = vadd.f32 %v690, %v2211
      %v2213 = vpop.f32.mrb[0].mxu0
      %v2214 = vpop.f32.mrb[0].mxu0
      %v2215 = vadd.f32 %v690, %v2214
      %v2216 = vpop.f32.mrb[0].mxu0
      %2217 = vmatprep.mubr.bf16.mxu0 0
      %2218 = vmatmul.mubr.bf16.gmra.mrb[0].mxu0 %v1517
      %v2219 = vpop.f32.mrb[0].mxu0
      %v2220 = vadd.f32 %v690, %v2219
      %v2221 = vpop.f32.mrb[0].mxu0
      %v2222 = vpop.f32.mrb[0].mxu0
      %v2223 = vadd.f32 %v690, %v2222
      %v2224 = vpop.f32.mrb[0].mxu0
      %2225 = vmatprep.mubr.bf16.mxu0 0
      %2226 = vmatmul.mubr.bf16.gmra.mrb[0].mxu0 %v1520
      %v2227 = vpop.f32.mrb[0].mxu0
      %v2228 = vadd.f32 %v690, %v2227
      %v2229 = vpop.f32.mrb[0].mxu0
      %v2230 = vpop.f32.mrb[0].mxu0
      %v2231 = vadd.f32 %v690, %v2230
      %v2232 = vpop.f32.mrb[0].mxu0
      %2233 = vmatprep.mubr.bf16.mxu0 0
      %2234 = vmatmul.mubr.bf16.gmra.mrb[0].mxu0 %v1523
      %v2235 = vpop.f32.mrb[0].mxu0
      %v2236 = vadd.f32 %v690, %v2235
      %v2237 = vpop.f32.mrb[0].mxu0
      %v2238 = vpop.f32.mrb[0].mxu0
      %v2239 = vadd.f32 %v690, %v2238
      %v2240 = vpop.f32.mrb[0].mxu0
      %2241 = vmatprep.mubr.bf16.mxu0 0
      %2242 = vmatmul.mubr.bf16.gmra.mrb[0].mxu0 %v1526
      %v2243 = vpop.f32.mrb[0].mxu0
      %v2244 = vadd.f32 %v690, %v2243
      %v2245 = vpop.f32.mrb[0].mxu0
      %v2246 = vpop.f32.mrb[0].mxu0
      %v2247 = vadd.f32 %v690, %v2246
      %v2248 = vpop.f32.mrb[0].mxu0
      %2249 = vmatprep.mubr.bf16.mxu0 0
      %2250 = vmatmul.mubr.bf16.gmra.mrb[0].mxu0 %v1529
      %v2251 = vpop.f32.mrb[0].mxu0
      %v2252 = vadd.f32 %v690, %v2251
      %v2253 = vpop.f32.mrb[0].mxu0
      %v2254 = vpop.f32.mrb[0].mxu0
      %v2255 = vadd.f32 %v690, %v2254
      %v2256 = vpop.f32.mrb[0].mxu0
      %2257 = vmatprep.mubr.bf16.mxu0 0
      %2258 = vmatmul.mubr.bf16.gmra.mrb[0].mxu0 %v1532
      %v2259 = vpop.f32.mrb[0].mxu0
      %v2260 = vadd.f32 %v690, %v2259
      %v2261 = vpop.f32.mrb[0].mxu0
      %v2262 = vpop.f32.mrb[0].mxu0
      %v2263 = vadd.f32 %v690, %v2262
      %v2264 = vpop.f32.mrb[0].mxu0
      %2265 = vmatprep.mubr.bf16.mxu0 0
      %2266 = vmatmul.mubr.bf16.gmra.mrb[0].mxu0 %v1535
      %v2267 = vpop.f32.mrb[0].mxu0
      %v2268 = vadd.f32 %v690, %v2267
      %v2269 = vpop.f32.mrb[0].mxu0
      %v2270 = vpop.f32.mrb[0].mxu0
      %v2271 = vadd.f32 %v690, %v2270
      %v2272 = vpop.f32.mrb[0].mxu0
      %2273 = vmatprep.mubr.bf16.mxu0 0
      %2274 = vmatmul.mubr.bf16.gmra.mrb[0].mxu0 %v1538
      %v2275 = vpop.f32.mrb[0].mxu0
      %v2276 = vadd.f32 %v690, %v2275
      %v2277 = vpop.f32.mrb[0].mxu0
      %v2278 = vpop.f32.mrb[0].mxu0
      %v2279 = vadd.f32 %v690, %v2278
      %v2280 = vpop.f32.mrb[0].mxu0
      %2281 = vmatprep.mubr.bf16.mxu0 0
      %2282 = vmatmul.mubr.bf16.gmra.mrb[0].mxu0 %v1541
      %v2283 = vpop.f32.mrb[0].mxu0
      %v2284 = vadd.f32 %v690, %v2283
      %v2285 = vpop.f32.mrb[0].mxu0
      %v2286 = vpop.f32.mrb[0].mxu0
      %v2287 = vadd.f32 %v690, %v2286
      %v2288 = vpop.f32.mrb[0].mxu0
      %2289 = vmatprep.mubr.bf16.mxu0 0
      %2290 = vmatmul.mubr.bf16.gmra.mrb[0].mxu0 %v1544
      %v2291 = vpop.f32.mrb[0].mxu0
      %v2292 = vadd.f32 %v690, %v2291
      %v2293 = vpop.f32.mrb[0].mxu0
      %v2294 = vpop.f32.mrb[0].mxu0
      %v2295 = vadd.f32 %v690, %v2294
      %v2296 = vpop.f32.mrb[0].mxu0
      %2297 = vmatprep.mubr.bf16.mxu0 0
      %2298 = vmatmul.mubr.bf16.gmra.mrb[0].mxu0 %v1547
      %v2299 = vpop.f32.mrb[0].mxu0
      %v2300 = vadd.f32 %v690, %v2299
      %v2301 = vpop.f32.mrb[0].mxu0
      %v2302 = vpop.f32.mrb[0].mxu0
      %v2303 = vadd.f32 %v690, %v2302
      %v2304 = vpop.f32.mrb[0].mxu0
      %2305 = vmatprep.mubr.bf16.mxu0 0
      %2306 = vmatmul.mubr.bf16.gmra.mrb[0].mxu0 %v1550
      %v2307 = vpop.f32.mrb[0].mxu0
      %v2308 = vadd.f32 %v690, %v2307
      %v2309 = vpop.f32.mrb[0].mxu0
      %v2310 = vpop.f32.mrb[0].mxu0
      %v2311 = vadd.f32 %v690, %v2310
      %v2312 = vpop.f32.mrb[0].mxu0
      %2313 = vmatprep.mubr.bf16.mxu0 0
      %2314 = vmatmul.mubr.bf16.gmra.mrb[0].mxu0 %v1553
      %v2315 = vpop.f32.mrb[0].mxu0
      %v2316 = vadd.f32 %v690, %v2315
      %v2317 = vpop.f32.mrb[0].mxu0
      %v2318 = vpop.f32.mrb[0].mxu0
      %v2319 = vadd.f32 %v690, %v2318
      %v2320 = vpop.f32.mrb[0].mxu0
      %2321 = vmatprep.mubr.bf16.mxu0 0
      %2322 = vmatmul.mubr.bf16.gmra.mrb[0].mxu0 %v1556
      %v2323 = vpop.f32.mrb[0].mxu0
      %v2324 = vadd.f32 %v690, %v2323
      %v2325 = vpop.f32.mrb[0].mxu0
      %v2326 = vpop.f32.mrb[0].mxu0
      %v2327 = vadd.f32 %v690, %v2326
      %v2328 = vpop.f32.mrb[0].mxu0
      %2329 = vmatprep.mubr.bf16.mxu0 0
      %2330 = vmatmul.mubr.bf16.gmra.mrb[0].mxu0 %v1559
      %v2331 = vpop.f32.mrb[0].mxu0
      %v2332 = vadd.f32 %v690, %v2331
      %v2333 = vpop.f32.mrb[0].mxu0
      %v2334 = vpop.f32.mrb[0].mxu0
      %v2335 = vadd.f32 %v690, %v2334
      %v2336 = vpop.f32.mrb[0].mxu0
      %2337 = vmatprep.mubr.bf16.mxu0 0
      %2338 = vmatmul.mubr.bf16.gmra.mrb[0].mxu0 %v1562
      %v2339 = vpop.f32.mrb[0].mxu0
      %v2340 = vadd.f32 %v690, %v2339
      %v2341 = vpop.f32.mrb[0].mxu0
      %v2342 = vpop.f32.mrb[0].mxu0
      %v2343 = vadd.f32 %v690, %v2342
      %v2344 = vpop.f32.mrb[0].mxu0
      %2345 = vmatprep.mubr.bf16.mxu0 0
      %2346 = vmatmul.mubr.bf16.gmra.mrb[0].mxu0 %v1565
      %v2347 = vpop.f32.mrb[0].mxu0
      %v2348 = vadd.f32 %v690, %v2347
      %v2349 = vpop.f32.mrb[0].mxu0
      %v2350 = vpop.f32.mrb[0].mxu0
      %v2351 = vadd.f32 %v690, %v2350
      %v2352 = vpop.f32.mrb[0].mxu0
      %2353 = vmatprep.mubr.bf16.mxu0 0
      %2354 = vmatmul.mubr.bf16.gmra.mrb[0].mxu0 %v1568
      %v2355 = vpop.f32.mrb[0].mxu0
      %v2356 = vadd.f32 %v690, %v2355
      %v2357 = vpop.f32.mrb[0].mxu0
      %v2358 = vpop.f32.mrb[0].mxu0
      %v2359 = vadd.f32 %v690, %v2358
      %v2360 = vpop.f32.mrb[0].mxu0
      %2361 = vmatprep.mubr.bf16.mxu0 0
      %2362 = vmatmul.mubr.bf16.gmra.mrb[0].mxu0 %v1571
      %v2363 = vpop.f32.mrb[0].mxu0
      %v2364 = vadd.f32 %v690, %v2363
      %v2365 = vpop.f32.mrb[0].mxu0
      %v2366 = vpop.f32.mrb[0].mxu0
      %v2367 = vadd.f32 %v690, %v2366
      %v2368 = vpop.f32.mrb[0].mxu0
      %2369 = vmatprep.mubr.bf16.mxu0 0
      %2370 = vmatmul.mubr.bf16.gmra.mrb[0].mxu0 %v1574
      %v2371 = vpop.f32.mrb[0].mxu0
      %v2372 = vadd.f32 %v690, %v2371
      %v2373 = vpop.f32.mrb[0].mxu0
      %v2374 = vpop.f32.mrb[0].mxu0
      %v2375 = vadd.f32 %v690, %v2374
      %v2376 = vpop.f32.mrb[0].mxu0
      %2377 = vmatprep.mubr.bf16.mxu0 0
      %2378 = vmatmul.mubr.bf16.gmra.mrb[0].mxu0 %v1577
      %v2379 = vpop.f32.mrb[0].mxu0
      %v2380 = vadd.f32 %v690, %v2379
      %v2381 = vpop.f32.mrb[0].mxu0
      %v2382 = vpop.f32.mrb[0].mxu0
      %v2383 = vadd.f32 %v690, %v2382
      %v2384 = vpop.f32.mrb[0].mxu0
      %2385 = vmatprep.mubr.bf16.mxu0 0
      %2386 = vmatmul.mubr.bf16.gmra.mrb[0].mxu0 %v1580
      %v2387 = vpop.f32.mrb[0].mxu0
      %v2388 = vadd.f32 %v690, %v2387
      %v2389 = vpop.f32.mrb[0].mxu0
      %v2390 = vpop.f32.mrb[0].mxu0
      %v2391 = vadd.f32 %v690, %v2390
      %v2392 = vpop.f32.mrb[0].mxu0
      %2393 = vmatprep.mubr.bf16.mxu0 0
      %2394 = vmatmul.mubr.bf16.gmra.mrb[0].mxu0 %v1583
      %v2395 = vpop.f32.mrb[0].mxu0
      %v2396 = vadd.f32 %v690, %v2395
      %v2397 = vpop.f32.mrb[0].mxu0
      %v2398 = vpop.f32.mrb[0].mxu0
      %v2399 = vadd.f32 %v690, %v2398
      %v2400 = vpop.f32.mrb[0].mxu0
      %2401 = vmatprep.mubr.bf16.mxu0 0
      %2402 = vmatmul.mubr.bf16.gmra.mrb[0].mxu0 %v1586
      %v2403 = vpop.f32.mrb[0].mxu0
      %v2404 = vadd.f32 %v690, %v2403
      %v2405 = vpop.f32.mrb[0].mxu0
      %v2406 = vpop.f32.mrb[0].mxu0
      %v2407 = vadd.f32 %v690, %v2406
      %v2408 = vpop.f32.mrb[0].mxu0
      %2409 = vmatprep.mubr.bf16.mxu0 0
      %2410 = vmatmul.mubr.bf16.gmra.mrb[0].mxu0 %v1589
      %v2411 = vpop.f32.mrb[0].mxu0
      %v2412 = vadd.f32 %v690, %v2411
      %v2413 = vpop.f32.mrb[0].mxu0
      %v2414 = vpop.f32.mrb[0].mxu0
      %v2415 = vadd.f32 %v690, %v2414
      %v2416 = vpop.f32.mrb[0].mxu0
      %2417 = vmatprep.mubr.bf16.mxu0 0
      %2418 = vmatmul.mubr.bf16.gmra.mrb[0].mxu0 %v1592
      %v2419 = vpop.f32.mrb[0].mxu0
      %v2420 = vadd.f32 %v690, %v2419
      %v2421 = vpop.f32.mrb[0].mxu0
      %v2422 = vpop.f32.mrb[0].mxu0
      %v2423 = vadd.f32 %v690, %v2422
      %v2424 = vpop.f32.mrb[0].mxu0
      %2425 = vmatprep.mubr.bf16.mxu0 0
      %2426 = vmatmul.mubr.bf16.gmra.mrb[0].mxu0 %v1595
      %v2427 = vpop.f32.mrb[0].mxu0
      %v2428 = vadd.f32 %v690, %v2427
      %v2429 = vpop.f32.mrb[0].mxu0
      %v2430 = vpop.f32.mrb[0].mxu0
      %v2431 = vadd.f32 %v690, %v2430
      %v2432 = vpop.f32.mrb[0].mxu0
      %2433 = vmatprep.mubr.bf16.mxu0 0
      %2434 = vmatmul.mubr.bf16.gmra.mrb[0].mxu0 %v1598
      %v2435 = vpop.f32.mrb[0].mxu0
      %v2436 = vadd.f32 %v690, %v2435
      %v2437 = vpop.f32.mrb[0].mxu0
      %v2438 = vpop.f32.mrb[0].mxu0
      %v2439 = vadd.f32 %v690, %v2438
      %v2440 = vpop.f32.mrb[0].mxu0
      %2441 = vmatprep.mubr.bf16.mxu0 0
      %2442 = vmatmul.mubr.bf16.gmra.mrb[0].mxu0 %v1601
      %v2443 = vpop.f32.mrb[0].mxu0
      %v2444 = vadd.f32 %v690, %v2443
      %v2445 = vpop.f32.mrb[0].mxu0
      %v2446 = vpop.f32.mrb[0].mxu0
      %v2447 = vadd.f32 %v690, %v2446
      %v2448 = vpop.f32.mrb[0].mxu0
      %2449 = vmatprep.mubr.bf16.mxu0 0
      %2450 = vmatmul.mubr.bf16.gmra.mrb[0].mxu0 %v1604
      %v2451 = vpop.f32.mrb[0].mxu0
      %v2452 = vadd.f32 %v690, %v2451
      %v2453 = vpop.f32.mrb[0].mxu0
      %v2454 = vpop.f32.mrb[0].mxu0
      %v2455 = vadd.f32 %v690, %v2454
      %v2456 = vpop.f32.mrb[0].mxu0
      %2457 = vmatprep.mubr.bf16.mxu0 0
      %2458 = vmatmul.mubr.bf16.gmra.mrb[0].mxu0 %v1607
      %v2459 = vpop.f32.mrb[0].mxu0
      %v2460 = vadd.f32 %v690, %v2459
      %v2461 = vpop.f32.mrb[0].mxu0
      %v2462 = vpop.f32.mrb[0].mxu0
      %v2463 = vadd.f32 %v690, %v2462
      %v2464 = vpop.f32.mrb[0].mxu0
      %2465 = vmatprep.mubr.bf16.mxu0 0
      %2466 = vmatmul.mubr.bf16.gmra.mrb[0].mxu0 %v1610
      %v2467 = vpop.f32.mrb[0].mxu0
      %v2468 = vadd.f32 %v690, %v2467
      %v2469 = vpop.f32.mrb[0].mxu0
      %v2470 = vpop.f32.mrb[0].mxu0
      %v2471 = vadd.f32 %v690, %v2470
      %v2472 = vpop.f32.mrb[0].mxu0
      %2473 = vmatprep.mubr.bf16.mxu0 0
      %2474 = vmatmul.mubr.bf16.gmra.mrb[0].mxu0 %v1613
      %v2475 = vpop.f32.mrb[0].mxu0
      %v2476 = vadd.f32 %v690, %v2475
      %v2477 = vpop.f32.mrb[0].mxu0
      %v2478 = vpop.f32.mrb[0].mxu0
      %v2479 = vadd.f32 %v690, %v2478
      %v2480 = vpop.f32.mrb[0].mxu0
      %2481 = vmatprep.mubr.bf16.mxu0 0
      %2482 = vmatmul.mubr.bf16.gmra.mrb[0].mxu0 %v1616
      %v2483 = vpop.f32.mrb[0].mxu0
      %v2484 = vadd.f32 %v690, %v2483
      %v2485 = vpop.f32.mrb[0].mxu0
      %v2486 = vpop.f32.mrb[0].mxu0
      %v2487 = vadd.f32 %v690, %v2486
      %v2488 = vpop.f32.mrb[0].mxu0
      %2489 = vmatprep.mubr.bf16.mxu0 0
      %2490 = vmatmul.mubr.bf16.gmra.mrb[0].mxu0 %v1619
      %v2491 = vpop.f32.mrb[0].mxu0
      %v2492 = vadd.f32 %v690, %v2491
      %v2493 = vpop.f32.mrb[0].mxu0
      %v2494 = vpop.f32.mrb[0].mxu0
      %v2495 = vadd.f32 %v690, %v2494
      %v2496 = vpop.f32.mrb[0].mxu0
      %2497 = vmatprep.mubr.bf16.mxu0 0
      %2498 = vmatmul.mubr.bf16.gmra.mrb[0].mxu0 %v1622
      %v2499 = vpop.f32.mrb[0].mxu0
      %v2500 = vadd.f32 %v690, %v2499
      %v2501 = vpop.f32.mrb[0].mxu0
      %v2502 = vpop.f32.mrb[0].mxu0
      %v2503 = vadd.f32 %v690, %v2502
      %v2504 = vpop.f32.mrb[0].mxu0
      %2505 = vmatprep.mubr.bf16.mxu0 0
      %2506 = vmatmul.mubr.bf16.gmra.mrb[0].mxu0 %v1625
      %v2507 = vpop.f32.mrb[0].mxu0
      %v2508 = vadd.f32 %v690, %v2507
      %v2509 = vpop.f32.mrb[0].mxu0
      %v2510 = vpop.f32.mrb[0].mxu0
      %v2511 = vadd.f32 %v690, %v2510
      %v2512 = vpop.f32.mrb[0].mxu0
      %2513 = vmatprep.mubr.bf16.mxu0 0
      %2514 = vmatmul.mubr.bf16.gmra.mrb[0].mxu0 %v1628
      %v2515 = vpop.f32.mrb[0].mxu0
      %v2516 = vadd.f32 %v690, %v2515
      %v2517 = vpop.f32.mrb[0].mxu0
      %v2518 = vpop.f32.mrb[0].mxu0
      %v2519 = vadd.f32 %v690, %v2518
      %v2520 = vpop.f32.mrb[0].mxu0
      %2521 = vmatprep.mubr.bf16.mxu0 0
      %2522 = vmatmul.mubr.bf16.gmra.mrb[0].mxu0 %v1631
      %v2523 = vpop.f32.mrb[0].mxu0
      %v2524 = vadd.f32 %v690, %v2523
      %v2525 = vpop.f32.mrb[0].mxu0
      %v2526 = vpop.f32.mrb[0].mxu0
      %v2527 = vadd.f32 %v690, %v2526
      %v2528 = vpop.f32.mrb[0].mxu0
      %2529 = vmatprep.mubr.bf16.mxu0 0
      %2530 = vmatmul.mubr.bf16.gmra.mrb[0].mxu0 %v1634
      %v2531 = vpop.f32.mrb[0].mxu0
      %v2532 = vadd.f32 %v690, %v2531
      %v2533 = vpop.f32.mrb[0].mxu0
      %v2534 = vpop.f32.mrb[0].mxu0
      %v2535 = vadd.f32 %v690, %v2534
      %v2536 = vpop.f32.mrb[0].mxu0
      %2537 = vmatprep.mubr.bf16.mxu0 0
      %2538 = vmatmul.mubr.bf16.gmra.mrb[0].mxu0 %v1637
      %v2539 = vpop.f32.mrb[0].mxu0
      %v2540 = vadd.f32 %v690, %v2539
      %v2541 = vpop.f32.mrb[0].mxu0
      %v2542 = vpop.f32.mrb[0].mxu0
      %v2543 = vadd.f32 %v690, %v2542
      %v2544 = vpop.f32.mrb[0].mxu0
      %2545 = vmatprep.mubr.bf16.mxu0 0
      %2546 = vmatmul.mubr.bf16.gmra.mrb[0].mxu0 %v1640
      %v2547 = vpop.f32.mrb[0].mxu0
      %v2548 = vadd.f32 %v690, %v2547
      %v2549 = vpop.f32.mrb[0].mxu0
      %v2550 = vpop.f32.mrb[0].mxu0
      %v2551 = vadd.f32 %v690, %v2550
      %v2552 = vpop.f32.mrb[0].mxu0
      %2553 = vmatprep.mubr.bf16.mxu0 0
      %2554 = vmatmul.mubr.bf16.gmra.mrb[0].mxu0 %v1643
      %v2555 = vpop.f32.mrb[0].mxu0
      %v2556 = vadd.f32 %v690, %v2555
      %v2557 = vpop.f32.mrb[0].mxu0
      %v2558 = vpop.f32.mrb[0].mxu0
      %v2559 = vadd.f32 %v690, %v2558
      %v2560 = vpop.f32.mrb[0].mxu0
      %2561 = vmatprep.mubr.bf16.mxu0 0
      %2562 = vmatmul.mubr.bf16.gmra.mrb[0].mxu0 %v1646
      %v2563 = vpop.f32.mrb[0].mxu0
      %v2564 = vadd.f32 %v690, %v2563
      %v2565 = vpop.f32.mrb[0].mxu0
      %v2566 = vpop.f32.mrb[0].mxu0
      %v2567 = vadd.f32 %v690, %v2566
      %v2568 = vpop.f32.mrb[0].mxu0
      %2569 = vmatprep.mubr.bf16.mxu0 0
      %2570 = vmatmul.mubr.bf16.gmra.mrb[0].mxu0 %v1649
      %v2571 = vpop.f32.mrb[0].mxu0
      %v2572 = vadd.f32 %v690, %v2571
      %v2573 = vpop.f32.mrb[0].mxu0
      %v2574 = vpop.f32.mrb[0].mxu0
      %v2575 = vadd.f32 %v690, %v2574
      %v2576 = vpop.f32.mrb[0].mxu0
      %2577 = vmatprep.mubr.bf16.mxu0 0
      %2578 = vmatmul.mubr.bf16.gmra.mrb[0].mxu0 %v1652
      %v2579 = vpop.f32.mrb[0].mxu0
      %v2580 = vadd.f32 %v690, %v2579
      %v2581 = vpop.f32.mrb[0].mxu0
      %v2582 = vpop.f32.mrb[0].mxu0
      %v2583 = vadd.f32 %v690, %v2582
      %v2584 = vpop.f32.mrb[0].mxu0
      %2585 = vmatprep.mubr.bf16.mxu0 0
      %2586 = vmatmul.mubr.bf16.gmra.mrb[0].mxu0 %v1655
      %v2587 = vpop.f32.mrb[0].mxu0
      %v2588 = vadd.f32 %v690, %v2587
      %v2589 = vpop.f32.mrb[0].mxu0
      %v2590 = vpop.f32.mrb[0].mxu0
      %v2591 = vadd.f32 %v690, %v2590
      %v2592 = vpop.f32.mrb[0].mxu0
      %2593 = vmatprep.mubr.bf16.mxu0 0
      %2594 = vmatmul.mubr.bf16.gmra.mrb[0].mxu0 %v1658
      %v2595 = vpop.f32.mrb[0].mxu0
      %v2596 = vadd.f32 %v690, %v2595
      %v2597 = vpop.f32.mrb[0].mxu0
      %v2598 = vpop.f32.mrb[0].mxu0
      %v2599 = vadd.f32 %v690, %v2598
      %v2600 = vpop.f32.mrb[0].mxu0
      %2601 = vmatprep.mubr.bf16.mxu0 0
      %2602 = vmatmul.mubr.bf16.gmra.mrb[0].mxu0 %v1661
      %v2603 = vpop.f32.mrb[0].mxu0
      %v2604 = vadd.f32 %v690, %v2603
      %v2605 = vpop.f32.mrb[0].mxu0
      %v2606 = vpop.f32.mrb[0].mxu0
      %v2607 = vadd.f32 %v690, %v2606
      %v2608 = vpop.f32.mrb[0].mxu0
      %2609 = vmatprep.mubr.bf16.mxu0 0
      %2610 = vmatmul.mubr.bf16.gmra.mrb[0].mxu0 %v1664
      %v2611 = vpop.f32.mrb[0].mxu0
      %v2612 = vadd.f32 %v690, %v2611
      %v2613 = vpop.f32.mrb[0].mxu0
      %v2614 = vpop.f32.mrb[0].mxu0
      %v2615 = vadd.f32 %v690, %v2614
      %v2616 = vpop.f32.mrb[0].mxu0
      %2617 = vmatprep.mubr.bf16.mxu0 0
      %2618 = vmatmul.mubr.bf16.gmra.mrb[0].mxu0 %v1667
      %v2619 = vpop.f32.mrb[0].mxu0
      %v2620 = vadd.f32 %v690, %v2619
      %v2621 = vpop.f32.mrb[0].mxu0
      %v2622 = vpop.f32.mrb[0].mxu0
      %v2623 = vadd.f32 %v690, %v2622
      %v2624 = vpop.f32.mrb[0].mxu0
      %2625 = vmatprep.mubr.bf16.mxu0 0
      %2626 = vmatmul.mubr.bf16.gmra.mrb[0].mxu0 %v1670
      %v2627 = vpop.f32.mrb[0].mxu0
      %v2628 = vadd.f32 %v690, %v2627
      %v2629 = vpop.f32.mrb[0].mxu0
      %v2630 = vpop.f32.mrb[0].mxu0
      %v2631 = vadd.f32 %v690, %v2630
      %v2632 = vpop.f32.mrb[0].mxu0
      %2633 = vmatprep.mubr.bf16.mxu0 0
      %2634 = vmatmul.mubr.bf16.gmra.mrb[0].mxu0 %v1673
      %v2635 = vpop.f32.mrb[0].mxu0
      %v2636 = vadd.f32 %v690, %v2635
      %v2637 = vpop.f32.mrb[0].mxu0
      %v2638 = vpop.f32.mrb[0].mxu0
      %v2639 = vadd.f32 %v690, %v2638
      %v2640 = vpop.f32.mrb[0].mxu0
      %2641 = vmatprep.mubr.bf16.mxu0 0
      %2642 = vmatmul.mubr.bf16.gmra.mrb[0].mxu0 %v1676
      %v2643 = vpop.f32.mrb[0].mxu0
      %v2644 = vadd.f32 %v690, %v2643
      %v2645 = vpop.f32.mrb[0].mxu0
      %v2646 = vpop.f32.mrb[0].mxu0
      %v2647 = vadd.f32 %v690, %v2646
      %v2648 = vpop.f32.mrb[0].mxu0
      %2649 = vmatprep.mubr.bf16.mxu0 0
      %2650 = vmatmul.mubr.bf16.gmra.mrb[0].mxu0 %v1679
      %v2651 = vpop.f32.mrb[0].mxu0
      %v2652 = vadd.f32 %v690, %v2651
      %v2653 = vpop.f32.mrb[0].mxu0
      %v2654 = vpop.f32.mrb[0].mxu0
      %v2655 = vadd.f32 %v690, %v2654
      %v2656 = vpop.f32.mrb[0].mxu0
      %2657 = vmatprep.mubr.bf16.mxu0 0
      %2658 = vmatmul.mubr.bf16.gmra.mrb[0].mxu0 %v1682
      %v2659 = vpop.f32.mrb[0].mxu0
      %v2660 = vadd.f32 %v690, %v2659
      %v2661 = vpop.f32.mrb[0].mxu0
      %v2662 = vpop.f32.mrb[0].mxu0
      %v2663 = vadd.f32 %v690, %v2662
      %v2664 = vpop.f32.mrb[0].mxu0
      %2665 = vmatprep.mubr.bf16.mxu0 0
      %2666 = vmatmul.mubr.bf16.gmra.mrb[0].mxu0 %v1685
      %v2667 = vpop.f32.mrb[0].mxu0
      %v2668 = vadd.f32 %v690, %v2667
      %v2669 = vpop.f32.mrb[0].mxu0
      %v2670 = vpop.f32.mrb[0].mxu0
      %v2671 = vadd.f32 %v690, %v2670
      %v2672 = vpop.f32.mrb[0].mxu0
      %2673 = vmatprep.mubr.bf16.mxu0 0
      %2674 = vmatmul.mubr.bf16.gmra.mrb[0].mxu0 %v1688
      %v2675 = vpop.f32.mrb[0].mxu0
      %v2676 = vadd.f32 %v690, %v2675
      %v2677 = vpop.f32.mrb[0].mxu0
      %v2678 = vpop.f32.mrb[0].mxu0
      %v2679 = vadd.f32 %v690, %v2678
      %v2680 = vpop.f32.mrb[0].mxu0
      %2681 = vmatprep.mubr.bf16.mxu0 0
      %2682 = vmatmul.mubr.bf16.gmra.mrb[0].mxu0 %v1691
      %v2683 = vpop.f32.mrb[0].mxu0
      %v2684 = vadd.f32 %v690, %v2683
      %v2685 = vpop.f32.mrb[0].mxu0
      %v2686 = vpop.f32.mrb[0].mxu0
      %v2687 = vadd.f32 %v690, %v2686
      %v2688 = vpop.f32.mrb[0].mxu0
      %2689 = vmatprep.mubr.bf16.mxu0 0
      %2690 = vmatmul.mubr.bf16.gmra.mrb[0].mxu0 %v1694
      %v2691 = vpop.f32.mrb[0].mxu0
      %v2692 = vadd.f32 %v690, %v2691
      %v2693 = vpop.f32.mrb[0].mxu0
      %v2694 = vpop.f32.mrb[0].mxu0
      %v2695 = vadd.f32 %v690, %v2694
      %v2696 = vpop.f32.mrb[0].mxu0
      %2697 = vmatprep.mubr.bf16.mxu0 0
      %2698 = vmatmul.mubr.bf16.gmra.mrb[0].mxu0 %v1697
      %v2699 = vpop.f32.mrb[0].mxu0
      %v2700 = vadd.f32 %v690, %v2699
      %v2701 = vpop.f32.mrb[0].mxu0
      %v2702 = vpop.f32.mrb[0].mxu0
      %v2703 = vadd.f32 %v690, %v2702
      %v2704 = vpop.f32.mrb[0].mxu0
      %2705 = vmatprep.mubr.bf16.mxu0 0
      %2706 = vmatmul.mubr.bf16.gmra.mrb[0].mxu0 %v1700
      %v2707 = vpop.f32.mrb[0].mxu0
      %v2708 = vadd.f32 %v690, %v2707
      %v2709 = vpop.f32.mrb[0].mxu0
      %v2710 = vpop.f32.mrb[0].mxu0
      %v2711 = vadd.f32 %v690, %v2710
      %v2712 = vpop.f32.mrb[0].mxu0
      %2713 = vmatprep.mubr.bf16.mxu0 0
      %2714 = vmatmul.mubr.bf16.gmra.mrb[0].mxu0 %v1703
      %v2715 = vpop.f32.mrb[0].mxu0
      %v2716 = vadd.f32 %v690, %v2715
      %v2717 = vpop.f32.mrb[0].mxu0
      %v2718 = vpop.f32.mrb[0].mxu0
      %v2719 = vadd.f32 %v690, %v2718
      %v2720 = vpop.f32.mrb[0].mxu0
      %2721 = vmatprep.mubr.bf16.mxu0 0
      %2722 = vmatmul.mubr.bf16.gmra.mrb[0].mxu0 %v1706
      %v2723 = vpop.f32.mrb[0].mxu0
      %v2724 = vadd.f32 %v690, %v2723
      %v2725 = vpop.f32.mrb[0].mxu0
      %v2726 = vpop.f32.mrb[0].mxu0
      %v2727 = vadd.f32 %v690, %v2726
      %v2728 = vpop.f32.mrb[0].mxu0
      %2729 = vmatprep.mubr.bf16.mxu0 0
      %2730 = vmatmul.mubr.bf16.gmra.mrb[0].mxu0 %v1709
      %v2731 = vpop.f32.mrb[0].mxu0
      %v2732 = vadd.f32 %v690, %v2731
      %v2733 = vpop.f32.mrb[0].mxu0
      %v2734 = vpop.f32.mrb[0].mxu0
      %v2735 = vadd.f32 %v690, %v2734
      %v2736 = vpop.f32.mrb[0].mxu0
      %2737 = vmatprep.mubr.bf16.mxu0 0
      %2738 = vmatmul.mubr.bf16.gmra.mrb[0].mxu0 %v1712
      %v2739 = vpop.f32.mrb[0].mxu0
      %v2740 = vadd.f32 %v690, %v2739
      %v2741 = vpop.f32.mrb[0].mxu0
      %v2742 = vpop.f32.mrb[0].mxu0
      %v2743 = vadd.f32 %v690, %v2742
      %v2744 = vpop.f32.mrb[0].mxu0
      %2745 = vmatprep.mubr.bf16.mxu0 0
      %2746 = vmatmul.mubr.bf16.gmra.mrb[0].mxu0 %v1715
      %v2747 = vpop.f32.mrb[0].mxu0
      %v2748 = vadd.f32 %v690, %v2747
      %v2749 = vpop.f32.mrb[0].mxu0
      %v2750 = vpop.f32.mrb[0].mxu0
      %v2751 = vadd.f32 %v690, %v2750
      %v2752 = vpop.f32.mrb[0].mxu0
      %2753 = vmatprep.mubr.bf16.mxu0 0
      %2754 = vmatmul.mubr.bf16.gmra.mrb[0].mxu0 %v1718
      %v2755 = vpop.f32.mrb[0].mxu0
      %v2756 = vadd.f32 %v690, %v2755
      %v2757 = vpop.f32.mrb[0].mxu0
      %v2758 = vpop.f32.mrb[0].mxu0
      %v2759 = vadd.f32 %v690, %v2758
      %v2760 = vpop.f32.mrb[0].mxu0
      %2761 = vmatprep.mubr.bf16.mxu0 0
      %2762 = vmatmul.mubr.bf16.gmra.mrb[0].mxu0 %v1721
      %v2763 = vpop.f32.mrb[0].mxu0
      %v2764 = vadd.f32 %v690, %v2763
      %v2765 = vpop.f32.mrb[0].mxu0
      %v2766 = vpop.f32.mrb[0].mxu0
      %v2767 = vadd.f32 %v690, %v2766
      %v2768 = vpop.f32.mrb[0].mxu0
      %2769 = vmatprep.mubr.bf16.mxu0 0
      %2770 = vmatmul.mubr.bf16.gmra.mrb[0].mxu0 %v1724
      %v2771 = vpop.f32.mrb[0].mxu0
      %v2772 = vadd.f32 %v690, %v2771
      %v2773 = vpop.f32.mrb[0].mxu0
      %v2774 = vpop.f32.mrb[0].mxu0
      %v2775 = vadd.f32 %v690, %v2774
      %v2776 = vpop.f32.mrb[0].mxu0
      %2777 = vmatprep.mubr.bf16.mxu0 0
      %2778 = vmatmul.mubr.bf16.gmra.mrb[0].mxu0 %v1727
      %v2779 = vpop.f32.mrb[0].mxu0
      %v2780 = vadd.f32 %v690, %v2779
      %v2781 = vpop.f32.mrb[0].mxu0
      %v2782 = vpop.f32.mrb[0].mxu0
      %v2783 = vadd.f32 %v690, %v2782
      %v2784 = vpop.f32.mrb[0].mxu0
      %2785 = vdwg.mxu0
      %v2786 = vmax.f32 %v1764, 0.0
      %v2787 = vmax.f32 %v1767, 0.0
      %v2788 = vmax.f32 %v1772, 0.0
      %v2789 = vmax.f32 %v1775, 0.0
      %v2790 = vmax.f32 %v1780, 0.0
      %v2791 = vmax.f32 %v1783, 0.0
      %v2792 = vmax.f32 %v1788, 0.0
      %v2793 = vmax.f32 %v1791, 0.0
      %v2794 = vmax.f32 %v1796, 0.0
      %v2795 = vmax.f32 %v1799, 0.0
      %v2796 = vmax.f32 %v1804, 0.0
      %v2797 = vmax.f32 %v1807, 0.0
      %v2798 = vmax.f32 %v1812, 0.0
      %v2799 = vmax.f32 %v1815, 0.0
      %v2800 = vmax.f32 %v1820, 0.0
      %v2801 = vmax.f32 %v1823, 0.0
      %v2802 = vmax.f32 %v1828, 0.0
      %v2803 = vmax.f32 %v1831, 0.0
      %v2804 = vmax.f32 %v1836, 0.0
      %v2805 = vmax.f32 %v1839, 0.0
      %v2806 = vmax.f32 %v1844, 0.0
      %v2807 = vmax.f32 %v1847, 0.0
      %v2808 = vmax.f32 %v1852, 0.0
      %v2809 = vmax.f32 %v1855, 0.0
      %v2810 = vmax.f32 %v1860, 0.0
      %v2811 = vmax.f32 %v1863, 0.0
      %v2812 = vmax.f32 %v1868, 0.0
      %v2813 = vmax.f32 %v1871, 0.0
      %v2814 = vmax.f32 %v1876, 0.0
      %v2815 = vmax.f32 %v1879, 0.0
      %v2816 = vmax.f32 %v1884, 0.0
      %v2817 = vmax.f32 %v1887, 0.0
      %v2818 = vmax.f32 %v1892, 0.0
      %v2819 = vmax.f32 %v1895, 0.0
      %v2820 = vmax.f32 %v1900, 0.0
      %v2821 = vmax.f32 %v1903, 0.0
      %v2822 = vmax.f32 %v1908, 0.0
      %v2823 = vmax.f32 %v1911, 0.0
      %v2824 = vmax.f32 %v1916, 0.0
      %v2825 = vmax.f32 %v1919, 0.0
      %v2826 = vmax.f32 %v1924, 0.0
      %v2827 = vmax.f32 %v1927, 0.0
      %v2828 = vmax.f32 %v1932, 0.0
      %v2829 = vmax.f32 %v1935, 0.0
      %v2830 = vmax.f32 %v1940, 0.0
      %v2831 = vmax.f32 %v1943, 0.0
      %v2832 = vmax.f32 %v1948, 0.0
      %v2833 = vmax.f32 %v1951, 0.0
      %v2834 = vmax.f32 %v1956, 0.0
      %v2835 = vmax.f32 %v1959, 0.0
      %v2836 = vmax.f32 %v1964, 0.0
      %v2837 = vmax.f32 %v1967, 0.0
      %v2838 = vmax.f32 %v1972, 0.0
      %v2839 = vmax.f32 %v1975, 0.0
      %v2840 = vmax.f32 %v1980, 0.0
      %v2841 = vmax.f32 %v1983, 0.0
      %v2842 = vmax.f32 %v1988, 0.0
      %v2843 = vmax.f32 %v1991, 0.0
      %v2844 = vmax.f32 %v1996, 0.0
      %v2845 = vmax.f32 %v1999, 0.0
      %v2846 = vmax.f32 %v2004, 0.0
      %v2847 = vmax.f32 %v2007, 0.0
      %v2848 = vmax.f32 %v2012, 0.0
      %v2849 = vmax.f32 %v2015, 0.0
      %v2850 = vmax.f32 %v2020, 0.0
      %v2851 = vmax.f32 %v2023, 0.0
      %v2852 = vmax.f32 %v2028, 0.0
      %v2853 = vmax.f32 %v2031, 0.0
      %v2854 = vmax.f32 %v2036, 0.0
      %v2855 = vmax.f32 %v2039, 0.0
      %v2856 = vmax.f32 %v2044, 0.0
      %v2857 = vmax.f32 %v2047, 0.0
      %v2858 = vmax.f32 %v2052, 0.0
      %v2859 = vmax.f32 %v2055, 0.0
      %v2860 = vmax.f32 %v2060, 0.0
      %v2861 = vmax.f32 %v2063, 0.0
      %v2862 = vmax.f32 %v2068, 0.0
      %v2863 = vmax.f32 %v2071, 0.0
      %v2864 = vmax.f32 %v2076, 0.0
      %v2865 = vmax.f32 %v2079, 0.0
      %v2866 = vmax.f32 %v2084, 0.0
      %v2867 = vmax.f32 %v2087, 0.0
      %v2868 = vmax.f32 %v2092, 0.0
      %v2869 = vmax.f32 %v2095, 0.0
      %v2870 = vmax.f32 %v2100, 0.0
      %v2871 = vmax.f32 %v2103, 0.0
      %v2872 = vmax.f32 %v2108, 0.0
      %v2873 = vmax.f32 %v2111, 0.0
      %v2874 = vmax.f32 %v2116, 0.0
      %v2875 = vmax.f32 %v2119, 0.0
      %v2876 = vmax.f32 %v2124, 0.0
      %v2877 = vmax.f32 %v2127, 0.0
      %v2878 = vmax.f32 %v2132, 0.0
      %v2879 = vmax.f32 %v2135, 0.0
      %v2880 = vmax.f32 %v2140, 0.0
      %v2881 = vmax.f32 %v2143, 0.0
      %v2882 = vmax.f32 %v2148, 0.0
      %v2883 = vmax.f32 %v2151, 0.0
      %v2884 = vmax.f32 %v2156, 0.0
      %v2885 = vmax.f32 %v2159, 0.0
      %v2886 = vmax.f32 %v2164, 0.0
      %v2887 = vmax.f32 %v2167, 0.0
      %v2888 = vmax.f32 %v2172, 0.0
      %v2889 = vmax.f32 %v2175, 0.0
      %v2890 = vmax.f32 %v2180, 0.0
      %v2891 = vmax.f32 %v2183, 0.0
      %v2892 = vmax.f32 %v2188, 0.0
      %v2893 = vmax.f32 %v2191, 0.0
      %v2894 = vmax.f32 %v2196, 0.0
      %v2895 = vmax.f32 %v2199, 0.0
      %v2896 = vmax.f32 %v2204, 0.0
      %v2897 = vmax.f32 %v2207, 0.0
      %v2898 = vmax.f32 %v2212, 0.0
      %v2899 = vmax.f32 %v2215, 0.0
      %v2900 = vmax.f32 %v2220, 0.0
      %v2901 = vmax.f32 %v2223, 0.0
      %v2902 = vmax.f32 %v2228, 0.0
      %v2903 = vmax.f32 %v2231, 0.0
      %v2904 = vmax.f32 %v2236, 0.0
      %v2905 = vmax.f32 %v2239, 0.0
      %v2906 = vmax.f32 %v2244, 0.0
      %v2907 = vmax.f32 %v2247, 0.0
      %v2908 = vmax.f32 %v2252, 0.0
      %v2909 = vmax.f32 %v2255, 0.0
      %v2910 = vmax.f32 %v2260, 0.0
      %v2911 = vmax.f32 %v2263, 0.0
      %v2912 = vmax.f32 %v2268, 0.0
      %v2913 = vmax.f32 %v2271, 0.0
      %v2914 = vmax.f32 %v2276, 0.0
      %v2915 = vmax.f32 %v2279, 0.0
      %v2916 = vmax.f32 %v2284, 0.0
      %v2917 = vmax.f32 %v2287, 0.0
      %v2918 = vmax.f32 %v2292, 0.0
      %v2919 = vmax.f32 %v2295, 0.0
      %v2920 = vmax.f32 %v2300, 0.0
      %v2921 = vmax.f32 %v2303, 0.0
      %v2922 = vmax.f32 %v2308, 0.0
      %v2923 = vmax.f32 %v2311, 0.0
      %v2924 = vmax.f32 %v2316, 0.0
      %v2925 = vmax.f32 %v2319, 0.0
      %v2926 = vmax.f32 %v2324, 0.0
      %v2927 = vmax.f32 %v2327, 0.0
      %v2928 = vmax.f32 %v2332, 0.0
      %v2929 = vmax.f32 %v2335, 0.0
      %v2930 = vmax.f32 %v2340, 0.0
      %v2931 = vmax.f32 %v2343, 0.0
      %v2932 = vmax.f32 %v2348, 0.0
      %v2933 = vmax.f32 %v2351, 0.0
      %v2934 = vmax.f32 %v2356, 0.0
      %v2935 = vmax.f32 %v2359, 0.0
      %v2936 = vmax.f32 %v2364, 0.0
      %v2937 = vmax.f32 %v2367, 0.0
      %v2938 = vmax.f32 %v2372, 0.0
      %v2939 = vmax.f32 %v2375, 0.0
      %v2940 = vmax.f32 %v2380, 0.0
      %v2941 = vmax.f32 %v2383, 0.0
      %v2942 = vmax.f32 %v2388, 0.0
      %v2943 = vmax.f32 %v2391, 0.0
      %v2944 = vmax.f32 %v2396, 0.0
      %v2945 = vmax.f32 %v2399, 0.0
      %v2946 = vmax.f32 %v2404, 0.0
      %v2947 = vmax.f32 %v2407, 0.0
      %v2948 = vmax.f32 %v2412, 0.0
      %v2949 = vmax.f32 %v2415, 0.0
      %v2950 = vmax.f32 %v2420, 0.0
      %v2951 = vmax.f32 %v2423, 0.0
      %v2952 = vmax.f32 %v2428, 0.0
      %v2953 = vmax.f32 %v2431, 0.0
      %v2954 = vmax.f32 %v2436, 0.0
      %v2955 = vmax.f32 %v2439, 0.0
      %v2956 = vmax.f32 %v2444, 0.0
      %v2957 = vmax.f32 %v2447, 0.0
      %v2958 = vmax.f32 %v2452, 0.0
      %v2959 = vmax.f32 %v2455, 0.0
      %v2960 = vmax.f32 %v2460, 0.0
      %v2961 = vmax.f32 %v2463, 0.0
      %v2962 = vmax.f32 %v2468, 0.0
      %v2963 = vmax.f32 %v2471, 0.0
      %v2964 = vmax.f32 %v2476, 0.0
      %v2965 = vmax.f32 %v2479, 0.0
      %v2966 = vmax.f32 %v2484, 0.0
      %v2967 = vmax.f32 %v2487, 0.0
      %v2968 = vmax.f32 %v2492, 0.0
      %v2969 = vmax.f32 %v2495, 0.0
      %v2970 = vmax.f32 %v2500, 0.0
      %v2971 = vmax.f32 %v2503, 0.0
      %v2972 = vmax.f32 %v2508, 0.0
      %v2973 = vmax.f32 %v2511, 0.0
      %v2974 = vmax.f32 %v2516, 0.0
      %v2975 = vmax.f32 %v2519, 0.0
      %v2976 = vmax.f32 %v2524, 0.0
      %v2977 = vmax.f32 %v2527, 0.0
      %v2978 = vmax.f32 %v2532, 0.0
      %v2979 = vmax.f32 %v2535, 0.0
      %v2980 = vmax.f32 %v2540, 0.0
      %v2981 = vmax.f32 %v2543, 0.0
      %v2982 = vmax.f32 %v2548, 0.0
      %v2983 = vmax.f32 %v2551, 0.0
      %v2984 = vmax.f32 %v2556, 0.0
      %v2985 = vmax.f32 %v2559, 0.0
      %v2986 = vmax.f32 %v2564, 0.0
      %v2987 = vmax.f32 %v2567, 0.0
      %v2988 = vmax.f32 %v2572, 0.0
      %v2989 = vmax.f32 %v2575, 0.0
      %v2990 = vmax.f32 %v2580, 0.0
      %v2991 = vmax.f32 %v2583, 0.0
      %v2992 = vmax.f32 %v2588, 0.0
      %v2993 = vmax.f32 %v2591, 0.0
      %v2994 = vmax.f32 %v2596, 0.0
      %v2995 = vmax.f32 %v2599, 0.0
      %v2996 = vmax.f32 %v2604, 0.0
      %v2997 = vmax.f32 %v2607, 0.0
      %v2998 = vmax.f32 %v2612, 0.0
      %v2999 = vmax.f32 %v2615, 0.0
      %v3000 = vmax.f32 %v2620, 0.0
      %v3001 = vmax.f32 %v2623, 0.0
      %v3002 = vmax.f32 %v2628, 0.0
      %v3003 = vmax.f32 %v2631, 0.0
      %v3004 = vmax.f32 %v2636, 0.0
      %v3005 = vmax.f32 %v2639, 0.0
      %v3006 = vmax.f32 %v2644, 0.0
      %v3007 = vmax.f32 %v2647, 0.0
      %v3008 = vmax.f32 %v2652, 0.0
      %v3009 = vmax.f32 %v2655, 0.0
      %v3010 = vmax.f32 %v2660, 0.0
      %v3011 = vmax.f32 %v2663, 0.0
      %v3012 = vmax.f32 %v2668, 0.0
      %v3013 = vmax.f32 %v2671, 0.0
      %v3014 = vmax.f32 %v2676, 0.0
      %v3015 = vmax.f32 %v2679, 0.0
      %v3016 = vmax.f32 %v2684, 0.0
      %v3017 = vmax.f32 %v2687, 0.0
      %v3018 = vmax.f32 %v2692, 0.0
      %v3019 = vmax.f32 %v2695, 0.0
      %v3020 = vmax.f32 %v2700, 0.0
      %v3021 = vmax.f32 %v2703, 0.0
      %v3022 = vmax.f32 %v2708, 0.0
      %v3023 = vmax.f32 %v2711, 0.0
      %v3024 = vmax.f32 %v2716, 0.0
      %v3025 = vmax.f32 %v2719, 0.0
      %v3026 = vmax.f32 %v2724, 0.0
      %v3027 = vmax.f32 %v2727, 0.0
      %v3028 = vmax.f32 %v2732, 0.0
      %v3029 = vmax.f32 %v2735, 0.0
      %v3030 = vmax.f32 %v2740, 0.0
      %v3031 = vmax.f32 %v2743, 0.0
      %v3032 = vmax.f32 %v2748, 0.0
      %v3033 = vmax.f32 %v2751, 0.0
      %v3034 = vmax.f32 %v2756, 0.0
      %v3035 = vmax.f32 %v2759, 0.0
      %v3036 = vmax.f32 %v2764, 0.0
      %v3037 = vmax.f32 %v2767, 0.0
      %v3038 = vmax.f32 %v2772, 0.0
      %v3039 = vmax.f32 %v2775, 0.0
      %v3040 = vmax.f32 %v2780, 0.0
      %v3041 = vmax.f32 %v2783, 0.0
      %v3042 = vpack.c.bf16 %v2787, %v2786
      %v3043 = vpack.c.bf16 %v2789, %v2788
      %v3044 = vpack.c.bf16 %v2791, %v2790
      %v3045 = vpack.c.bf16 %v2793, %v2792
      %v3046 = vpack.c.bf16 %v2795, %v2794
      %v3047 = vpack.c.bf16 %v2797, %v2796
      %v3048 = vpack.c.bf16 %v2799, %v2798
      %v3049 = vpack.c.bf16 %v2801, %v2800
      %v3050 = vpack.c.bf16 %v2803, %v2802
      %v3051 = vpack.c.bf16 %v2805, %v2804
      %v3052 = vpack.c.bf16 %v2807, %v2806
      %v3053 = vpack.c.bf16 %v2809, %v2808
      %v3054 = vpack.c.bf16 %v2811, %v2810
      %v3055 = vpack.c.bf16 %v2813, %v2812
      %v3056 = vpack.c.bf16 %v2815, %v2814
      %v3057 = vpack.c.bf16 %v2817, %v2816
      %v3058 = vpack.c.bf16 %v2819, %v2818
      %v3059 = vpack.c.bf16 %v2821, %v2820
      %v3060 = vpack.c.bf16 %v2823, %v2822
      %v3061 = vpack.c.bf16 %v2825, %v2824
      %v3062 = vpack.c.bf16 %v2827, %v2826
      %v3063 = vpack.c.bf16 %v2829, %v2828
      %v3064 = vpack.c.bf16 %v2831, %v2830
      %v3065 = vpack.c.bf16 %v2833, %v2832
      %v3066 = vpack.c.bf16 %v2835, %v2834
      %v3067 = vpack.c.bf16 %v2837, %v2836
      %v3068 = vpack.c.bf16 %v2839, %v2838
      %v3069 = vpack.c.bf16 %v2841, %v2840
      %v3070 = vpack.c.bf16 %v2843, %v2842
      %v3071 = vpack.c.bf16 %v2845, %v2844
      %v3072 = vpack.c.bf16 %v2847, %v2846
      %v3073 = vpack.c.bf16 %v2849, %v2848
      %v3074 = vpack.c.bf16 %v2851, %v2850
      %v3075 = vpack.c.bf16 %v2853, %v2852
      %v3076 = vpack.c.bf16 %v2855, %v2854
      %v3077 = vpack.c.bf16 %v2857, %v2856
      %v3078 = vpack.c.bf16 %v2859, %v2858
      %v3079 = vpack.c.bf16 %v2861, %v2860
      %v3080 = vpack.c.bf16 %v2863, %v2862
      %v3081 = vpack.c.bf16 %v2865, %v2864
      %v3082 = vpack.c.bf16 %v2867, %v2866
      %v3083 = vpack.c.bf16 %v2869, %v2868
      %v3084 = vpack.c.bf16 %v2871, %v2870
      %v3085 = vpack.c.bf16 %v2873, %v2872
      %v3086 = vpack.c.bf16 %v2875, %v2874
      %v3087 = vpack.c.bf16 %v2877, %v2876
      %v3088 = vpack.c.bf16 %v2879, %v2878
      %v3089 = vpack.c.bf16 %v2881, %v2880
      %v3090 = vpack.c.bf16 %v2883, %v2882
      %v3091 = vpack.c.bf16 %v2885, %v2884
      %v3092 = vpack.c.bf16 %v2887, %v2886
      %v3093 = vpack.c.bf16 %v2889, %v2888
      %v3094 = vpack.c.bf16 %v2891, %v2890
      %v3095 = vpack.c.bf16 %v2893, %v2892
      %v3096 = vpack.c.bf16 %v2895, %v2894
      %v3097 = vpack.c.bf16 %v2897, %v2896
      %v3098 = vpack.c.bf16 %v2899, %v2898
      %v3099 = vpack.c.bf16 %v2901, %v2900
      %v3100 = vpack.c.bf16 %v2903, %v2902
      %v3101 = vpack.c.bf16 %v2905, %v2904
      %v3102 = vpack.c.bf16 %v2907, %v2906
      %v3103 = vpack.c.bf16 %v2909, %v2908
      %v3104 = vpack.c.bf16 %v2911, %v2910
      %v3105 = vpack.c.bf16 %v2913, %v2912
      %v3106 = vpack.c.bf16 %v2915, %v2914
      %v3107 = vpack.c.bf16 %v2917, %v2916
      %v3108 = vpack.c.bf16 %v2919, %v2918
      %v3109 = vpack.c.bf16 %v2921, %v2920
      %v3110 = vpack.c.bf16 %v2923, %v2922
      %v3111 = vpack.c.bf16 %v2925, %v2924
      %v3112 = vpack.c.bf16 %v2927, %v2926
      %v3113 = vpack.c.bf16 %v2929, %v2928
      %v3114 = vpack.c.bf16 %v2931, %v2930
      %v3115 = vpack.c.bf16 %v2933, %v2932
      %v3116 = vpack.c.bf16 %v2935, %v2934
      %v3117 = vpack.c.bf16 %v2937, %v2936
      %v3118 = vpack.c.bf16 %v2939, %v2938
      %v3119 = vpack.c.bf16 %v2941, %v2940
      %v3120 = vpack.c.bf16 %v2943, %v2942
      %v3121 = vpack.c.bf16 %v2945, %v2944
      %v3122 = vpack.c.bf16 %v2947, %v2946
      %v3123 = vpack.c.bf16 %v2949, %v2948
      %v3124 = vpack.c.bf16 %v2951, %v2950
      %v3125 = vpack.c.bf16 %v2953, %v2952
      %v3126 = vpack.c.bf16 %v2955, %v2954
      %v3127 = vpack.c.bf16 %v2957, %v2956
      %v3128 = vpack.c.bf16 %v2959, %v2958
      %v3129 = vpack.c.bf16 %v2961, %v2960
      %v3130 = vpack.c.bf16 %v2963, %v2962
      %v3131 = vpack.c.bf16 %v2965, %v2964
      %v3132 = vpack.c.bf16 %v2967, %v2966
      %v3133 = vpack.c.bf16 %v2969, %v2968
      %v3134 = vpack.c.bf16 %v2971, %v2970
      %v3135 = vpack.c.bf16 %v2973, %v2972
      %v3136 = vpack.c.bf16 %v2975, %v2974
      %v3137 = vpack.c.bf16 %v2977, %v2976
      %v3138 = vpack.c.bf16 %v2979, %v2978
      %v3139 = vpack.c.bf16 %v2981, %v2980
      %v3140 = vpack.c.bf16 %v2983, %v2982
      %v3141 = vpack.c.bf16 %v2985, %v2984
      %v3142 = vpack.c.bf16 %v2987, %v2986
      %v3143 = vpack.c.bf16 %v2989, %v2988
      %v3144 = vpack.c.bf16 %v2991, %v2990
      %v3145 = vpack.c.bf16 %v2993, %v2992
      %v3146 = vpack.c.bf16 %v2995, %v2994
      %v3147 = vpack.c.bf16 %v2997, %v2996
      %v3148 = vpack.c.bf16 %v2999, %v2998
      %v3149 = vpack.c.bf16 %v3001, %v3000
      %v3150 = vpack.c.bf16 %v3003, %v3002
      %v3151 = vpack.c.bf16 %v3005, %v3004
      %v3152 = vpack.c.bf16 %v3007, %v3006
      %v3153 = vpack.c.bf16 %v3009, %v3008
      %v3154 = vpack.c.bf16 %v3011, %v3010
      %v3155 = vpack.c.bf16 %v3013, %v3012
      %v3156 = vpack.c.bf16 %v3015, %v3014
      %v3157 = vpack.c.bf16 %v3017, %v3016
      %v3158 = vpack.c.bf16 %v3019, %v3018
      %v3159 = vpack.c.bf16 %v3021, %v3020
      %v3160 = vpack.c.bf16 %v3023, %v3022
      %v3161 = vpack.c.bf16 %v3025, %v3024
      %v3162 = vpack.c.bf16 %v3027, %v3026
      %v3163 = vpack.c.bf16 %v3029, %v3028
      %v3164 = vpack.c.bf16 %v3031, %v3030
      %v3165 = vpack.c.bf16 %v3033, %v3032
      %v3166 = vpack.c.bf16 %v3035, %v3034
      %v3167 = vpack.c.bf16 %v3037, %v3036
      %v3168 = vpack.c.bf16 %v3039, %v3038
      %v3169 = vpack.c.bf16 %v3041, %v3040
      %v3170 = vld [vmem:[%s5] sm:$0xf]
      %v3171 = vld [vmem:[%s5 + $0x4] sm:$0xf]
      %v3172 = vld [vmem:[%s5 + $0x8] sm:$0xf]
      %v3173 = vld [vmem:[%s5 + $0xc] sm:$0xf]
      %v3178 = vunpack.c.l.b16 %v3170
      %v3179 = vunpack.c.l.b16 %v3171
      %v3180 = vunpack.c.l.b16 %v3172
      %v3181 = vunpack.c.l.b16 %v3173
      %v3182 = vpack.c.b16 %v3179, %v3178
      %v3183 = vpack.c.b16 %v3181, %v3180
      %v3187 = vsel %vm1344, %v3042, 0
      %v3190 = vsel %vm1344, %v3043, 0
      %v3193 = vsel %vm1344, %v3044, 0
      %v3196 = vsel %vm1344, %v3045, 0
      %v3199 = vsel %vm1344, %v3046, 0
      %v3202 = vsel %vm1344, %v3047, 0
      %v3205 = vsel %vm1344, %v3048, 0
      %v3208 = vsel %vm1344, %v3049, 0
      %v3211 = vsel %vm1344, %v3050, 0
      %v3214 = vsel %vm1344, %v3051, 0
      %v3217 = vsel %vm1344, %v3052, 0
      %v3220 = vsel %vm1344, %v3053, 0
      %v3223 = vsel %vm1344, %v3054, 0
      %v3226 = vsel %vm1344, %v3055, 0
      %v3229 = vsel %vm1344, %v3056, 0
      %v3232 = vsel %vm1344, %v3057, 0
      %v3235 = vsel %vm1344, %v3058, 0
      %v3238 = vsel %vm1344, %v3059, 0
      %v3241 = vsel %vm1344, %v3060, 0
      %v3244 = vsel %vm1344, %v3061, 0
      %v3247 = vsel %vm1344, %v3062, 0
      %v3250 = vsel %vm1344, %v3063, 0
      %v3253 = vsel %vm1344, %v3064, 0
      %v3256 = vsel %vm1344, %v3065, 0
      %v3259 = vsel %vm1344, %v3066, 0
      %v3262 = vsel %vm1344, %v3067, 0
      %v3265 = vsel %vm1344, %v3068, 0
      %v3268 = vsel %vm1344, %v3069, 0
      %v3271 = vsel %vm1344, %v3070, 0
      %v3274 = vsel %vm1344, %v3071, 0
      %v3277 = vsel %vm1344, %v3072, 0
      %v3280 = vsel %vm1344, %v3073, 0
      %v3283 = vsel %vm1344, %v3074, 0
      %v3286 = vsel %vm1344, %v3075, 0
      %v3289 = vsel %vm1344, %v3076, 0
      %v3292 = vsel %vm1344, %v3077, 0
      %v3295 = vsel %vm1344, %v3078, 0
      %v3298 = vsel %vm1344, %v3079, 0
      %v3301 = vsel %vm1344, %v3080, 0
      %v3304 = vsel %vm1344, %v3081, 0
      %v3307 = vsel %vm1344, %v3082, 0
      %v3310 = vsel %vm1344, %v3083, 0
      %v3313 = vsel %vm1344, %v3084, 0
      %v3316 = vsel %vm1344, %v3085, 0
      %v3319 = vsel %vm1344, %v3086, 0
      %v3322 = vsel %vm1344, %v3087, 0
      %v3325 = vsel %vm1344, %v3088, 0
      %v3328 = vsel %vm1344, %v3089, 0
      %v3331 = vsel %vm1344, %v3090, 0
      %v3334 = vsel %vm1344, %v3091, 0
      %v3337 = vsel %vm1344, %v3092, 0
      %v3340 = vsel %vm1344, %v3093, 0
      %v3343 = vsel %vm1344, %v3094, 0
      %v3346 = vsel %vm1344, %v3095, 0
      %v3349 = vsel %vm1344, %v3096, 0
      %v3352 = vsel %vm1344, %v3097, 0
      %v3355 = vsel %vm1344, %v3098, 0
      %v3358 = vsel %vm1344, %v3099, 0
      %v3361 = vsel %vm1344, %v3100, 0
      %v3364 = vsel %vm1344, %v3101, 0
      %v3367 = vsel %vm1344, %v3102, 0
      %v3370 = vsel %vm1344, %v3103, 0
      %v3373 = vsel %vm1344, %v3104, 0
      %v3376 = vsel %vm1344, %v3105, 0
      %v3379 = vsel %vm1344, %v3106, 0
      %v3382 = vsel %vm1344, %v3107, 0
      %v3385 = vsel %vm1344, %v3108, 0
      %v3388 = vsel %vm1344, %v3109, 0
      %v3391 = vsel %vm1344, %v3110, 0
      %v3394 = vsel %vm1344, %v3111, 0
      %v3397 = vsel %vm1344, %v3112, 0
      %v3400 = vsel %vm1344, %v3113, 0
      %v3403 = vsel %vm1344, %v3114, 0
      %v3406 = vsel %vm1344, %v3115, 0
      %v3409 = vsel %vm1344, %v3116, 0
      %v3412 = vsel %vm1344, %v3117, 0
      %v3415 = vsel %vm1344, %v3118, 0
      %v3418 = vsel %vm1344, %v3119, 0
      %v3421 = vsel %vm1344, %v3120, 0
      %v3424 = vsel %vm1344, %v3121, 0
      %v3427 = vsel %vm1344, %v3122, 0
      %v3430 = vsel %vm1344, %v3123, 0
      %v3433 = vsel %vm1344, %v3124, 0
      %v3436 = vsel %vm1344, %v3125, 0
      %v3439 = vsel %vm1344, %v3126, 0
      %v3442 = vsel %vm1344, %v3127, 0
      %v3445 = vsel %vm1344, %v3128, 0
      %v3448 = vsel %vm1344, %v3129, 0
      %v3451 = vsel %vm1344, %v3130, 0
      %v3454 = vsel %vm1344, %v3131, 0
      %v3457 = vsel %vm1344, %v3132, 0
      %v3460 = vsel %vm1344, %v3133, 0
      %v3463 = vsel %vm1344, %v3134, 0
      %v3466 = vsel %vm1344, %v3135, 0
      %v3469 = vsel %vm1344, %v3136, 0
      %v3472 = vsel %vm1344, %v3137, 0
      %v3475 = vsel %vm1344, %v3138, 0
      %v3478 = vsel %vm1344, %v3139, 0
      %v3481 = vsel %vm1344, %v3140, 0
      %v3484 = vsel %vm1344, %v3141, 0
      %v3487 = vsel %vm1344, %v3142, 0
      %v3490 = vsel %vm1344, %v3143, 0
      %v3493 = vsel %vm1344, %v3144, 0
      %v3496 = vsel %vm1344, %v3145, 0
      %v3499 = vsel %vm1344, %v3146, 0
      %v3502 = vsel %vm1344, %v3147, 0
      %v3505 = vsel %vm1344, %v3148, 0
      %v3508 = vsel %vm1344, %v3149, 0
      %v3511 = vsel %vm1344, %v3150, 0
      %v3514 = vsel %vm1344, %v3151, 0
      %v3517 = vsel %vm1344, %v3152, 0
      %v3520 = vsel %vm1344, %v3153, 0
      %v3523 = vsel %vm1344, %v3154, 0
      %v3526 = vsel %vm1344, %v3155, 0
      %v3529 = vsel %vm1344, %v3156, 0
      %v3532 = vsel %vm1344, %v3157, 0
      %v3535 = vsel %vm1344, %v3158, 0
      %v3538 = vsel %vm1344, %v3159, 0
      %v3541 = vsel %vm1344, %v3160, 0
      %v3544 = vsel %vm1344, %v3161, 0
      %v3547 = vsel %vm1344, %v3162, 0
      %v3550 = vsel %vm1344, %v3163, 0
      %v3553 = vsel %vm1344, %v3164, 0
      %v3556 = vsel %vm1344, %v3165, 0
      %v3559 = vsel %vm1344, %v3166, 0
      %v3562 = vsel %vm1344, %v3167, 0
      %v3565 = vsel %vm1344, %v3168, 0
      %v3568 = vsel %vm1344, %v3169, 0
      %3570 = vmatprep.subr.bf16.mxu0 0
      %3571 = vmatpush1.bf16.msra.mxu0 %v3182
      %3572 = vmatprep.subr.bf16.mxu0 0
      %3573 = vmatpush1.bf16.msra.mxu0 %v3183
      %3574 = vmatprep.subr.bf16.mxu0 0
      %3575 = vmatpush1.bf16.msra.mxu0 0
      %3576 = vmatprep.subr.bf16.mxu0 0
      %3577 = vmatpush1.bf16.msra.mxu0 0
      %3578 = vmatprep.subr.bf16.mxu0 0
      %3579 = vmatpush1.bf16.msra.mxu0 0
      %3580 = vmatprep.subr.bf16.mxu0 0
      %3581 = vmatpush1.bf16.msra.mxu0 0
      %3582 = vmatprep.subr.bf16.mxu0 0
      %3583 = vmatpush1.bf16.msra.mxu0 0
      %3584 = vmatprep.subr.bf16.mxu0 0
      %3585 = vmatpush1.bf16.msra.mxu0 0
      %3586 = vmatprep.subr.bf16.mxu0 0
      %3587 = vmatpush1.bf16.msra.mxu0 0
      %3588 = vmatprep.subr.bf16.mxu0 0
      %3589 = vmatpush1.bf16.msra.mxu0 0
      %3590 = vmatprep.subr.bf16.mxu0 0
      %3591 = vmatpush1.bf16.msra.mxu0 0
      %3592 = vmatprep.subr.bf16.mxu0 0
      %3593 = vmatpush1.bf16.msra.mxu0 0
      %3594 = vmatprep.subr.bf16.mxu0 0
      %3595 = vmatpush1.bf16.msra.mxu0 0
      %3596 = vmatprep.subr.bf16.mxu0 0
      %3597 = vmatpush1.bf16.msra.mxu0 0
      %3598 = vmatprep.subr.bf16.mxu0 0
      %3599 = vmatpush1.bf16.msra.mxu0 0
      %3600 = vmatprep.subr.bf16.mxu0 0
      %3601 = vmatpush1.bf16.msra.mxu0 0
      %3602 = vmatprep.mubr.bf16.mxu0 0
      %3603 = vmatmul.mubr.bf16.gmra.mrb[0].mxu0 %v3187
      %v3604 = vpop.f32.mrb[0].mxu0
      %v3605 = vadd.f32 0.0, %v3604
      %v3606 = vpop.f32.mrb[0].mxu0
      %v3607 = vpop.f32.mrb[0].mxu0
      %v3608 = vadd.f32 0.0, %v3607
      %v3609 = vpop.f32.mrb[0].mxu0
      %3610 = vmatprep.mubr.bf16.mxu0 0
      %3611 = vmatmul.mubr.bf16.gmra.mrb[0].mxu0 %v3190
      %v3612 = vpop.f32.mrb[0].mxu0
      %v3613 = vadd.f32 0.0, %v3612
      %v3614 = vpop.f32.mrb[0].mxu0
      %v3615 = vpop.f32.mrb[0].mxu0
      %v3616 = vadd.f32 0.0, %v3615
      %v3617 = vpop.f32.mrb[0].mxu0
      %3618 = vmatprep.mubr.bf16.mxu0 0
      %3619 = vmatmul.mubr.bf16.gmra.mrb[0].mxu0 %v3193
      %v3620 = vpop.f32.mrb[0].mxu0
      %v3621 = vadd.f32 0.0, %v3620
      %v3622 = vpop.f32.mrb[0].mxu0
      %v3623 = vpop.f32.mrb[0].mxu0
      %v3624 = vadd.f32 0.0, %v3623
      %v3625 = vpop.f32.mrb[0].mxu0
      %3626 = vmatprep.mubr.bf16.mxu0 0
      %3627 = vmatmul.mubr.bf16.gmra.mrb[0].mxu0 %v3196
      %v3628 = vpop.f32.mrb[0].mxu0
      %v3629 = vadd.f32 0.0, %v3628
      %v3630 = vpop.f32.mrb[0].mxu0
      %v3631 = vpop.f32.mrb[0].mxu0
      %v3632 = vadd.f32 0.0, %v3631
      %v3633 = vpop.f32.mrb[0].mxu0
      %3634 = vmatprep.mubr.bf16.mxu0 0
      %3635 = vmatmul.mubr.bf16.gmra.mrb[0].mxu0 %v3199
      %v3636 = vpop.f32.mrb[0].mxu0
      %v3637 = vadd.f32 0.0, %v3636
      %v3638 = vpop.f32.mrb[0].mxu0
      %v3639 = vpop.f32.mrb[0].mxu0
      %v3640 = vadd.f32 0.0, %v3639
      %v3641 = vpop.f32.mrb[0].mxu0
      %3642 = vmatprep.mubr.bf16.mxu0 0
      %3643 = vmatmul.mubr.bf16.gmra.mrb[0].mxu0 %v3202
      %v3644 = vpop.f32.mrb[0].mxu0
      %v3645 = vadd.f32 0.0, %v3644
      %v3646 = vpop.f32.mrb[0].mxu0
      %v3647 = vpop.f32.mrb[0].mxu0
      %v3648 = vadd.f32 0.0, %v3647
      %v3649 = vpop.f32.mrb[0].mxu0
      %3650 = vmatprep.mubr.bf16.mxu0 0
      %3651 = vmatmul.mubr.bf16.gmra.mrb[0].mxu0 %v3205
      %v3652 = vpop.f32.mrb[0].mxu0
      %v3653 = vadd.f32 0.0, %v3652
      %v3654 = vpop.f32.mrb[0].mxu0
      %v3655 = vpop.f32.mrb[0].mxu0
      %v3656 = vadd.f32 0.0, %v3655
      %v3657 = vpop.f32.mrb[0].mxu0
      %3658 = vmatprep.mubr.bf16.mxu0 0
      %3659 = vmatmul.mubr.bf16.gmra.mrb[0].mxu0 %v3208
      %v3660 = vpop.f32.mrb[0].mxu0
      %v3661 = vadd.f32 0.0, %v3660
      %v3662 = vpop.f32.mrb[0].mxu0
      %v3663 = vpop.f32.mrb[0].mxu0
      %v3664 = vadd.f32 0.0, %v3663
      %v3665 = vpop.f32.mrb[0].mxu0
      %3666 = vmatprep.mubr.bf16.mxu0 0
      %3667 = vmatmul.mubr.bf16.gmra.mrb[0].mxu0 %v3211
      %v3668 = vpop.f32.mrb[0].mxu0
      %v3669 = vadd.f32 0.0, %v3668
      %v3670 = vpop.f32.mrb[0].mxu0
      %v3671 = vpop.f32.mrb[0].mxu0
      %v3672 = vadd.f32 0.0, %v3671
      %v3673 = vpop.f32.mrb[0].mxu0
      %3674 = vmatprep.mubr.bf16.mxu0 0
      %3675 = vmatmul.mubr.bf16.gmra.mrb[0].mxu0 %v3214
      %v3676 = vpop.f32.mrb[0].mxu0
      %v3677 = vadd.f32 0.0, %v3676
      %v3678 = vpop.f32.mrb[0].mxu0
      %v3679 = vpop.f32.mrb[0].mxu0
      %v3680 = vadd.f32 0.0, %v3679
      %v3681 = vpop.f32.mrb[0].mxu0
      %3682 = vmatprep.mubr.bf16.mxu0 0
      %3683 = vmatmul.mubr.bf16.gmra.mrb[0].mxu0 %v3217
      %v3684 = vpop.f32.mrb[0].mxu0
      %v3685 = vadd.f32 0.0, %v3684
      %v3686 = vpop.f32.mrb[0].mxu0
      %v3687 = vpop.f32.mrb[0].mxu0
      %v3688 = vadd.f32 0.0, %v3687
      %v3689 = vpop.f32.mrb[0].mxu0
      %3690 = vmatprep.mubr.bf16.mxu0 0
      %3691 = vmatmul.mubr.bf16.gmra.mrb[0].mxu0 %v3220
      %v3692 = vpop.f32.mrb[0].mxu0
      %v3693 = vadd.f32 0.0, %v3692
      %v3694 = vpop.f32.mrb[0].mxu0
      %v3695 = vpop.f32.mrb[0].mxu0
      %v3696 = vadd.f32 0.0, %v3695
      %v3697 = vpop.f32.mrb[0].mxu0
      %3698 = vmatprep.mubr.bf16.mxu0 0
      %3699 = vmatmul.mubr.bf16.gmra.mrb[0].mxu0 %v3223
      %v3700 = vpop.f32.mrb[0].mxu0
      %v3701 = vadd.f32 0.0, %v3700
      %v3702 = vpop.f32.mrb[0].mxu0
      %v3703 = vpop.f32.mrb[0].mxu0
      %v3704 = vadd.f32 0.0, %v3703
      %v3705 = vpop.f32.mrb[0].mxu0
      %3706 = vmatprep.mubr.bf16.mxu0 0
      %3707 = vmatmul.mubr.bf16.gmra.mrb[0].mxu0 %v3226
      %v3708 = vpop.f32.mrb[0].mxu0
      %v3709 = vadd.f32 0.0, %v3708
      %v3710 = vpop.f32.mrb[0].mxu0
      %v3711 = vpop.f32.mrb[0].mxu0
      %v3712 = vadd.f32 0.0, %v3711
      %v3713 = vpop.f32.mrb[0].mxu0
      %3714 = vmatprep.mubr.bf16.mxu0 0
      %3715 = vmatmul.mubr.bf16.gmra.mrb[0].mxu0 %v3229
      %v3716 = vpop.f32.mrb[0].mxu0
      %v3717 = vadd.f32 0.0, %v3716
      %v3718 = vpop.f32.mrb[0].mxu0
      %v3719 = vpop.f32.mrb[0].mxu0
      %v3720 = vadd.f32 0.0, %v3719
      %v3721 = vpop.f32.mrb[0].mxu0
      %3722 = vmatprep.mubr.bf16.mxu0 0
      %3723 = vmatmul.mubr.bf16.gmra.mrb[0].mxu0 %v3232
      %v3724 = vpop.f32.mrb[0].mxu0
      %v3725 = vadd.f32 0.0, %v3724
      %v3726 = vpop.f32.mrb[0].mxu0
      %v3727 = vpop.f32.mrb[0].mxu0
      %v3728 = vadd.f32 0.0, %v3727
      %v3729 = vpop.f32.mrb[0].mxu0
      %3730 = vmatprep.mubr.bf16.mxu0 0
      %3731 = vmatmul.mubr.bf16.gmra.mrb[0].mxu0 %v3235
      %v3732 = vpop.f32.mrb[0].mxu0
      %v3733 = vadd.f32 0.0, %v3732
      %v3734 = vpop.f32.mrb[0].mxu0
      %v3735 = vpop.f32.mrb[0].mxu0
      %v3736 = vadd.f32 0.0, %v3735
      %v3737 = vpop.f32.mrb[0].mxu0
      %3738 = vmatprep.mubr.bf16.mxu0 0
      %3739 = vmatmul.mubr.bf16.gmra.mrb[0].mxu0 %v3238
      %v3740 = vpop.f32.mrb[0].mxu0
      %v3741 = vadd.f32 0.0, %v3740
      %v3742 = vpop.f32.mrb[0].mxu0
      %v3743 = vpop.f32.mrb[0].mxu0
      %v3744 = vadd.f32 0.0, %v3743
      %v3745 = vpop.f32.mrb[0].mxu0
      %3746 = vmatprep.mubr.bf16.mxu0 0
      %3747 = vmatmul.mubr.bf16.gmra.mrb[0].mxu0 %v3241
      %v3748 = vpop.f32.mrb[0].mxu0
      %v3749 = vadd.f32 0.0, %v3748
      %v3750 = vpop.f32.mrb[0].mxu0
      %v3751 = vpop.f32.mrb[0].mxu0
      %v3752 = vadd.f32 0.0, %v3751
      %v3753 = vpop.f32.mrb[0].mxu0
      %3754 = vmatprep.mubr.bf16.mxu0 0
      %3755 = vmatmul.mubr.bf16.gmra.mrb[0].mxu0 %v3244
      %v3756 = vpop.f32.mrb[0].mxu0
      %v3757 = vadd.f32 0.0, %v3756
      %v3758 = vpop.f32.mrb[0].mxu0
      %v3759 = vpop.f32.mrb[0].mxu0
      %v3760 = vadd.f32 0.0, %v3759
      %v3761 = vpop.f32.mrb[0].mxu0
      %3762 = vmatprep.mubr.bf16.mxu0 0
      %3763 = vmatmul.mubr.bf16.gmra.mrb[0].mxu0 %v3247
      %v3764 = vpop.f32.mrb[0].mxu0
      %v3765 = vadd.f32 0.0, %v3764
      %v3766 = vpop.f32.mrb[0].mxu0
      %v3767 = vpop.f32.mrb[0].mxu0
      %v3768 = vadd.f32 0.0, %v3767
      %v3769 = vpop.f32.mrb[0].mxu0
      %3770 = vmatprep.mubr.bf16.mxu0 0
      %3771 = vmatmul.mubr.bf16.gmra.mrb[0].mxu0 %v3250
      %v3772 = vpop.f32.mrb[0].mxu0
      %v3773 = vadd.f32 0.0, %v3772
      %v3774 = vpop.f32.mrb[0].mxu0
      %v3775 = vpop.f32.mrb[0].mxu0
      %v3776 = vadd.f32 0.0, %v3775
      %v3777 = vpop.f32.mrb[0].mxu0
      %3778 = vmatprep.mubr.bf16.mxu0 0
      %3779 = vmatmul.mubr.bf16.gmra.mrb[0].mxu0 %v3253
      %v3780 = vpop.f32.mrb[0].mxu0
      %v3781 = vadd.f32 0.0, %v3780
      %v3782 = vpop.f32.mrb[0].mxu0
      %v3783 = vpop.f32.mrb[0].mxu0
      %v3784 = vadd.f32 0.0, %v3783
      %v3785 = vpop.f32.mrb[0].mxu0
      %3786 = vmatprep.mubr.bf16.mxu0 0
      %3787 = vmatmul.mubr.bf16.gmra.mrb[0].mxu0 %v3256
      %v3788 = vpop.f32.mrb[0].mxu0
      %v3789 = vadd.f32 0.0, %v3788
      %v3790 = vpop.f32.mrb[0].mxu0
      %v3791 = vpop.f32.mrb[0].mxu0
      %v3792 = vadd.f32 0.0, %v3791
      %v3793 = vpop.f32.mrb[0].mxu0
      %3794 = vmatprep.mubr.bf16.mxu0 0
      %3795 = vmatmul.mubr.bf16.gmra.mrb[0].mxu0 %v3259
      %v3796 = vpop.f32.mrb[0].mxu0
      %v3797 = vadd.f32 0.0, %v3796
      %v3798 = vpop.f32.mrb[0].mxu0
      %v3799 = vpop.f32.mrb[0].mxu0
      %v3800 = vadd.f32 0.0, %v3799
      %v3801 = vpop.f32.mrb[0].mxu0
      %3802 = vmatprep.mubr.bf16.mxu0 0
      %3803 = vmatmul.mubr.bf16.gmra.mrb[0].mxu0 %v3262
      %v3804 = vpop.f32.mrb[0].mxu0
      %v3805 = vadd.f32 0.0, %v3804
      %v3806 = vpop.f32.mrb[0].mxu0
      %v3807 = vpop.f32.mrb[0].mxu0
      %v3808 = vadd.f32 0.0, %v3807
      %v3809 = vpop.f32.mrb[0].mxu0
      %3810 = vmatprep.mubr.bf16.mxu0 0
      %3811 = vmatmul.mubr.bf16.gmra.mrb[0].mxu0 %v3265
      %v3812 = vpop.f32.mrb[0].mxu0
      %v3813 = vadd.f32 0.0, %v3812
      %v3814 = vpop.f32.mrb[0].mxu0
      %v3815 = vpop.f32.mrb[0].mxu0
      %v3816 = vadd.f32 0.0, %v3815
      %v3817 = vpop.f32.mrb[0].mxu0
      %3818 = vmatprep.mubr.bf16.mxu0 0
      %3819 = vmatmul.mubr.bf16.gmra.mrb[0].mxu0 %v3268
      %v3820 = vpop.f32.mrb[0].mxu0
      %v3821 = vadd.f32 0.0, %v3820
      %v3822 = vpop.f32.mrb[0].mxu0
      %v3823 = vpop.f32.mrb[0].mxu0
      %v3824 = vadd.f32 0.0, %v3823
      %v3825 = vpop.f32.mrb[0].mxu0
      %3826 = vmatprep.mubr.bf16.mxu0 0
      %3827 = vmatmul.mubr.bf16.gmra.mrb[0].mxu0 %v3271
      %v3828 = vpop.f32.mrb[0].mxu0
      %v3829 = vadd.f32 0.0, %v3828
      %v3830 = vpop.f32.mrb[0].mxu0
      %v3831 = vpop.f32.mrb[0].mxu0
      %v3832 = vadd.f32 0.0, %v3831
      %v3833 = vpop.f32.mrb[0].mxu0
      %3834 = vmatprep.mubr.bf16.mxu0 0
      %3835 = vmatmul.mubr.bf16.gmra.mrb[0].mxu0 %v3274
      %v3836 = vpop.f32.mrb[0].mxu0
      %v3837 = vadd.f32 0.0, %v3836
      %v3838 = vpop.f32.mrb[0].mxu0
      %v3839 = vpop.f32.mrb[0].mxu0
      %v3840 = vadd.f32 0.0, %v3839
      %v3841 = vpop.f32.mrb[0].mxu0
      %3842 = vmatprep.mubr.bf16.mxu0 0
      %3843 = vmatmul.mubr.bf16.gmra.mrb[0].mxu0 %v3277
      %v3844 = vpop.f32.mrb[0].mxu0
      %v3845 = vadd.f32 0.0, %v3844
      %v3846 = vpop.f32.mrb[0].mxu0
      %v3847 = vpop.f32.mrb[0].mxu0
      %v3848 = vadd.f32 0.0, %v3847
      %v3849 = vpop.f32.mrb[0].mxu0
      %3850 = vmatprep.mubr.bf16.mxu0 0
      %3851 = vmatmul.mubr.bf16.gmra.mrb[0].mxu0 %v3280
      %v3852 = vpop.f32.mrb[0].mxu0
      %v3853 = vadd.f32 0.0, %v3852
      %v3854 = vpop.f32.mrb[0].mxu0
      %v3855 = vpop.f32.mrb[0].mxu0
      %v3856 = vadd.f32 0.0, %v3855
      %v3857 = vpop.f32.mrb[0].mxu0
      %3858 = vmatprep.mubr.bf16.mxu0 0
      %3859 = vmatmul.mubr.bf16.gmra.mrb[0].mxu0 %v3283
      %v3860 = vpop.f32.mrb[0].mxu0
      %v3861 = vadd.f32 0.0, %v3860
      %v3862 = vpop.f32.mrb[0].mxu0
      %v3863 = vpop.f32.mrb[0].mxu0
      %v3864 = vadd.f32 0.0, %v3863
      %v3865 = vpop.f32.mrb[0].mxu0
      %3866 = vmatprep.mubr.bf16.mxu0 0
      %3867 = vmatmul.mubr.bf16.gmra.mrb[0].mxu0 %v3286
      %v3868 = vpop.f32.mrb[0].mxu0
      %v3869 = vadd.f32 0.0, %v3868
      %v3870 = vpop.f32.mrb[0].mxu0
      %v3871 = vpop.f32.mrb[0].mxu0
      %v3872 = vadd.f32 0.0, %v3871
      %v3873 = vpop.f32.mrb[0].mxu0
      %3874 = vmatprep.mubr.bf16.mxu0 0
      %3875 = vmatmul.mubr.bf16.gmra.mrb[0].mxu0 %v3289
      %v3876 = vpop.f32.mrb[0].mxu0
      %v3877 = vadd.f32 0.0, %v3876
      %v3878 = vpop.f32.mrb[0].mxu0
      %v3879 = vpop.f32.mrb[0].mxu0
      %v3880 = vadd.f32 0.0, %v3879
      %v3881 = vpop.f32.mrb[0].mxu0
      %3882 = vmatprep.mubr.bf16.mxu0 0
      %3883 = vmatmul.mubr.bf16.gmra.mrb[0].mxu0 %v3292
      %v3884 = vpop.f32.mrb[0].mxu0
      %v3885 = vadd.f32 0.0, %v3884
      %v3886 = vpop.f32.mrb[0].mxu0
      %v3887 = vpop.f32.mrb[0].mxu0
      %v3888 = vadd.f32 0.0, %v3887
      %v3889 = vpop.f32.mrb[0].mxu0
      %3890 = vmatprep.mubr.bf16.mxu0 0
      %3891 = vmatmul.mubr.bf16.gmra.mrb[0].mxu0 %v3295
      %v3892 = vpop.f32.mrb[0].mxu0
      %v3893 = vadd.f32 0.0, %v3892
      %v3894 = vpop.f32.mrb[0].mxu0
      %v3895 = vpop.f32.mrb[0].mxu0
      %v3896 = vadd.f32 0.0, %v3895
      %v3897 = vpop.f32.mrb[0].mxu0
      %3898 = vmatprep.mubr.bf16.mxu0 0
      %3899 = vmatmul.mubr.bf16.gmra.mrb[0].mxu0 %v3298
      %v3900 = vpop.f32.mrb[0].mxu0
      %v3901 = vadd.f32 0.0, %v3900
      %v3902 = vpop.f32.mrb[0].mxu0
      %v3903 = vpop.f32.mrb[0].mxu0
      %v3904 = vadd.f32 0.0, %v3903
      %v3905 = vpop.f32.mrb[0].mxu0
      %3906 = vmatprep.mubr.bf16.mxu0 0
      %3907 = vmatmul.mubr.bf16.gmra.mrb[0].mxu0 %v3301
      %v3908 = vpop.f32.mrb[0].mxu0
      %v3909 = vadd.f32 0.0, %v3908
      %v3910 = vpop.f32.mrb[0].mxu0
      %v3911 = vpop.f32.mrb[0].mxu0
      %v3912 = vadd.f32 0.0, %v3911
      %v3913 = vpop.f32.mrb[0].mxu0
      %3914 = vmatprep.mubr.bf16.mxu0 0
      %3915 = vmatmul.mubr.bf16.gmra.mrb[0].mxu0 %v3304
      %v3916 = vpop.f32.mrb[0].mxu0
      %v3917 = vadd.f32 0.0, %v3916
      %v3918 = vpop.f32.mrb[0].mxu0
      %v3919 = vpop.f32.mrb[0].mxu0
      %v3920 = vadd.f32 0.0, %v3919
      %v3921 = vpop.f32.mrb[0].mxu0
      %3922 = vmatprep.mubr.bf16.mxu0 0
      %3923 = vmatmul.mubr.bf16.gmra.mrb[0].mxu0 %v3307
      %v3924 = vpop.f32.mrb[0].mxu0
      %v3925 = vadd.f32 0.0, %v3924
      %v3926 = vpop.f32.mrb[0].mxu0
      %v3927 = vpop.f32.mrb[0].mxu0
      %v3928 = vadd.f32 0.0, %v3927
      %v3929 = vpop.f32.mrb[0].mxu0
      %3930 = vmatprep.mubr.bf16.mxu0 0
      %3931 = vmatmul.mubr.bf16.gmra.mrb[0].mxu0 %v3310
      %v3932 = vpop.f32.mrb[0].mxu0
      %v3933 = vadd.f32 0.0, %v3932
      %v3934 = vpop.f32.mrb[0].mxu0
      %v3935 = vpop.f32.mrb[0].mxu0
      %v3936 = vadd.f32 0.0, %v3935
      %v3937 = vpop.f32.mrb[0].mxu0
      %3938 = vmatprep.mubr.bf16.mxu0 0
      %3939 = vmatmul.mubr.bf16.gmra.mrb[0].mxu0 %v3313
      %v3940 = vpop.f32.mrb[0].mxu0
      %v3941 = vadd.f32 0.0, %v3940
      %v3942 = vpop.f32.mrb[0].mxu0
      %v3943 = vpop.f32.mrb[0].mxu0
      %v3944 = vadd.f32 0.0, %v3943
      %v3945 = vpop.f32.mrb[0].mxu0
      %3946 = vmatprep.mubr.bf16.mxu0 0
      %3947 = vmatmul.mubr.bf16.gmra.mrb[0].mxu0 %v3316
      %v3948 = vpop.f32.mrb[0].mxu0
      %v3949 = vadd.f32 0.0, %v3948
      %v3950 = vpop.f32.mrb[0].mxu0
      %v3951 = vpop.f32.mrb[0].mxu0
      %v3952 = vadd.f32 0.0, %v3951
      %v3953 = vpop.f32.mrb[0].mxu0
      %3954 = vmatprep.mubr.bf16.mxu0 0
      %3955 = vmatmul.mubr.bf16.gmra.mrb[0].mxu0 %v3319
      %v3956 = vpop.f32.mrb[0].mxu0
      %v3957 = vadd.f32 0.0, %v3956
      %v3958 = vpop.f32.mrb[0].mxu0
      %v3959 = vpop.f32.mrb[0].mxu0
      %v3960 = vadd.f32 0.0, %v3959
      %v3961 = vpop.f32.mrb[0].mxu0
      %3962 = vmatprep.mubr.bf16.mxu0 0
      %3963 = vmatmul.mubr.bf16.gmra.mrb[0].mxu0 %v3322
      %v3964 = vpop.f32.mrb[0].mxu0
      %v3965 = vadd.f32 0.0, %v3964
      %v3966 = vpop.f32.mrb[0].mxu0
      %v3967 = vpop.f32.mrb[0].mxu0
      %v3968 = vadd.f32 0.0, %v3967
      %v3969 = vpop.f32.mrb[0].mxu0
      %3970 = vmatprep.mubr.bf16.mxu0 0
      %3971 = vmatmul.mubr.bf16.gmra.mrb[0].mxu0 %v3325
      %v3972 = vpop.f32.mrb[0].mxu0
      %v3973 = vadd.f32 0.0, %v3972
      %v3974 = vpop.f32.mrb[0].mxu0
      %v3975 = vpop.f32.mrb[0].mxu0
      %v3976 = vadd.f32 0.0, %v3975
      %v3977 = vpop.f32.mrb[0].mxu0
      %3978 = vmatprep.mubr.bf16.mxu0 0
      %3979 = vmatmul.mubr.bf16.gmra.mrb[0].mxu0 %v3328
      %v3980 = vpop.f32.mrb[0].mxu0
      %v3981 = vadd.f32 0.0, %v3980
      %v3982 = vpop.f32.mrb[0].mxu0
      %v3983 = vpop.f32.mrb[0].mxu0
      %v3984 = vadd.f32 0.0, %v3983
      %v3985 = vpop.f32.mrb[0].mxu0
      %3986 = vmatprep.mubr.bf16.mxu0 0
      %3987 = vmatmul.mubr.bf16.gmra.mrb[0].mxu0 %v3331
      %v3988 = vpop.f32.mrb[0].mxu0
      %v3989 = vadd.f32 0.0, %v3988
      %v3990 = vpop.f32.mrb[0].mxu0
      %v3991 = vpop.f32.mrb[0].mxu0
      %v3992 = vadd.f32 0.0, %v3991
      %v3993 = vpop.f32.mrb[0].mxu0
      %3994 = vmatprep.mubr.bf16.mxu0 0
      %3995 = vmatmul.mubr.bf16.gmra.mrb[0].mxu0 %v3334
      %v3996 = vpop.f32.mrb[0].mxu0
      %v3997 = vadd.f32 0.0, %v3996
      %v3998 = vpop.f32.mrb[0].mxu0
      %v3999 = vpop.f32.mrb[0].mxu0
      %v4000 = vadd.f32 0.0, %v3999
      %v4001 = vpop.f32.mrb[0].mxu0
      %4002 = vmatprep.mubr.bf16.mxu0 0
      %4003 = vmatmul.mubr.bf16.gmra.mrb[0].mxu0 %v3337
      %v4004 = vpop.f32.mrb[0].mxu0
      %v4005 = vadd.f32 0.0, %v4004
      %v4006 = vpop.f32.mrb[0].mxu0
      %v4007 = vpop.f32.mrb[0].mxu0
      %v4008 = vadd.f32 0.0, %v4007
      %v4009 = vpop.f32.mrb[0].mxu0
      %4010 = vmatprep.mubr.bf16.mxu0 0
      %4011 = vmatmul.mubr.bf16.gmra.mrb[0].mxu0 %v3340
      %v4012 = vpop.f32.mrb[0].mxu0
      %v4013 = vadd.f32 0.0, %v4012
      %v4014 = vpop.f32.mrb[0].mxu0
      %v4015 = vpop.f32.mrb[0].mxu0
      %v4016 = vadd.f32 0.0, %v4015
      %v4017 = vpop.f32.mrb[0].mxu0
      %4018 = vmatprep.mubr.bf16.mxu0 0
      %4019 = vmatmul.mubr.bf16.gmra.mrb[0].mxu0 %v3343
      %v4020 = vpop.f32.mrb[0].mxu0
      %v4021 = vadd.f32 0.0, %v4020
      %v4022 = vpop.f32.mrb[0].mxu0
      %v4023 = vpop.f32.mrb[0].mxu0
      %v4024 = vadd.f32 0.0, %v4023
      %v4025 = vpop.f32.mrb[0].mxu0
      %4026 = vmatprep.mubr.bf16.mxu0 0
      %4027 = vmatmul.mubr.bf16.gmra.mrb[0].mxu0 %v3346
      %v4028 = vpop.f32.mrb[0].mxu0
      %v4029 = vadd.f32 0.0, %v4028
      %v4030 = vpop.f32.mrb[0].mxu0
      %v4031 = vpop.f32.mrb[0].mxu0
      %v4032 = vadd.f32 0.0, %v4031
      %v4033 = vpop.f32.mrb[0].mxu0
      %4034 = vmatprep.mubr.bf16.mxu0 0
      %4035 = vmatmul.mubr.bf16.gmra.mrb[0].mxu0 %v3349
      %v4036 = vpop.f32.mrb[0].mxu0
      %v4037 = vadd.f32 0.0, %v4036
      %v4038 = vpop.f32.mrb[0].mxu0
      %v4039 = vpop.f32.mrb[0].mxu0
      %v4040 = vadd.f32 0.0, %v4039
      %v4041 = vpop.f32.mrb[0].mxu0
      %4042 = vmatprep.mubr.bf16.mxu0 0
      %4043 = vmatmul.mubr.bf16.gmra.mrb[0].mxu0 %v3352
      %v4044 = vpop.f32.mrb[0].mxu0
      %v4045 = vadd.f32 0.0, %v4044
      %v4046 = vpop.f32.mrb[0].mxu0
      %v4047 = vpop.f32.mrb[0].mxu0
      %v4048 = vadd.f32 0.0, %v4047
      %v4049 = vpop.f32.mrb[0].mxu0
      %4050 = vmatprep.mubr.bf16.mxu0 0
      %4051 = vmatmul.mubr.bf16.gmra.mrb[0].mxu0 %v3355
      %v4052 = vpop.f32.mrb[0].mxu0
      %v4053 = vadd.f32 0.0, %v4052
      %v4054 = vpop.f32.mrb[0].mxu0
      %v4055 = vpop.f32.mrb[0].mxu0
      %v4056 = vadd.f32 0.0, %v4055
      %v4057 = vpop.f32.mrb[0].mxu0
      %4058 = vmatprep.mubr.bf16.mxu0 0
      %4059 = vmatmul.mubr.bf16.gmra.mrb[0].mxu0 %v3358
      %v4060 = vpop.f32.mrb[0].mxu0
      %v4061 = vadd.f32 0.0, %v4060
      %v4062 = vpop.f32.mrb[0].mxu0
      %v4063 = vpop.f32.mrb[0].mxu0
      %v4064 = vadd.f32 0.0, %v4063
      %v4065 = vpop.f32.mrb[0].mxu0
      %4066 = vmatprep.mubr.bf16.mxu0 0
      %4067 = vmatmul.mubr.bf16.gmra.mrb[0].mxu0 %v3361
      %v4068 = vpop.f32.mrb[0].mxu0
      %v4069 = vadd.f32 0.0, %v4068
      %v4070 = vpop.f32.mrb[0].mxu0
      %v4071 = vpop.f32.mrb[0].mxu0
      %v4072 = vadd.f32 0.0, %v4071
      %v4073 = vpop.f32.mrb[0].mxu0
      %4074 = vmatprep.mubr.bf16.mxu0 0
      %4075 = vmatmul.mubr.bf16.gmra.mrb[0].mxu0 %v3364
      %v4076 = vpop.f32.mrb[0].mxu0
      %v4077 = vadd.f32 0.0, %v4076
      %v4078 = vpop.f32.mrb[0].mxu0
      %v4079 = vpop.f32.mrb[0].mxu0
      %v4080 = vadd.f32 0.0, %v4079
      %v4081 = vpop.f32.mrb[0].mxu0
      %4082 = vmatprep.mubr.bf16.mxu0 0
      %4083 = vmatmul.mubr.bf16.gmra.mrb[0].mxu0 %v3367
      %v4084 = vpop.f32.mrb[0].mxu0
      %v4085 = vadd.f32 0.0, %v4084
      %v4086 = vpop.f32.mrb[0].mxu0
      %v4087 = vpop.f32.mrb[0].mxu0
      %v4088 = vadd.f32 0.0, %v4087
      %v4089 = vpop.f32.mrb[0].mxu0
      %4090 = vmatprep.mubr.bf16.mxu0 0
      %4091 = vmatmul.mubr.bf16.gmra.mrb[0].mxu0 %v3370
      %v4092 = vpop.f32.mrb[0].mxu0
      %v4093 = vadd.f32 0.0, %v4092
      %v4094 = vpop.f32.mrb[0].mxu0
      %v4095 = vpop.f32.mrb[0].mxu0
      %v4096 = vadd.f32 0.0, %v4095
      %v4097 = vpop.f32.mrb[0].mxu0
      %4098 = vmatprep.mubr.bf16.mxu0 0
      %4099 = vmatmul.mubr.bf16.gmra.mrb[0].mxu0 %v3373
      %v4100 = vpop.f32.mrb[0].mxu0
      %v4101 = vadd.f32 0.0, %v4100
      %v4102 = vpop.f32.mrb[0].mxu0
      %v4103 = vpop.f32.mrb[0].mxu0
      %v4104 = vadd.f32 0.0, %v4103
      %v4105 = vpop.f32.mrb[0].mxu0
      %4106 = vmatprep.mubr.bf16.mxu0 0
      %4107 = vmatmul.mubr.bf16.gmra.mrb[0].mxu0 %v3376
      %v4108 = vpop.f32.mrb[0].mxu0
      %v4109 = vadd.f32 0.0, %v4108
      %v4110 = vpop.f32.mrb[0].mxu0
      %v4111 = vpop.f32.mrb[0].mxu0
      %v4112 = vadd.f32 0.0, %v4111
      %v4113 = vpop.f32.mrb[0].mxu0
      %4114 = vmatprep.mubr.bf16.mxu0 0
      %4115 = vmatmul.mubr.bf16.gmra.mrb[0].mxu0 %v3379
      %v4116 = vpop.f32.mrb[0].mxu0
      %v4117 = vadd.f32 0.0, %v4116
      %v4118 = vpop.f32.mrb[0].mxu0
      %v4119 = vpop.f32.mrb[0].mxu0
      %v4120 = vadd.f32 0.0, %v4119
      %v4121 = vpop.f32.mrb[0].mxu0
      %4122 = vmatprep.mubr.bf16.mxu0 0
      %4123 = vmatmul.mubr.bf16.gmra.mrb[0].mxu0 %v3382
      %v4124 = vpop.f32.mrb[0].mxu0
      %v4125 = vadd.f32 0.0, %v4124
      %v4126 = vpop.f32.mrb[0].mxu0
      %v4127 = vpop.f32.mrb[0].mxu0
      %v4128 = vadd.f32 0.0, %v4127
      %v4129 = vpop.f32.mrb[0].mxu0
      %4130 = vmatprep.mubr.bf16.mxu0 0
      %4131 = vmatmul.mubr.bf16.gmra.mrb[0].mxu0 %v3385
      %v4132 = vpop.f32.mrb[0].mxu0
      %v4133 = vadd.f32 0.0, %v4132
      %v4134 = vpop.f32.mrb[0].mxu0
      %v4135 = vpop.f32.mrb[0].mxu0
      %v4136 = vadd.f32 0.0, %v4135
      %v4137 = vpop.f32.mrb[0].mxu0
      %4138 = vmatprep.mubr.bf16.mxu0 0
      %4139 = vmatmul.mubr.bf16.gmra.mrb[0].mxu0 %v3388
      %v4140 = vpop.f32.mrb[0].mxu0
      %v4141 = vadd.f32 0.0, %v4140
      %v4142 = vpop.f32.mrb[0].mxu0
      %v4143 = vpop.f32.mrb[0].mxu0
      %v4144 = vadd.f32 0.0, %v4143
      %v4145 = vpop.f32.mrb[0].mxu0
      %4146 = vmatprep.mubr.bf16.mxu0 0
      %4147 = vmatmul.mubr.bf16.gmra.mrb[0].mxu0 %v3391
      %v4148 = vpop.f32.mrb[0].mxu0
      %v4149 = vadd.f32 0.0, %v4148
      %v4150 = vpop.f32.mrb[0].mxu0
      %v4151 = vpop.f32.mrb[0].mxu0
      %v4152 = vadd.f32 0.0, %v4151
      %v4153 = vpop.f32.mrb[0].mxu0
      %4154 = vmatprep.mubr.bf16.mxu0 0
      %4155 = vmatmul.mubr.bf16.gmra.mrb[0].mxu0 %v3394
      %v4156 = vpop.f32.mrb[0].mxu0
      %v4157 = vadd.f32 0.0, %v4156
      %v4158 = vpop.f32.mrb[0].mxu0
      %v4159 = vpop.f32.mrb[0].mxu0
      %v4160 = vadd.f32 0.0, %v4159
      %v4161 = vpop.f32.mrb[0].mxu0
      %4162 = vmatprep.mubr.bf16.mxu0 0
      %4163 = vmatmul.mubr.bf16.gmra.mrb[0].mxu0 %v3397
      %v4164 = vpop.f32.mrb[0].mxu0
      %v4165 = vadd.f32 0.0, %v4164
      %v4166 = vpop.f32.mrb[0].mxu0
      %v4167 = vpop.f32.mrb[0].mxu0
      %v4168 = vadd.f32 0.0, %v4167
      %v4169 = vpop.f32.mrb[0].mxu0
      %4170 = vmatprep.mubr.bf16.mxu0 0
      %4171 = vmatmul.mubr.bf16.gmra.mrb[0].mxu0 %v3400
      %v4172 = vpop.f32.mrb[0].mxu0
      %v4173 = vadd.f32 0.0, %v4172
      %v4174 = vpop.f32.mrb[0].mxu0
      %v4175 = vpop.f32.mrb[0].mxu0
      %v4176 = vadd.f32 0.0, %v4175
      %v4177 = vpop.f32.mrb[0].mxu0
      %4178 = vmatprep.mubr.bf16.mxu0 0
      %4179 = vmatmul.mubr.bf16.gmra.mrb[0].mxu0 %v3403
      %v4180 = vpop.f32.mrb[0].mxu0
      %v4181 = vadd.f32 0.0, %v4180
      %v4182 = vpop.f32.mrb[0].mxu0
      %v4183 = vpop.f32.mrb[0].mxu0
      %v4184 = vadd.f32 0.0, %v4183
      %v4185 = vpop.f32.mrb[0].mxu0
      %4186 = vmatprep.mubr.bf16.mxu0 0
      %4187 = vmatmul.mubr.bf16.gmra.mrb[0].mxu0 %v3406
      %v4188 = vpop.f32.mrb[0].mxu0
      %v4189 = vadd.f32 0.0, %v4188
      %v4190 = vpop.f32.mrb[0].mxu0
      %v4191 = vpop.f32.mrb[0].mxu0
      %v4192 = vadd.f32 0.0, %v4191
      %v4193 = vpop.f32.mrb[0].mxu0
      %4194 = vmatprep.mubr.bf16.mxu0 0
      %4195 = vmatmul.mubr.bf16.gmra.mrb[0].mxu0 %v3409
      %v4196 = vpop.f32.mrb[0].mxu0
      %v4197 = vadd.f32 0.0, %v4196
      %v4198 = vpop.f32.mrb[0].mxu0
      %v4199 = vpop.f32.mrb[0].mxu0
      %v4200 = vadd.f32 0.0, %v4199
      %v4201 = vpop.f32.mrb[0].mxu0
      %4202 = vmatprep.mubr.bf16.mxu0 0
      %4203 = vmatmul.mubr.bf16.gmra.mrb[0].mxu0 %v3412
      %v4204 = vpop.f32.mrb[0].mxu0
      %v4205 = vadd.f32 0.0, %v4204
      %v4206 = vpop.f32.mrb[0].mxu0
      %v4207 = vpop.f32.mrb[0].mxu0
      %v4208 = vadd.f32 0.0, %v4207
      %v4209 = vpop.f32.mrb[0].mxu0
      %4210 = vmatprep.mubr.bf16.mxu0 0
      %4211 = vmatmul.mubr.bf16.gmra.mrb[0].mxu0 %v3415
      %v4212 = vpop.f32.mrb[0].mxu0
      %v4213 = vadd.f32 0.0, %v4212
      %v4214 = vpop.f32.mrb[0].mxu0
      %v4215 = vpop.f32.mrb[0].mxu0
      %v4216 = vadd.f32 0.0, %v4215
      %v4217 = vpop.f32.mrb[0].mxu0
      %4218 = vmatprep.mubr.bf16.mxu0 0
      %4219 = vmatmul.mubr.bf16.gmra.mrb[0].mxu0 %v3418
      %v4220 = vpop.f32.mrb[0].mxu0
      %v4221 = vadd.f32 0.0, %v4220
      %v4222 = vpop.f32.mrb[0].mxu0
      %v4223 = vpop.f32.mrb[0].mxu0
      %v4224 = vadd.f32 0.0, %v4223
      %v4225 = vpop.f32.mrb[0].mxu0
      %4226 = vmatprep.mubr.bf16.mxu0 0
      %4227 = vmatmul.mubr.bf16.gmra.mrb[0].mxu0 %v3421
      %v4228 = vpop.f32.mrb[0].mxu0
      %v4229 = vadd.f32 0.0, %v4228
      %v4230 = vpop.f32.mrb[0].mxu0
      %v4231 = vpop.f32.mrb[0].mxu0
      %v4232 = vadd.f32 0.0, %v4231
      %v4233 = vpop.f32.mrb[0].mxu0
      %4234 = vmatprep.mubr.bf16.mxu0 0
      %4235 = vmatmul.mubr.bf16.gmra.mrb[0].mxu0 %v3424
      %v4236 = vpop.f32.mrb[0].mxu0
      %v4237 = vadd.f32 0.0, %v4236
      %v4238 = vpop.f32.mrb[0].mxu0
      %v4239 = vpop.f32.mrb[0].mxu0
      %v4240 = vadd.f32 0.0, %v4239
      %v4241 = vpop.f32.mrb[0].mxu0
      %4242 = vmatprep.mubr.bf16.mxu0 0
      %4243 = vmatmul.mubr.bf16.gmra.mrb[0].mxu0 %v3427
      %v4244 = vpop.f32.mrb[0].mxu0
      %v4245 = vadd.f32 0.0, %v4244
      %v4246 = vpop.f32.mrb[0].mxu0
      %v4247 = vpop.f32.mrb[0].mxu0
      %v4248 = vadd.f32 0.0, %v4247
      %v4249 = vpop.f32.mrb[0].mxu0
      %4250 = vmatprep.mubr.bf16.mxu0 0
      %4251 = vmatmul.mubr.bf16.gmra.mrb[0].mxu0 %v3430
      %v4252 = vpop.f32.mrb[0].mxu0
      %v4253 = vadd.f32 0.0, %v4252
      %v4254 = vpop.f32.mrb[0].mxu0
      %v4255 = vpop.f32.mrb[0].mxu0
      %v4256 = vadd.f32 0.0, %v4255
      %v4257 = vpop.f32.mrb[0].mxu0
      %4258 = vmatprep.mubr.bf16.mxu0 0
      %4259 = vmatmul.mubr.bf16.gmra.mrb[0].mxu0 %v3433
      %v4260 = vpop.f32.mrb[0].mxu0
      %v4261 = vadd.f32 0.0, %v4260
      %v4262 = vpop.f32.mrb[0].mxu0
      %v4263 = vpop.f32.mrb[0].mxu0
      %v4264 = vadd.f32 0.0, %v4263
      %v4265 = vpop.f32.mrb[0].mxu0
      %4266 = vmatprep.mubr.bf16.mxu0 0
      %4267 = vmatmul.mubr.bf16.gmra.mrb[0].mxu0 %v3436
      %v4268 = vpop.f32.mrb[0].mxu0
      %v4269 = vadd.f32 0.0, %v4268
      %v4270 = vpop.f32.mrb[0].mxu0
      %v4271 = vpop.f32.mrb[0].mxu0
      %v4272 = vadd.f32 0.0, %v4271
      %v4273 = vpop.f32.mrb[0].mxu0
      %4274 = vmatprep.mubr.bf16.mxu0 0
      %4275 = vmatmul.mubr.bf16.gmra.mrb[0].mxu0 %v3439
      %v4276 = vpop.f32.mrb[0].mxu0
      %v4277 = vadd.f32 0.0, %v4276
      %v4278 = vpop.f32.mrb[0].mxu0
      %v4279 = vpop.f32.mrb[0].mxu0
      %v4280 = vadd.f32 0.0, %v4279
      %v4281 = vpop.f32.mrb[0].mxu0
      %4282 = vmatprep.mubr.bf16.mxu0 0
      %4283 = vmatmul.mubr.bf16.gmra.mrb[0].mxu0 %v3442
      %v4284 = vpop.f32.mrb[0].mxu0
      %v4285 = vadd.f32 0.0, %v4284
      %v4286 = vpop.f32.mrb[0].mxu0
      %v4287 = vpop.f32.mrb[0].mxu0
      %v4288 = vadd.f32 0.0, %v4287
      %v4289 = vpop.f32.mrb[0].mxu0
      %4290 = vmatprep.mubr.bf16.mxu0 0
      %4291 = vmatmul.mubr.bf16.gmra.mrb[0].mxu0 %v3445
      %v4292 = vpop.f32.mrb[0].mxu0
      %v4293 = vadd.f32 0.0, %v4292
      %v4294 = vpop.f32.mrb[0].mxu0
      %v4295 = vpop.f32.mrb[0].mxu0
      %v4296 = vadd.f32 0.0, %v4295
      %v4297 = vpop.f32.mrb[0].mxu0
      %4298 = vmatprep.mubr.bf16.mxu0 0
      %4299 = vmatmul.mubr.bf16.gmra.mrb[0].mxu0 %v3448
      %v4300 = vpop.f32.mrb[0].mxu0
      %v4301 = vadd.f32 0.0, %v4300
      %v4302 = vpop.f32.mrb[0].mxu0
      %v4303 = vpop.f32.mrb[0].mxu0
      %v4304 = vadd.f32 0.0, %v4303
      %v4305 = vpop.f32.mrb[0].mxu0
      %4306 = vmatprep.mubr.bf16.mxu0 0
      %4307 = vmatmul.mubr.bf16.gmra.mrb[0].mxu0 %v3451
      %v4308 = vpop.f32.mrb[0].mxu0
      %v4309 = vadd.f32 0.0, %v4308
      %v4310 = vpop.f32.mrb[0].mxu0
      %v4311 = vpop.f32.mrb[0].mxu0
      %v4312 = vadd.f32 0.0, %v4311
      %v4313 = vpop.f32.mrb[0].mxu0
      %4314 = vmatprep.mubr.bf16.mxu0 0
      %4315 = vmatmul.mubr.bf16.gmra.mrb[0].mxu0 %v3454
      %v4316 = vpop.f32.mrb[0].mxu0
      %v4317 = vadd.f32 0.0, %v4316
      %v4318 = vpop.f32.mrb[0].mxu0
      %v4319 = vpop.f32.mrb[0].mxu0
      %v4320 = vadd.f32 0.0, %v4319
      %v4321 = vpop.f32.mrb[0].mxu0
      %4322 = vmatprep.mubr.bf16.mxu0 0
      %4323 = vmatmul.mubr.bf16.gmra.mrb[0].mxu0 %v3457
      %v4324 = vpop.f32.mrb[0].mxu0
      %v4325 = vadd.f32 0.0, %v4324
      %v4326 = vpop.f32.mrb[0].mxu0
      %v4327 = vpop.f32.mrb[0].mxu0
      %v4328 = vadd.f32 0.0, %v4327
      %v4329 = vpop.f32.mrb[0].mxu0
      %4330 = vmatprep.mubr.bf16.mxu0 0
      %4331 = vmatmul.mubr.bf16.gmra.mrb[0].mxu0 %v3460
      %v4332 = vpop.f32.mrb[0].mxu0
      %v4333 = vadd.f32 0.0, %v4332
      %v4334 = vpop.f32.mrb[0].mxu0
      %v4335 = vpop.f32.mrb[0].mxu0
      %v4336 = vadd.f32 0.0, %v4335
      %v4337 = vpop.f32.mrb[0].mxu0
      %4338 = vmatprep.mubr.bf16.mxu0 0
      %4339 = vmatmul.mubr.bf16.gmra.mrb[0].mxu0 %v3463
      %v4340 = vpop.f32.mrb[0].mxu0
      %v4341 = vadd.f32 0.0, %v4340
      %v4342 = vpop.f32.mrb[0].mxu0
      %v4343 = vpop.f32.mrb[0].mxu0
      %v4344 = vadd.f32 0.0, %v4343
      %v4345 = vpop.f32.mrb[0].mxu0
      %4346 = vmatprep.mubr.bf16.mxu0 0
      %4347 = vmatmul.mubr.bf16.gmra.mrb[0].mxu0 %v3466
      %v4348 = vpop.f32.mrb[0].mxu0
      %v4349 = vadd.f32 0.0, %v4348
      %v4350 = vpop.f32.mrb[0].mxu0
      %v4351 = vpop.f32.mrb[0].mxu0
      %v4352 = vadd.f32 0.0, %v4351
      %v4353 = vpop.f32.mrb[0].mxu0
      %4354 = vmatprep.mubr.bf16.mxu0 0
      %4355 = vmatmul.mubr.bf16.gmra.mrb[0].mxu0 %v3469
      %v4356 = vpop.f32.mrb[0].mxu0
      %v4357 = vadd.f32 0.0, %v4356
      %v4358 = vpop.f32.mrb[0].mxu0
      %v4359 = vpop.f32.mrb[0].mxu0
      %v4360 = vadd.f32 0.0, %v4359
      %v4361 = vpop.f32.mrb[0].mxu0
      %4362 = vmatprep.mubr.bf16.mxu0 0
      %4363 = vmatmul.mubr.bf16.gmra.mrb[0].mxu0 %v3472
      %v4364 = vpop.f32.mrb[0].mxu0
      %v4365 = vadd.f32 0.0, %v4364
      %v4366 = vpop.f32.mrb[0].mxu0
      %v4367 = vpop.f32.mrb[0].mxu0
      %v4368 = vadd.f32 0.0, %v4367
      %v4369 = vpop.f32.mrb[0].mxu0
      %4370 = vmatprep.mubr.bf16.mxu0 0
      %4371 = vmatmul.mubr.bf16.gmra.mrb[0].mxu0 %v3475
      %v4372 = vpop.f32.mrb[0].mxu0
      %v4373 = vadd.f32 0.0, %v4372
      %v4374 = vpop.f32.mrb[0].mxu0
      %v4375 = vpop.f32.mrb[0].mxu0
      %v4376 = vadd.f32 0.0, %v4375
      %v4377 = vpop.f32.mrb[0].mxu0
      %4378 = vmatprep.mubr.bf16.mxu0 0
      %4379 = vmatmul.mubr.bf16.gmra.mrb[0].mxu0 %v3478
      %v4380 = vpop.f32.mrb[0].mxu0
      %v4381 = vadd.f32 0.0, %v4380
      %v4382 = vpop.f32.mrb[0].mxu0
      %v4383 = vpop.f32.mrb[0].mxu0
      %v4384 = vadd.f32 0.0, %v4383
      %v4385 = vpop.f32.mrb[0].mxu0
      %4386 = vmatprep.mubr.bf16.mxu0 0
      %4387 = vmatmul.mubr.bf16.gmra.mrb[0].mxu0 %v3481
      %v4388 = vpop.f32.mrb[0].mxu0
      %v4389 = vadd.f32 0.0, %v4388
      %v4390 = vpop.f32.mrb[0].mxu0
      %v4391 = vpop.f32.mrb[0].mxu0
      %v4392 = vadd.f32 0.0, %v4391
      %v4393 = vpop.f32.mrb[0].mxu0
      %4394 = vmatprep.mubr.bf16.mxu0 0
      %4395 = vmatmul.mubr.bf16.gmra.mrb[0].mxu0 %v3484
      %v4396 = vpop.f32.mrb[0].mxu0
      %v4397 = vadd.f32 0.0, %v4396
      %v4398 = vpop.f32.mrb[0].mxu0
      %v4399 = vpop.f32.mrb[0].mxu0
      %v4400 = vadd.f32 0.0, %v4399
      %v4401 = vpop.f32.mrb[0].mxu0
      %4402 = vmatprep.mubr.bf16.mxu0 0
      %4403 = vmatmul.mubr.bf16.gmra.mrb[0].mxu0 %v3487
      %v4404 = vpop.f32.mrb[0].mxu0
      %v4405 = vadd.f32 0.0, %v4404
      %v4406 = vpop.f32.mrb[0].mxu0
      %v4407 = vpop.f32.mrb[0].mxu0
      %v4408 = vadd.f32 0.0, %v4407
      %v4409 = vpop.f32.mrb[0].mxu0
      %4410 = vmatprep.mubr.bf16.mxu0 0
      %4411 = vmatmul.mubr.bf16.gmra.mrb[0].mxu0 %v3490
      %v4412 = vpop.f32.mrb[0].mxu0
      %v4413 = vadd.f32 0.0, %v4412
      %v4414 = vpop.f32.mrb[0].mxu0
      %v4415 = vpop.f32.mrb[0].mxu0
      %v4416 = vadd.f32 0.0, %v4415
      %v4417 = vpop.f32.mrb[0].mxu0
      %4418 = vmatprep.mubr.bf16.mxu0 0
      %4419 = vmatmul.mubr.bf16.gmra.mrb[0].mxu0 %v3493
      %v4420 = vpop.f32.mrb[0].mxu0
      %v4421 = vadd.f32 0.0, %v4420
      %v4422 = vpop.f32.mrb[0].mxu0
      %v4423 = vpop.f32.mrb[0].mxu0
      %v4424 = vadd.f32 0.0, %v4423
      %v4425 = vpop.f32.mrb[0].mxu0
      %4426 = vmatprep.mubr.bf16.mxu0 0
      %4427 = vmatmul.mubr.bf16.gmra.mrb[0].mxu0 %v3496
      %v4428 = vpop.f32.mrb[0].mxu0
      %v4429 = vadd.f32 0.0, %v4428
      %v4430 = vpop.f32.mrb[0].mxu0
      %v4431 = vpop.f32.mrb[0].mxu0
      %v4432 = vadd.f32 0.0, %v4431
      %v4433 = vpop.f32.mrb[0].mxu0
      %4434 = vmatprep.mubr.bf16.mxu0 0
      %4435 = vmatmul.mubr.bf16.gmra.mrb[0].mxu0 %v3499
      %v4436 = vpop.f32.mrb[0].mxu0
      %v4437 = vadd.f32 0.0, %v4436
      %v4438 = vpop.f32.mrb[0].mxu0
      %v4439 = vpop.f32.mrb[0].mxu0
      %v4440 = vadd.f32 0.0, %v4439
      %v4441 = vpop.f32.mrb[0].mxu0
      %4442 = vmatprep.mubr.bf16.mxu0 0
      %4443 = vmatmul.mubr.bf16.gmra.mrb[0].mxu0 %v3502
      %v4444 = vpop.f32.mrb[0].mxu0
      %v4445 = vadd.f32 0.0, %v4444
      %v4446 = vpop.f32.mrb[0].mxu0
      %v4447 = vpop.f32.mrb[0].mxu0
      %v4448 = vadd.f32 0.0, %v4447
      %v4449 = vpop.f32.mrb[0].mxu0
      %4450 = vmatprep.mubr.bf16.mxu0 0
      %4451 = vmatmul.mubr.bf16.gmra.mrb[0].mxu0 %v3505
      %v4452 = vpop.f32.mrb[0].mxu0
      %v4453 = vadd.f32 0.0, %v4452
      %v4454 = vpop.f32.mrb[0].mxu0
      %v4455 = vpop.f32.mrb[0].mxu0
      %v4456 = vadd.f32 0.0, %v4455
      %v4457 = vpop.f32.mrb[0].mxu0
      %4458 = vmatprep.mubr.bf16.mxu0 0
      %4459 = vmatmul.mubr.bf16.gmra.mrb[0].mxu0 %v3508
      %v4460 = vpop.f32.mrb[0].mxu0
      %v4461 = vadd.f32 0.0, %v4460
      %v4462 = vpop.f32.mrb[0].mxu0
      %v4463 = vpop.f32.mrb[0].mxu0
      %v4464 = vadd.f32 0.0, %v4463
      %v4465 = vpop.f32.mrb[0].mxu0
      %4466 = vmatprep.mubr.bf16.mxu0 0
      %4467 = vmatmul.mubr.bf16.gmra.mrb[0].mxu0 %v3511
      %v4468 = vpop.f32.mrb[0].mxu0
      %v4469 = vadd.f32 0.0, %v4468
      %v4470 = vpop.f32.mrb[0].mxu0
      %v4471 = vpop.f32.mrb[0].mxu0
      %v4472 = vadd.f32 0.0, %v4471
      %v4473 = vpop.f32.mrb[0].mxu0
      %4474 = vmatprep.mubr.bf16.mxu0 0
      %4475 = vmatmul.mubr.bf16.gmra.mrb[0].mxu0 %v3514
      %v4476 = vpop.f32.mrb[0].mxu0
      %v4477 = vadd.f32 0.0, %v4476
      %v4478 = vpop.f32.mrb[0].mxu0
      %v4479 = vpop.f32.mrb[0].mxu0
      %v4480 = vadd.f32 0.0, %v4479
      %v4481 = vpop.f32.mrb[0].mxu0
      %4482 = vmatprep.mubr.bf16.mxu0 0
      %4483 = vmatmul.mubr.bf16.gmra.mrb[0].mxu0 %v3517
      %v4484 = vpop.f32.mrb[0].mxu0
      %v4485 = vadd.f32 0.0, %v4484
      %v4486 = vpop.f32.mrb[0].mxu0
      %v4487 = vpop.f32.mrb[0].mxu0
      %v4488 = vadd.f32 0.0, %v4487
      %v4489 = vpop.f32.mrb[0].mxu0
      %4490 = vmatprep.mubr.bf16.mxu0 0
      %4491 = vmatmul.mubr.bf16.gmra.mrb[0].mxu0 %v3520
      %v4492 = vpop.f32.mrb[0].mxu0
      %v4493 = vadd.f32 0.0, %v4492
      %v4494 = vpop.f32.mrb[0].mxu0
      %v4495 = vpop.f32.mrb[0].mxu0
      %v4496 = vadd.f32 0.0, %v4495
      %v4497 = vpop.f32.mrb[0].mxu0
      %4498 = vmatprep.mubr.bf16.mxu0 0
      %4499 = vmatmul.mubr.bf16.gmra.mrb[0].mxu0 %v3523
      %v4500 = vpop.f32.mrb[0].mxu0
      %v4501 = vadd.f32 0.0, %v4500
      %v4502 = vpop.f32.mrb[0].mxu0
      %v4503 = vpop.f32.mrb[0].mxu0
      %v4504 = vadd.f32 0.0, %v4503
      %v4505 = vpop.f32.mrb[0].mxu0
      %4506 = vmatprep.mubr.bf16.mxu0 0
      %4507 = vmatmul.mubr.bf16.gmra.mrb[0].mxu0 %v3526
      %v4508 = vpop.f32.mrb[0].mxu0
      %v4509 = vadd.f32 0.0, %v4508
      %v4510 = vpop.f32.mrb[0].mxu0
      %v4511 = vpop.f32.mrb[0].mxu0
      %v4512 = vadd.f32 0.0, %v4511
      %v4513 = vpop.f32.mrb[0].mxu0
      %4514 = vmatprep.mubr.bf16.mxu0 0
      %4515 = vmatmul.mubr.bf16.gmra.mrb[0].mxu0 %v3529
      %v4516 = vpop.f32.mrb[0].mxu0
      %v4517 = vadd.f32 0.0, %v4516
      %v4518 = vpop.f32.mrb[0].mxu0
      %v4519 = vpop.f32.mrb[0].mxu0
      %v4520 = vadd.f32 0.0, %v4519
      %v4521 = vpop.f32.mrb[0].mxu0
      %4522 = vmatprep.mubr.bf16.mxu0 0
      %4523 = vmatmul.mubr.bf16.gmra.mrb[0].mxu0 %v3532
      %v4524 = vpop.f32.mrb[0].mxu0
      %v4525 = vadd.f32 0.0, %v4524
      %v4526 = vpop.f32.mrb[0].mxu0
      %v4527 = vpop.f32.mrb[0].mxu0
      %v4528 = vadd.f32 0.0, %v4527
      %v4529 = vpop.f32.mrb[0].mxu0
      %4530 = vmatprep.mubr.bf16.mxu0 0
      %4531 = vmatmul.mubr.bf16.gmra.mrb[0].mxu0 %v3535
      %v4532 = vpop.f32.mrb[0].mxu0
      %v4533 = vadd.f32 0.0, %v4532
      %v4534 = vpop.f32.mrb[0].mxu0
      %v4535 = vpop.f32.mrb[0].mxu0
      %v4536 = vadd.f32 0.0, %v4535
      %v4537 = vpop.f32.mrb[0].mxu0
      %4538 = vmatprep.mubr.bf16.mxu0 0
      %4539 = vmatmul.mubr.bf16.gmra.mrb[0].mxu0 %v3538
      %v4540 = vpop.f32.mrb[0].mxu0
      %v4541 = vadd.f32 0.0, %v4540
      %v4542 = vpop.f32.mrb[0].mxu0
      %v4543 = vpop.f32.mrb[0].mxu0
      %v4544 = vadd.f32 0.0, %v4543
      %v4545 = vpop.f32.mrb[0].mxu0
      %4546 = vmatprep.mubr.bf16.mxu0 0
      %4547 = vmatmul.mubr.bf16.gmra.mrb[0].mxu0 %v3541
      %v4548 = vpop.f32.mrb[0].mxu0
      %v4549 = vadd.f32 0.0, %v4548
      %v4550 = vpop.f32.mrb[0].mxu0
      %v4551 = vpop.f32.mrb[0].mxu0
      %v4552 = vadd.f32 0.0, %v4551
      %v4553 = vpop.f32.mrb[0].mxu0
      %4554 = vmatprep.mubr.bf16.mxu0 0
      %4555 = vmatmul.mubr.bf16.gmra.mrb[0].mxu0 %v3544
      %v4556 = vpop.f32.mrb[0].mxu0
      %v4557 = vadd.f32 0.0, %v4556
      %v4558 = vpop.f32.mrb[0].mxu0
      %v4559 = vpop.f32.mrb[0].mxu0
      %v4560 = vadd.f32 0.0, %v4559
      %v4561 = vpop.f32.mrb[0].mxu0
      %4562 = vmatprep.mubr.bf16.mxu0 0
      %4563 = vmatmul.mubr.bf16.gmra.mrb[0].mxu0 %v3547
      %v4564 = vpop.f32.mrb[0].mxu0
      %v4565 = vadd.f32 0.0, %v4564
      %v4566 = vpop.f32.mrb[0].mxu0
      %v4567 = vpop.f32.mrb[0].mxu0
      %v4568 = vadd.f32 0.0, %v4567
      %v4569 = vpop.f32.mrb[0].mxu0
      %4570 = vmatprep.mubr.bf16.mxu0 0
      %4571 = vmatmul.mubr.bf16.gmra.mrb[0].mxu0 %v3550
      %v4572 = vpop.f32.mrb[0].mxu0
      %v4573 = vadd.f32 0.0, %v4572
      %v4574 = vpop.f32.mrb[0].mxu0
      %v4575 = vpop.f32.mrb[0].mxu0
      %v4576 = vadd.f32 0.0, %v4575
      %v4577 = vpop.f32.mrb[0].mxu0
      %4578 = vmatprep.mubr.bf16.mxu0 0
      %4579 = vmatmul.mubr.bf16.gmra.mrb[0].mxu0 %v3553
      %v4580 = vpop.f32.mrb[0].mxu0
      %v4581 = vadd.f32 0.0, %v4580
      %v4582 = vpop.f32.mrb[0].mxu0
      %v4583 = vpop.f32.mrb[0].mxu0
      %v4584 = vadd.f32 0.0, %v4583
      %v4585 = vpop.f32.mrb[0].mxu0
      %4586 = vmatprep.mubr.bf16.mxu0 0
      %4587 = vmatmul.mubr.bf16.gmra.mrb[0].mxu0 %v3556
      %v4588 = vpop.f32.mrb[0].mxu0
      %v4589 = vadd.f32 0.0, %v4588
      %v4590 = vpop.f32.mrb[0].mxu0
      %v4591 = vpop.f32.mrb[0].mxu0
      %v4592 = vadd.f32 0.0, %v4591
      %v4593 = vpop.f32.mrb[0].mxu0
      %4594 = vmatprep.mubr.bf16.mxu0 0
      %4595 = vmatmul.mubr.bf16.gmra.mrb[0].mxu0 %v3559
      %v4596 = vpop.f32.mrb[0].mxu0
      %v4597 = vadd.f32 0.0, %v4596
      %v4598 = vpop.f32.mrb[0].mxu0
      %v4599 = vpop.f32.mrb[0].mxu0
      %v4600 = vadd.f32 0.0, %v4599
      %v4601 = vpop.f32.mrb[0].mxu0
      %4602 = vmatprep.mubr.bf16.mxu0 0
      %4603 = vmatmul.mubr.bf16.gmra.mrb[0].mxu0 %v3562
      %v4604 = vpop.f32.mrb[0].mxu0
      %v4605 = vadd.f32 0.0, %v4604
      %v4606 = vpop.f32.mrb[0].mxu0
      %v4607 = vpop.f32.mrb[0].mxu0
      %v4608 = vadd.f32 0.0, %v4607
      %v4609 = vpop.f32.mrb[0].mxu0
      %4610 = vmatprep.mubr.bf16.mxu0 0
      %4611 = vmatmul.mubr.bf16.gmra.mrb[0].mxu0 %v3565
      %v4612 = vpop.f32.mrb[0].mxu0
      %v4613 = vadd.f32 0.0, %v4612
      %v4614 = vpop.f32.mrb[0].mxu0
      %v4615 = vpop.f32.mrb[0].mxu0
      %v4616 = vadd.f32 0.0, %v4615
      %v4617 = vpop.f32.mrb[0].mxu0
      %4618 = vmatprep.mubr.bf16.mxu0 0
      %4619 = vmatmul.mubr.bf16.gmra.mrb[0].mxu0 %v3568
      %v4620 = vpop.f32.mrb[0].mxu0
      %v4621 = vadd.f32 0.0, %v4620
      %v4622 = vpop.f32.mrb[0].mxu0
      %v4623 = vpop.f32.mrb[0].mxu0
      %v4624 = vadd.f32 0.0, %v4623
      %v4625 = vpop.f32.mrb[0].mxu0
      %4626 = vdwg.mxu0
      %v4627 = vld [vmem:[#allocation2] sm:$0xff]
      %v4628 = vld [vmem:[#allocation2 + $0x8] sm:$0xff]
      %v4629 = vld [vmem:[#allocation2 + $0x10] sm:$0xff]
      %v4630 = vld [vmem:[#allocation2 + $0x18] sm:$0xff]
      %v4631 = vsel %vm1344, %v3605, 0.0
      %v4632 = vsel %vm1344, %v3608, 0.0
      %v4633 = vadd.f32 %v4631, %v4632
      %v4634 = vsel %vm1344, %v3613, 0.0
      %v4635 = vadd.f32 %v4633, %v4634
      %v4636 = vsel %vm1344, %v3616, 0.0
      %v4637 = vadd.f32 %v4635, %v4636
      %v4638 = vsel %vm1344, %v3621, 0.0
      %v4639 = vadd.f32 %v4637, %v4638
      %v4640 = vsel %vm1344, %v3624, 0.0
      %v4641 = vadd.f32 %v4639, %v4640
      %v4642 = vsel %vm1344, %v3629, 0.0
      %v4643 = vadd.f32 %v4641, %v4642
      %v4644 = vsel %vm1344, %v3632, 0.0
      %v4645 = vadd.f32 %v4643, %v4644
      %v4646 = vrot.slane %v4645, 4
      %v4647 = vadd.f32 %v4645, %v4646
      %v4648 = vrot.slane %v4647, 2
      %v4649 = vadd.f32 %v4647, %v4648
      %v4650 = vrot.slane %v4649, 1
      %v4651 = vadd.f32 %v4649, %v4650
      %v4652 = vsel %vm1344, %v3637, 0.0
      %v4653 = vsel %vm1344, %v3640, 0.0
      %v4654 = vadd.f32 %v4652, %v4653
      %v4655 = vsel %vm1344, %v3645, 0.0
      %v4656 = vadd.f32 %v4654, %v4655
      %v4657 = vsel %vm1344, %v3648, 0.0
      %v4658 = vadd.f32 %v4656, %v4657
      %v4659 = vsel %vm1344, %v3653, 0.0
      %v4660 = vadd.f32 %v4658, %v4659
      %v4661 = vsel %vm1344, %v3656, 0.0
      %v4662 = vadd.f32 %v4660, %v4661
      %v4663 = vsel %vm1344, %v3661, 0.0
      %v4664 = vadd.f32 %v4662, %v4663
      %v4665 = vsel %vm1344, %v3664, 0.0
      %v4666 = vadd.f32 %v4664, %v4665
      %v4667 = vrot.slane %v4666, 4
      %v4668 = vadd.f32 %v4666, %v4667
      %v4669 = vrot.slane %v4668, 2
      %v4670 = vadd.f32 %v4668, %v4669
      %v4671 = vrot.slane %v4670, 1
      %v4672 = vadd.f32 %v4670, %v4671
      %v4673 = vsel %vm1344, %v3669, 0.0
      %v4674 = vsel %vm1344, %v3672, 0.0
      %v4675 = vadd.f32 %v4673, %v4674
      %v4676 = vsel %vm1344, %v3677, 0.0
      %v4677 = vadd.f32 %v4675, %v4676
      %v4678 = vsel %vm1344, %v3680, 0.0
      %v4679 = vadd.f32 %v4677, %v4678
      %v4680 = vsel %vm1344, %v3685, 0.0
      %v4681 = vadd.f32 %v4679, %v4680
      %v4682 = vsel %vm1344, %v3688, 0.0
      %v4683 = vadd.f32 %v4681, %v4682
      %v4684 = vsel %vm1344, %v3693, 0.0
      %v4685 = vadd.f32 %v4683, %v4684
      %v4686 = vsel %vm1344, %v3696, 0.0
      %v4687 = vadd.f32 %v4685, %v4686
      %v4688 = vrot.slane %v4687, 4
      %v4689 = vadd.f32 %v4687, %v4688
      %v4690 = vrot.slane %v4689, 2
      %v4691 = vadd.f32 %v4689, %v4690
      %v4692 = vrot.slane %v4691, 1
      %v4693 = vadd.f32 %v4691, %v4692
      %v4694 = vsel %vm1344, %v3701, 0.0
      %v4695 = vsel %vm1344, %v3704, 0.0
      %v4696 = vadd.f32 %v4694, %v4695
      %v4697 = vsel %vm1344, %v3709, 0.0
      %v4698 = vadd.f32 %v4696, %v4697
      %v4699 = vsel %vm1344, %v3712, 0.0
      %v4700 = vadd.f32 %v4698, %v4699
      %v4701 = vsel %vm1344, %v3717, 0.0
      %v4702 = vadd.f32 %v4700, %v4701
      %v4703 = vsel %vm1344, %v3720, 0.0
      %v4704 = vadd.f32 %v4702, %v4703
      %v4705 = vsel %vm1344, %v3725, 0.0
      %v4706 = vadd.f32 %v4704, %v4705
      %v4707 = vsel %vm1344, %v3728, 0.0
      %v4708 = vadd.f32 %v4706, %v4707
      %v4709 = vrot.slane %v4708, 4
      %v4710 = vadd.f32 %v4708, %v4709
      %v4711 = vrot.slane %v4710, 2
      %v4712 = vadd.f32 %v4710, %v4711
      %v4713 = vrot.slane %v4712, 1
      %v4714 = vadd.f32 %v4712, %v4713
      %v4715 = vsel %vm1344, %v3733, 0.0
      %v4716 = vsel %vm1344, %v3736, 0.0
      %v4717 = vadd.f32 %v4715, %v4716
      %v4718 = vsel %vm1344, %v3741, 0.0
      %v4719 = vadd.f32 %v4717, %v4718
      %v4720 = vsel %vm1344, %v3744, 0.0
      %v4721 = vadd.f32 %v4719, %v4720
      %v4722 = vsel %vm1344, %v3749, 0.0
      %v4723 = vadd.f32 %v4721, %v4722
      %v4724 = vsel %vm1344, %v3752, 0.0
      %v4725 = vadd.f32 %v4723, %v4724
      %v4726 = vsel %vm1344, %v3757, 0.0
      %v4727 = vadd.f32 %v4725, %v4726
      %v4728 = vsel %vm1344, %v3760, 0.0
      %v4729 = vadd.f32 %v4727, %v4728
      %v4730 = vrot.slane %v4729, 4
      %v4731 = vadd.f32 %v4729, %v4730
      %v4732 = vrot.slane %v4731, 2
      %v4733 = vadd.f32 %v4731, %v4732
      %v4734 = vrot.slane %v4733, 1
      %v4735 = vadd.f32 %v4733, %v4734
      %v4736 = vsel %vm1344, %v3765, 0.0
      %v4737 = vsel %vm1344, %v3768, 0.0
      %v4738 = vadd.f32 %v4736, %v4737
      %v4739 = vsel %vm1344, %v3773, 0.0
      %v4740 = vadd.f32 %v4738, %v4739
      %v4741 = vsel %vm1344, %v3776, 0.0
      %v4742 = vadd.f32 %v4740, %v4741
      %v4743 = vsel %vm1344, %v3781, 0.0
      %v4744 = vadd.f32 %v4742, %v4743
      %v4745 = vsel %vm1344, %v3784, 0.0
      %v4746 = vadd.f32 %v4744, %v4745
      %v4747 = vsel %vm1344, %v3789, 0.0
      %v4748 = vadd.f32 %v4746, %v4747
      %v4749 = vsel %vm1344, %v3792, 0.0
      %v4750 = vadd.f32 %v4748, %v4749
      %v4751 = vrot.slane %v4750, 4
      %v4752 = vadd.f32 %v4750, %v4751
      %v4753 = vrot.slane %v4752, 2
      %v4754 = vadd.f32 %v4752, %v4753
      %v4755 = vrot.slane %v4754, 1
      %v4756 = vadd.f32 %v4754, %v4755
      %v4757 = vsel %vm1344, %v3797, 0.0
      %v4758 = vsel %vm1344, %v3800, 0.0
      %v4759 = vadd.f32 %v4757, %v4758
      %v4760 = vsel %vm1344, %v3805, 0.0
      %v4761 = vadd.f32 %v4759, %v4760
      %v4762 = vsel %vm1344, %v3808, 0.0
      %v4763 = vadd.f32 %v4761, %v4762
      %v4764 = vsel %vm1344, %v3813, 0.0
      %v4765 = vadd.f32 %v4763, %v4764
      %v4766 = vsel %vm1344, %v3816, 0.0
      %v4767 = vadd.f32 %v4765, %v4766
      %v4768 = vsel %vm1344, %v3821, 0.0
      %v4769 = vadd.f32 %v4767, %v4768
      %v4770 = vsel %vm1344, %v3824, 0.0
      %v4771 = vadd.f32 %v4769, %v4770
      %v4772 = vrot.slane %v4771, 4
      %v4773 = vadd.f32 %v4771, %v4772
      %v4774 = vrot.slane %v4773, 2
      %v4775 = vadd.f32 %v4773, %v4774
      %v4776 = vrot.slane %v4775, 1
      %v4777 = vadd.f32 %v4775, %v4776
      %v4778 = vsel %vm1344, %v3829, 0.0
      %v4779 = vsel %vm1344, %v3832, 0.0
      %v4780 = vadd.f32 %v4778, %v4779
      %v4781 = vsel %vm1344, %v3837, 0.0
      %v4782 = vadd.f32 %v4780, %v4781
      %v4783 = vsel %vm1344, %v3840, 0.0
      %v4784 = vadd.f32 %v4782, %v4783
      %v4785 = vsel %vm1344, %v3845, 0.0
      %v4786 = vadd.f32 %v4784, %v4785
      %v4787 = vsel %vm1344, %v3848, 0.0
      %v4788 = vadd.f32 %v4786, %v4787
      %v4789 = vsel %vm1344, %v3853, 0.0
      %v4790 = vadd.f32 %v4788, %v4789
      %v4791 = vsel %vm1344, %v3856, 0.0
      %v4792 = vadd.f32 %v4790, %v4791
      %v4793 = vrot.slane %v4792, 4
      %v4794 = vadd.f32 %v4792, %v4793
      %v4795 = vrot.slane %v4794, 2
      %v4796 = vadd.f32 %v4794, %v4795
      %v4797 = vrot.slane %v4796, 1
      %v4798 = vadd.f32 %v4796, %v4797
      %v4799 = vsel %vm1344, %v3861, 0.0
      %v4800 = vsel %vm1344, %v3864, 0.0
      %v4801 = vadd.f32 %v4799, %v4800
      %v4802 = vsel %vm1344, %v3869, 0.0
      %v4803 = vadd.f32 %v4801, %v4802
      %v4804 = vsel %vm1344, %v3872, 0.0
      %v4805 = vadd.f32 %v4803, %v4804
      %v4806 = vsel %vm1344, %v3877, 0.0
      %v4807 = vadd.f32 %v4805, %v4806
      %v4808 = vsel %vm1344, %v3880, 0.0
      %v4809 = vadd.f32 %v4807, %v4808
      %v4810 = vsel %vm1344, %v3885, 0.0
      %v4811 = vadd.f32 %v4809, %v4810
      %v4812 = vsel %vm1344, %v3888, 0.0
      %v4813 = vadd.f32 %v4811, %v4812
      %v4814 = vrot.slane %v4813, 4
      %v4815 = vadd.f32 %v4813, %v4814
      %v4816 = vrot.slane %v4815, 2
      %v4817 = vadd.f32 %v4815, %v4816
      %v4818 = vrot.slane %v4817, 1
      %v4819 = vadd.f32 %v4817, %v4818
      %v4820 = vsel %vm1344, %v3893, 0.0
      %v4821 = vsel %vm1344, %v3896, 0.0
      %v4822 = vadd.f32 %v4820, %v4821
      %v4823 = vsel %vm1344, %v3901, 0.0
      %v4824 = vadd.f32 %v4822, %v4823
      %v4825 = vsel %vm1344, %v3904, 0.0
      %v4826 = vadd.f32 %v4824, %v4825
      %v4827 = vsel %vm1344, %v3909, 0.0
      %v4828 = vadd.f32 %v4826, %v4827
      %v4829 = vsel %vm1344, %v3912, 0.0
      %v4830 = vadd.f32 %v4828, %v4829
      %v4831 = vsel %vm1344, %v3917, 0.0
      %v4832 = vadd.f32 %v4830, %v4831
      %v4833 = vsel %vm1344, %v3920, 0.0
      %v4834 = vadd.f32 %v4832, %v4833
      %v4835 = vrot.slane %v4834, 4
      %v4836 = vadd.f32 %v4834, %v4835
      %v4837 = vrot.slane %v4836, 2
      %v4838 = vadd.f32 %v4836, %v4837
      %v4839 = vrot.slane %v4838, 1
      %v4840 = vadd.f32 %v4838, %v4839
      %v4841 = vsel %vm1344, %v3925, 0.0
      %v4842 = vsel %vm1344, %v3928, 0.0
      %v4843 = vadd.f32 %v4841, %v4842
      %v4844 = vsel %vm1344, %v3933, 0.0
      %v4845 = vadd.f32 %v4843, %v4844
      %v4846 = vsel %vm1344, %v3936, 0.0
      %v4847 = vadd.f32 %v4845, %v4846
      %v4848 = vsel %vm1344, %v3941, 0.0
      %v4849 = vadd.f32 %v4847, %v4848
      %v4850 = vsel %vm1344, %v3944, 0.0
      %v4851 = vadd.f32 %v4849, %v4850
      %v4852 = vsel %vm1344, %v3949, 0.0
      %v4853 = vadd.f32 %v4851, %v4852
      %v4854 = vsel %vm1344, %v3952, 0.0
      %v4855 = vadd.f32 %v4853, %v4854
      %v4856 = vrot.slane %v4855, 4
      %v4857 = vadd.f32 %v4855, %v4856
      %v4858 = vrot.slane %v4857, 2
      %v4859 = vadd.f32 %v4857, %v4858
      %v4860 = vrot.slane %v4859, 1
      %v4861 = vadd.f32 %v4859, %v4860
      %v4862 = vsel %vm1344, %v3957, 0.0
      %v4863 = vsel %vm1344, %v3960, 0.0
      %v4864 = vadd.f32 %v4862, %v4863
      %v4865 = vsel %vm1344, %v3965, 0.0
      %v4866 = vadd.f32 %v4864, %v4865
      %v4867 = vsel %vm1344, %v3968, 0.0
      %v4868 = vadd.f32 %v4866, %v4867
      %v4869 = vsel %vm1344, %v3973, 0.0
      %v4870 = vadd.f32 %v4868, %v4869
      %v4871 = vsel %vm1344, %v3976, 0.0
      %v4872 = vadd.f32 %v4870, %v4871
      %v4873 = vsel %vm1344, %v3981, 0.0
      %v4874 = vadd.f32 %v4872, %v4873
      %v4875 = vsel %vm1344, %v3984, 0.0
      %v4876 = vadd.f32 %v4874, %v4875
      %v4877 = vrot.slane %v4876, 4
      %v4878 = vadd.f32 %v4876, %v4877
      %v4879 = vrot.slane %v4878, 2
      %v4880 = vadd.f32 %v4878, %v4879
      %v4881 = vrot.slane %v4880, 1
      %v4882 = vadd.f32 %v4880, %v4881
      %v4883 = vsel %vm1344, %v3989, 0.0
      %v4884 = vsel %vm1344, %v3992, 0.0
      %v4885 = vadd.f32 %v4883, %v4884
      %v4886 = vsel %vm1344, %v3997, 0.0
      %v4887 = vadd.f32 %v4885, %v4886
      %v4888 = vsel %vm1344, %v4000, 0.0
      %v4889 = vadd.f32 %v4887, %v4888
      %v4890 = vsel %vm1344, %v4005, 0.0
      %v4891 = vadd.f32 %v4889, %v4890
      %v4892 = vsel %vm1344, %v4008, 0.0
      %v4893 = vadd.f32 %v4891, %v4892
      %v4894 = vsel %vm1344, %v4013, 0.0
      %v4895 = vadd.f32 %v4893, %v4894
      %v4896 = vsel %vm1344, %v4016, 0.0
      %v4897 = vadd.f32 %v4895, %v4896
      %v4898 = vrot.slane %v4897, 4
      %v4899 = vadd.f32 %v4897, %v4898
      %v4900 = vrot.slane %v4899, 2
      %v4901 = vadd.f32 %v4899, %v4900
      %v4902 = vrot.slane %v4901, 1
      %v4903 = vadd.f32 %v4901, %v4902
      %v4904 = vsel %vm1344, %v4021, 0.0
      %v4905 = vsel %vm1344, %v4024, 0.0
      %v4906 = vadd.f32 %v4904, %v4905
      %v4907 = vsel %vm1344, %v4029, 0.0
      %v4908 = vadd.f32 %v4906, %v4907
      %v4909 = vsel %vm1344, %v4032, 0.0
      %v4910 = vadd.f32 %v4908, %v4909
      %v4911 = vsel %vm1344, %v4037, 0.0
      %v4912 = vadd.f32 %v4910, %v4911
      %v4913 = vsel %vm1344, %v4040, 0.0
      %v4914 = vadd.f32 %v4912, %v4913
      %v4915 = vsel %vm1344, %v4045, 0.0
      %v4916 = vadd.f32 %v4914, %v4915
      %v4917 = vsel %vm1344, %v4048, 0.0
      %v4918 = vadd.f32 %v4916, %v4917
      %v4919 = vrot.slane %v4918, 4
      %v4920 = vadd.f32 %v4918, %v4919
      %v4921 = vrot.slane %v4920, 2
      %v4922 = vadd.f32 %v4920, %v4921
      %v4923 = vrot.slane %v4922, 1
      %v4924 = vadd.f32 %v4922, %v4923
      %v4925 = vsel %vm1344, %v4053, 0.0
      %v4926 = vsel %vm1344, %v4056, 0.0
      %v4927 = vadd.f32 %v4925, %v4926
      %v4928 = vsel %vm1344, %v4061, 0.0
      %v4929 = vadd.f32 %v4927, %v4928
      %v4930 = vsel %vm1344, %v4064, 0.0
      %v4931 = vadd.f32 %v4929, %v4930
      %v4932 = vsel %vm1344, %v4069, 0.0
      %v4933 = vadd.f32 %v4931, %v4932
      %v4934 = vsel %vm1344, %v4072, 0.0
      %v4935 = vadd.f32 %v4933, %v4934
      %v4936 = vsel %vm1344, %v4077, 0.0
      %v4937 = vadd.f32 %v4935, %v4936
      %v4938 = vsel %vm1344, %v4080, 0.0
      %v4939 = vadd.f32 %v4937, %v4938
      %v4940 = vrot.slane %v4939, 4
      %v4941 = vadd.f32 %v4939, %v4940
      %v4942 = vrot.slane %v4941, 2
      %v4943 = vadd.f32 %v4941, %v4942
      %v4944 = vrot.slane %v4943, 1
      %v4945 = vadd.f32 %v4943, %v4944
      %v4946 = vsel %vm1344, %v4085, 0.0
      %v4947 = vsel %vm1344, %v4088, 0.0
      %v4948 = vadd.f32 %v4946, %v4947
      %v4949 = vsel %vm1344, %v4093, 0.0
      %v4950 = vadd.f32 %v4948, %v4949
      %v4951 = vsel %vm1344, %v4096, 0.0
      %v4952 = vadd.f32 %v4950, %v4951
      %v4953 = vsel %vm1344, %v4101, 0.0
      %v4954 = vadd.f32 %v4952, %v4953
      %v4955 = vsel %vm1344, %v4104, 0.0
      %v4956 = vadd.f32 %v4954, %v4955
      %v4957 = vsel %vm1344, %v4109, 0.0
      %v4958 = vadd.f32 %v4956, %v4957
      %v4959 = vsel %vm1344, %v4112, 0.0
      %v4960 = vadd.f32 %v4958, %v4959
      %v4961 = vrot.slane %v4960, 4
      %v4962 = vadd.f32 %v4960, %v4961
      %v4963 = vrot.slane %v4962, 2
      %v4964 = vadd.f32 %v4962, %v4963
      %v4965 = vrot.slane %v4964, 1
      %v4966 = vadd.f32 %v4964, %v4965
      %v4967 = vsel %vm1344, %v4117, 0.0
      %v4968 = vsel %vm1344, %v4120, 0.0
      %v4969 = vadd.f32 %v4967, %v4968
      %v4970 = vsel %vm1344, %v4125, 0.0
      %v4971 = vadd.f32 %v4969, %v4970
      %v4972 = vsel %vm1344, %v4128, 0.0
      %v4973 = vadd.f32 %v4971, %v4972
      %v4974 = vsel %vm1344, %v4133, 0.0
      %v4975 = vadd.f32 %v4973, %v4974
      %v4976 = vsel %vm1344, %v4136, 0.0
      %v4977 = vadd.f32 %v4975, %v4976
      %v4978 = vsel %vm1344, %v4141, 0.0
      %v4979 = vadd.f32 %v4977, %v4978
      %v4980 = vsel %vm1344, %v4144, 0.0
      %v4981 = vadd.f32 %v4979, %v4980
      %v4982 = vrot.slane %v4981, 4
      %v4983 = vadd.f32 %v4981, %v4982
      %v4984 = vrot.slane %v4983, 2
      %v4985 = vadd.f32 %v4983, %v4984
      %v4986 = vrot.slane %v4985, 1
      %v4987 = vadd.f32 %v4985, %v4986
      %v4988 = vsel %vm1344, %v4149, 0.0
      %v4989 = vsel %vm1344, %v4152, 0.0
      %v4990 = vadd.f32 %v4988, %v4989
      %v4991 = vsel %vm1344, %v4157, 0.0
      %v4992 = vadd.f32 %v4990, %v4991
      %v4993 = vsel %vm1344, %v4160, 0.0
      %v4994 = vadd.f32 %v4992, %v4993
      %v4995 = vsel %vm1344, %v4165, 0.0
      %v4996 = vadd.f32 %v4994, %v4995
      %v4997 = vsel %vm1344, %v4168, 0.0
      %v4998 = vadd.f32 %v4996, %v4997
      %v4999 = vsel %vm1344, %v4173, 0.0
      %v5000 = vadd.f32 %v4998, %v4999
      %v5001 = vsel %vm1344, %v4176, 0.0
      %v5002 = vadd.f32 %v5000, %v5001
      %v5003 = vrot.slane %v5002, 4
      %v5004 = vadd.f32 %v5002, %v5003
      %v5005 = vrot.slane %v5004, 2
      %v5006 = vadd.f32 %v5004, %v5005
      %v5007 = vrot.slane %v5006, 1
      %v5008 = vadd.f32 %v5006, %v5007
      %v5009 = vsel %vm1344, %v4181, 0.0
      %v5010 = vsel %vm1344, %v4184, 0.0
      %v5011 = vadd.f32 %v5009, %v5010
      %v5012 = vsel %vm1344, %v4189, 0.0
      %v5013 = vadd.f32 %v5011, %v5012
      %v5014 = vsel %vm1344, %v4192, 0.0
      %v5015 = vadd.f32 %v5013, %v5014
      %v5016 = vsel %vm1344, %v4197, 0.0
      %v5017 = vadd.f32 %v5015, %v5016
      %v5018 = vsel %vm1344, %v4200, 0.0
      %v5019 = vadd.f32 %v5017, %v5018
      %v5020 = vsel %vm1344, %v4205, 0.0
      %v5021 = vadd.f32 %v5019, %v5020
      %v5022 = vsel %vm1344, %v4208, 0.0
      %v5023 = vadd.f32 %v5021, %v5022
      %v5024 = vrot.slane %v5023, 4
      %v5025 = vadd.f32 %v5023, %v5024
      %v5026 = vrot.slane %v5025, 2
      %v5027 = vadd.f32 %v5025, %v5026
      %v5028 = vrot.slane %v5027, 1
      %v5029 = vadd.f32 %v5027, %v5028
      %v5030 = vsel %vm1344, %v4213, 0.0
      %v5031 = vsel %vm1344, %v4216, 0.0
      %v5032 = vadd.f32 %v5030, %v5031
      %v5033 = vsel %vm1344, %v4221, 0.0
      %v5034 = vadd.f32 %v5032, %v5033
      %v5035 = vsel %vm1344, %v4224, 0.0
      %v5036 = vadd.f32 %v5034, %v5035
      %v5037 = vsel %vm1344, %v4229, 0.0
      %v5038 = vadd.f32 %v5036, %v5037
      %v5039 = vsel %vm1344, %v4232, 0.0
      %v5040 = vadd.f32 %v5038, %v5039
      %v5041 = vsel %vm1344, %v4237, 0.0
      %v5042 = vadd.f32 %v5040, %v5041
      %v5043 = vsel %vm1344, %v4240, 0.0
      %v5044 = vadd.f32 %v5042, %v5043
      %v5045 = vrot.slane %v5044, 4
      %v5046 = vadd.f32 %v5044, %v5045
      %v5047 = vrot.slane %v5046, 2
      %v5048 = vadd.f32 %v5046, %v5047
      %v5049 = vrot.slane %v5048, 1
      %v5050 = vadd.f32 %v5048, %v5049
      %v5051 = vsel %vm1344, %v4245, 0.0
      %v5052 = vsel %vm1344, %v4248, 0.0
      %v5053 = vadd.f32 %v5051, %v5052
      %v5054 = vsel %vm1344, %v4253, 0.0
      %v5055 = vadd.f32 %v5053, %v5054
      %v5056 = vsel %vm1344, %v4256, 0.0
      %v5057 = vadd.f32 %v5055, %v5056
      %v5058 = vsel %vm1344, %v4261, 0.0
      %v5059 = vadd.f32 %v5057, %v5058
      %v5060 = vsel %vm1344, %v4264, 0.0
      %v5061 = vadd.f32 %v5059, %v5060
      %v5062 = vsel %vm1344, %v4269, 0.0
      %v5063 = vadd.f32 %v5061, %v5062
      %v5064 = vsel %vm1344, %v4272, 0.0
      %v5065 = vadd.f32 %v5063, %v5064
      %v5066 = vrot.slane %v5065, 4
      %v5067 = vadd.f32 %v5065, %v5066
      %v5068 = vrot.slane %v5067, 2
      %v5069 = vadd.f32 %v5067, %v5068
      %v5070 = vrot.slane %v5069, 1
      %v5071 = vadd.f32 %v5069, %v5070
      %v5072 = vsel %vm1344, %v4277, 0.0
      %v5073 = vsel %vm1344, %v4280, 0.0
      %v5074 = vadd.f32 %v5072, %v5073
      %v5075 = vsel %vm1344, %v4285, 0.0
      %v5076 = vadd.f32 %v5074, %v5075
      %v5077 = vsel %vm1344, %v4288, 0.0
      %v5078 = vadd.f32 %v5076, %v5077
      %v5079 = vsel %vm1344, %v4293, 0.0
      %v5080 = vadd.f32 %v5078, %v5079
      %v5081 = vsel %vm1344, %v4296, 0.0
      %v5082 = vadd.f32 %v5080, %v5081
      %v5083 = vsel %vm1344, %v4301, 0.0
      %v5084 = vadd.f32 %v5082, %v5083
      %v5085 = vsel %vm1344, %v4304, 0.0
      %v5086 = vadd.f32 %v5084, %v5085
      %v5087 = vrot.slane %v5086, 4
      %v5088 = vadd.f32 %v5086, %v5087
      %v5089 = vrot.slane %v5088, 2
      %v5090 = vadd.f32 %v5088, %v5089
      %v5091 = vrot.slane %v5090, 1
      %v5092 = vadd.f32 %v5090, %v5091
      %v5093 = vsel %vm1344, %v4309, 0.0
      %v5094 = vsel %vm1344, %v4312, 0.0
      %v5095 = vadd.f32 %v5093, %v5094
      %v5096 = vsel %vm1344, %v4317, 0.0
      %v5097 = vadd.f32 %v5095, %v5096
      %v5098 = vsel %vm1344, %v4320, 0.0
      %v5099 = vadd.f32 %v5097, %v5098
      %v5100 = vsel %vm1344, %v4325, 0.0
      %v5101 = vadd.f32 %v5099, %v5100
      %v5102 = vsel %vm1344, %v4328, 0.0
      %v5103 = vadd.f32 %v5101, %v5102
      %v5104 = vsel %vm1344, %v4333, 0.0
      %v5105 = vadd.f32 %v5103, %v5104
      %v5106 = vsel %vm1344, %v4336, 0.0
      %v5107 = vadd.f32 %v5105, %v5106
      %v5108 = vrot.slane %v5107, 4
      %v5109 = vadd.f32 %v5107, %v5108
      %v5110 = vrot.slane %v5109, 2
      %v5111 = vadd.f32 %v5109, %v5110
      %v5112 = vrot.slane %v5111, 1
      %v5113 = vadd.f32 %v5111, %v5112
      %v5114 = vsel %vm1344, %v4341, 0.0
      %v5115 = vsel %vm1344, %v4344, 0.0
      %v5116 = vadd.f32 %v5114, %v5115
      %v5117 = vsel %vm1344, %v4349, 0.0
      %v5118 = vadd.f32 %v5116, %v5117
      %v5119 = vsel %vm1344, %v4352, 0.0
      %v5120 = vadd.f32 %v5118, %v5119
      %v5121 = vsel %vm1344, %v4357, 0.0
      %v5122 = vadd.f32 %v5120, %v5121
      %v5123 = vsel %vm1344, %v4360, 0.0
      %v5124 = vadd.f32 %v5122, %v5123
      %v5125 = vsel %vm1344, %v4365, 0.0
      %v5126 = vadd.f32 %v5124, %v5125
      %v5127 = vsel %vm1344, %v4368, 0.0
      %v5128 = vadd.f32 %v5126, %v5127
      %v5129 = vrot.slane %v5128, 4
      %v5130 = vadd.f32 %v5128, %v5129
      %v5131 = vrot.slane %v5130, 2
      %v5132 = vadd.f32 %v5130, %v5131
      %v5133 = vrot.slane %v5132, 1
      %v5134 = vadd.f32 %v5132, %v5133
      %v5135 = vsel %vm1344, %v4373, 0.0
      %v5136 = vsel %vm1344, %v4376, 0.0
      %v5137 = vadd.f32 %v5135, %v5136
      %v5138 = vsel %vm1344, %v4381, 0.0
      %v5139 = vadd.f32 %v5137, %v5138
      %v5140 = vsel %vm1344, %v4384, 0.0
      %v5141 = vadd.f32 %v5139, %v5140
      %v5142 = vsel %vm1344, %v4389, 0.0
      %v5143 = vadd.f32 %v5141, %v5142
      %v5144 = vsel %vm1344, %v4392, 0.0
      %v5145 = vadd.f32 %v5143, %v5144
      %v5146 = vsel %vm1344, %v4397, 0.0
      %v5147 = vadd.f32 %v5145, %v5146
      %v5148 = vsel %vm1344, %v4400, 0.0
      %v5149 = vadd.f32 %v5147, %v5148
      %v5150 = vrot.slane %v5149, 4
      %v5151 = vadd.f32 %v5149, %v5150
      %v5152 = vrot.slane %v5151, 2
      %v5153 = vadd.f32 %v5151, %v5152
      %v5154 = vrot.slane %v5153, 1
      %v5155 = vadd.f32 %v5153, %v5154
      %v5156 = vsel %vm1344, %v4405, 0.0
      %v5157 = vsel %vm1344, %v4408, 0.0
      %v5158 = vadd.f32 %v5156, %v5157
      %v5159 = vsel %vm1344, %v4413, 0.0
      %v5160 = vadd.f32 %v5158, %v5159
      %v5161 = vsel %vm1344, %v4416, 0.0
      %v5162 = vadd.f32 %v5160, %v5161
      %v5163 = vsel %vm1344, %v4421, 0.0
      %v5164 = vadd.f32 %v5162, %v5163
      %v5165 = vsel %vm1344, %v4424, 0.0
      %v5166 = vadd.f32 %v5164, %v5165
      %v5167 = vsel %vm1344, %v4429, 0.0
      %v5168 = vadd.f32 %v5166, %v5167
      %v5169 = vsel %vm1344, %v4432, 0.0
      %v5170 = vadd.f32 %v5168, %v5169
      %v5171 = vrot.slane %v5170, 4
      %v5172 = vadd.f32 %v5170, %v5171
      %v5173 = vrot.slane %v5172, 2
      %v5174 = vadd.f32 %v5172, %v5173
      %v5175 = vrot.slane %v5174, 1
      %v5176 = vadd.f32 %v5174, %v5175
      %v5177 = vsel %vm1344, %v4437, 0.0
      %v5178 = vsel %vm1344, %v4440, 0.0
      %v5179 = vadd.f32 %v5177, %v5178
      %v5180 = vsel %vm1344, %v4445, 0.0
      %v5181 = vadd.f32 %v5179, %v5180
      %v5182 = vsel %vm1344, %v4448, 0.0
      %v5183 = vadd.f32 %v5181, %v5182
      %v5184 = vsel %vm1344, %v4453, 0.0
      %v5185 = vadd.f32 %v5183, %v5184
      %v5186 = vsel %vm1344, %v4456, 0.0
      %v5187 = vadd.f32 %v5185, %v5186
      %v5188 = vsel %vm1344, %v4461, 0.0
      %v5189 = vadd.f32 %v5187, %v5188
      %v5190 = vsel %vm1344, %v4464, 0.0
      %v5191 = vadd.f32 %v5189, %v5190
      %v5192 = vrot.slane %v5191, 4
      %v5193 = vadd.f32 %v5191, %v5192
      %v5194 = vrot.slane %v5193, 2
      %v5195 = vadd.f32 %v5193, %v5194
      %v5196 = vrot.slane %v5195, 1
      %v5197 = vadd.f32 %v5195, %v5196
      %v5198 = vsel %vm1344, %v4469, 0.0
      %v5199 = vsel %vm1344, %v4472, 0.0
      %v5200 = vadd.f32 %v5198, %v5199
      %v5201 = vsel %vm1344, %v4477, 0.0
      %v5202 = vadd.f32 %v5200, %v5201
      %v5203 = vsel %vm1344, %v4480, 0.0
      %v5204 = vadd.f32 %v5202, %v5203
      %v5205 = vsel %vm1344, %v4485, 0.0
      %v5206 = vadd.f32 %v5204, %v5205
      %v5207 = vsel %vm1344, %v4488, 0.0
      %v5208 = vadd.f32 %v5206, %v5207
      %v5209 = vsel %vm1344, %v4493, 0.0
      %v5210 = vadd.f32 %v5208, %v5209
      %v5211 = vsel %vm1344, %v4496, 0.0
      %v5212 = vadd.f32 %v5210, %v5211
      %v5213 = vrot.slane %v5212, 4
      %v5214 = vadd.f32 %v5212, %v5213
      %v5215 = vrot.slane %v5214, 2
      %v5216 = vadd.f32 %v5214, %v5215
      %v5217 = vrot.slane %v5216, 1
      %v5218 = vadd.f32 %v5216, %v5217
      %v5219 = vsel %vm1344, %v4501, 0.0
      %v5220 = vsel %vm1344, %v4504, 0.0
      %v5221 = vadd.f32 %v5219, %v5220
      %v5222 = vsel %vm1344, %v4509, 0.0
      %v5223 = vadd.f32 %v5221, %v5222
      %v5224 = vsel %vm1344, %v4512, 0.0
      %v5225 = vadd.f32 %v5223, %v5224
      %v5226 = vsel %vm1344, %v4517, 0.0
      %v5227 = vadd.f32 %v5225, %v5226
      %v5228 = vsel %vm1344, %v4520, 0.0
      %v5229 = vadd.f32 %v5227, %v5228
      %v5230 = vsel %vm1344, %v4525, 0.0
      %v5231 = vadd.f32 %v5229, %v5230
      %v5232 = vsel %vm1344, %v4528, 0.0
      %v5233 = vadd.f32 %v5231, %v5232
      %v5234 = vrot.slane %v5233, 4
      %v5235 = vadd.f32 %v5233, %v5234
      %v5236 = vrot.slane %v5235, 2
      %v5237 = vadd.f32 %v5235, %v5236
      %v5238 = vrot.slane %v5237, 1
      %v5239 = vadd.f32 %v5237, %v5238
      %v5240 = vsel %vm1344, %v4533, 0.0
      %v5241 = vsel %vm1344, %v4536, 0.0
      %v5242 = vadd.f32 %v5240, %v5241
      %v5243 = vsel %vm1344, %v4541, 0.0
      %v5244 = vadd.f32 %v5242, %v5243
      %v5245 = vsel %vm1344, %v4544, 0.0
      %v5246 = vadd.f32 %v5244, %v5245
      %v5247 = vsel %vm1344, %v4549, 0.0
      %v5248 = vadd.f32 %v5246, %v5247
      %v5249 = vsel %vm1344, %v4552, 0.0
      %v5250 = vadd.f32 %v5248, %v5249
      %v5251 = vsel %vm1344, %v4557, 0.0
      %v5252 = vadd.f32 %v5250, %v5251
      %v5253 = vsel %vm1344, %v4560, 0.0
      %v5254 = vadd.f32 %v5252, %v5253
      %v5255 = vrot.slane %v5254, 4
      %v5256 = vadd.f32 %v5254, %v5255
      %v5257 = vrot.slane %v5256, 2
      %v5258 = vadd.f32 %v5256, %v5257
      %v5259 = vrot.slane %v5258, 1
      %v5260 = vadd.f32 %v5258, %v5259
      %v5261 = vsel %vm1344, %v4565, 0.0
      %v5262 = vsel %vm1344, %v4568, 0.0
      %v5263 = vadd.f32 %v5261, %v5262
      %v5264 = vsel %vm1344, %v4573, 0.0
      %v5265 = vadd.f32 %v5263, %v5264
      %v5266 = vsel %vm1344, %v4576, 0.0
      %v5267 = vadd.f32 %v5265, %v5266
      %v5268 = vsel %vm1344, %v4581, 0.0
      %v5269 = vadd.f32 %v5267, %v5268
      %v5270 = vsel %vm1344, %v4584, 0.0
      %v5271 = vadd.f32 %v5269, %v5270
      %v5272 = vsel %vm1344, %v4589, 0.0
      %v5273 = vadd.f32 %v5271, %v5272
      %v5274 = vsel %vm1344, %v4592, 0.0
      %v5275 = vadd.f32 %v5273, %v5274
      %v5276 = vrot.slane %v5275, 4
      %v5277 = vadd.f32 %v5275, %v5276
      %v5278 = vrot.slane %v5277, 2
      %v5279 = vadd.f32 %v5277, %v5278
      %v5280 = vrot.slane %v5279, 1
      %v5281 = vadd.f32 %v5279, %v5280
      %v5282 = vsel %vm1344, %v4597, 0.0
      %v5283 = vsel %vm1344, %v4600, 0.0
      %v5284 = vadd.f32 %v5282, %v5283
      %v5285 = vsel %vm1344, %v4605, 0.0
      %v5286 = vadd.f32 %v5284, %v5285
      %v5287 = vsel %vm1344, %v4608, 0.0
      %v5288 = vadd.f32 %v5286, %v5287
      %v5289 = vsel %vm1344, %v4613, 0.0
      %v5290 = vadd.f32 %v5288, %v5289
      %v5291 = vsel %vm1344, %v4616, 0.0
      %v5292 = vadd.f32 %v5290, %v5291
      %v5293 = vsel %vm1344, %v4621, 0.0
      %v5294 = vadd.f32 %v5292, %v5293
      %v5295 = vsel %vm1344, %v4624, 0.0
      %v5296 = vadd.f32 %v5294, %v5295
      %v5297 = vrot.slane %v5296, 4
      %v5298 = vadd.f32 %v5296, %v5297
      %v5299 = vrot.slane %v5298, 2
      %v5300 = vadd.f32 %v5298, %v5299
      %v5301 = vrot.slane %v5300, 1
      %v5302 = vadd.f32 %v5300, %v5301
      %vm5335 = vcmask 1041409
      %v5336 = vsel %vm5335, %v4672, %v4651
      %vm5337 = vcmask 1042434
      %v5338 = vsel %vm5337, %v4693, %v5336
      %vm5339 = vcmask 1043459
      %v5340 = vsel %vm5339, %v4714, %v5338
      %vm5341 = vcmask 1044484
      %v5342 = vsel %vm5341, %v4735, %v5340
      %vm5343 = vcmask 1045509
      %v5344 = vsel %vm5343, %v4756, %v5342
      %vm5345 = vcmask 1046534
      %v5346 = vsel %vm5345, %v4777, %v5344
      %vm5347 = vcmask 1047559
      %v5348 = vsel %vm5347, %v4798, %v5346
      %v5349 = vsel %vm5335, %v4840, %v4819
      %v5350 = vsel %vm5337, %v4861, %v5349
      %v5351 = vsel %vm5339, %v4882, %v5350
      %v5352 = vsel %vm5341, %v4903, %v5351
      %v5353 = vsel %vm5343, %v4924, %v5352
      %v5354 = vsel %vm5345, %v4945, %v5353
      %v5355 = vsel %vm5347, %v4966, %v5354
      %v5356 = vsel %vm5335, %v5008, %v4987
      %v5357 = vsel %vm5337, %v5029, %v5356
      %v5358 = vsel %vm5339, %v5050, %v5357
      %v5359 = vsel %vm5341, %v5071, %v5358
      %v5360 = vsel %vm5343, %v5092, %v5359
      %v5361 = vsel %vm5345, %v5113, %v5360
      %v5362 = vsel %vm5347, %v5134, %v5361
      %v5363 = vsel %vm5335, %v5176, %v5155
      %v5364 = vsel %vm5337, %v5197, %v5363
      %v5365 = vsel %vm5339, %v5218, %v5364
      %v5366 = vsel %vm5341, %v5239, %v5365
      %v5367 = vsel %vm5343, %v5260, %v5366
      %v5368 = vsel %vm5345, %v5281, %v5367
      %v5369 = vsel %vm5347, %v5302, %v5368
      %v5374 = vadd.f32 %v4627, %v5348
      %v5375 = vadd.f32 %v4628, %v5355
      %v5376 = vadd.f32 %v4629, %v5362
      %v5377 = vadd.f32 %v4630, %v5369
      %5378 = vst.msk [vmem:[#allocation2] sm:$0xff] %vm1344, %v5374
      %5379 = vst.msk [vmem:[#allocation2 + $0x8] sm:$0xff] %vm1344, %v5375
      %5380 = vst.msk [vmem:[#allocation2 + $0x10] sm:$0xff] %vm1344, %v5376
      %5381 = vst.msk [vmem:[#allocation2 + $0x18] sm:$0xff] %vm1344, %v5377
      %v5382 = vld [vmem:[#allocation3] sm:$0xff]
      %v5383 = vld [vmem:[#allocation3 + $0x8] sm:$0xff]
      %v5384 = vld [vmem:[#allocation3 + $0x10] sm:$0xff]
      %v5385 = vld [vmem:[#allocation3 + $0x18] sm:$0xff]
      %v5386 = vsel %vm1344, %v3605, -inf
      %v5387 = vsel %vm1344, %v3608, -inf
      %v5388 = vmax.f32 %v5386, %v5387
      %v5389 = vsel %vm1344, %v3613, -inf
      %v5390 = vmax.f32 %v5388, %v5389
      %v5391 = vsel %vm1344, %v3616, -inf
      %v5392 = vmax.f32 %v5390, %v5391
      %v5393 = vsel %vm1344, %v3621, -inf
      %v5394 = vmax.f32 %v5392, %v5393
      %v5395 = vsel %vm1344, %v3624, -inf
      %v5396 = vmax.f32 %v5394, %v5395
      %v5397 = vsel %vm1344, %v3629, -inf
      %v5398 = vmax.f32 %v5396, %v5397
      %v5399 = vsel %vm1344, %v3632, -inf
      %v5400 = vmax.f32 %v5398, %v5399
      %v5401 = vrot.slane %v5400, 4
      %v5402 = vmax.f32 %v5400, %v5401
      %v5403 = vrot.slane %v5402, 2
      %v5404 = vmax.f32 %v5402, %v5403
      %v5405 = vrot.slane %v5404, 1
      %v5406 = vmax.f32 %v5404, %v5405
      %v5407 = vsel %vm1344, %v3637, -inf
      %v5408 = vsel %vm1344, %v3640, -inf
      %v5409 = vmax.f32 %v5407, %v5408
      %v5410 = vsel %vm1344, %v3645, -inf
      %v5411 = vmax.f32 %v5409, %v5410
      %v5412 = vsel %vm1344, %v3648, -inf
      %v5413 = vmax.f32 %v5411, %v5412
      %v5414 = vsel %vm1344, %v3653, -inf
      %v5415 = vmax.f32 %v5413, %v5414
      %v5416 = vsel %vm1344, %v3656, -inf
      %v5417 = vmax.f32 %v5415, %v5416
      %v5418 = vsel %vm1344, %v3661, -inf
      %v5419 = vmax.f32 %v5417, %v5418
      %v5420 = vsel %vm1344, %v3664, -inf
      %v5421 = vmax.f32 %v5419, %v5420
      %v5422 = vrot.slane %v5421, 4
      %v5423 = vmax.f32 %v5421, %v5422
      %v5424 = vrot.slane %v5423, 2
      %v5425 = vmax.f32 %v5423, %v5424
      %v5426 = vrot.slane %v5425, 1
      %v5427 = vmax.f32 %v5425, %v5426
      %v5428 = vsel %vm1344, %v3669, -inf
      %v5429 = vsel %vm1344, %v3672, -inf
      %v5430 = vmax.f32 %v5428, %v5429
      %v5431 = vsel %vm1344, %v3677, -inf
      %v5432 = vmax.f32 %v5430, %v5431
      %v5433 = vsel %vm1344, %v3680, -inf
      %v5434 = vmax.f32 %v5432, %v5433
      %v5435 = vsel %vm1344, %v3685, -inf
      %v5436 = vmax.f32 %v5434, %v5435
      %v5437 = vsel %vm1344, %v3688, -inf
      %v5438 = vmax.f32 %v5436, %v5437
      %v5439 = vsel %vm1344, %v3693, -inf
      %v5440 = vmax.f32 %v5438, %v5439
      %v5441 = vsel %vm1344, %v3696, -inf
      %v5442 = vmax.f32 %v5440, %v5441
      %v5443 = vrot.slane %v5442, 4
      %v5444 = vmax.f32 %v5442, %v5443
      %v5445 = vrot.slane %v5444, 2
      %v5446 = vmax.f32 %v5444, %v5445
      %v5447 = vrot.slane %v5446, 1
      %v5448 = vmax.f32 %v5446, %v5447
      %v5449 = vsel %vm1344, %v3701, -inf
      %v5450 = vsel %vm1344, %v3704, -inf
      %v5451 = vmax.f32 %v5449, %v5450
      %v5452 = vsel %vm1344, %v3709, -inf
      %v5453 = vmax.f32 %v5451, %v5452
      %v5454 = vsel %vm1344, %v3712, -inf
      %v5455 = vmax.f32 %v5453, %v5454
      %v5456 = vsel %vm1344, %v3717, -inf
      %v5457 = vmax.f32 %v5455, %v5456
      %v5458 = vsel %vm1344, %v3720, -inf
      %v5459 = vmax.f32 %v5457, %v5458
      %v5460 = vsel %vm1344, %v3725, -inf
      %v5461 = vmax.f32 %v5459, %v5460
      %v5462 = vsel %vm1344, %v3728, -inf
      %v5463 = vmax.f32 %v5461, %v5462
      %v5464 = vrot.slane %v5463, 4
      %v5465 = vmax.f32 %v5463, %v5464
      %v5466 = vrot.slane %v5465, 2
      %v5467 = vmax.f32 %v5465, %v5466
      %v5468 = vrot.slane %v5467, 1
      %v5469 = vmax.f32 %v5467, %v5468
      %v5470 = vsel %vm1344, %v3733, -inf
      %v5471 = vsel %vm1344, %v3736, -inf
      %v5472 = vmax.f32 %v5470, %v5471
      %v5473 = vsel %vm1344, %v3741, -inf
      %v5474 = vmax.f32 %v5472, %v5473
      %v5475 = vsel %vm1344, %v3744, -inf
      %v5476 = vmax.f32 %v5474, %v5475
      %v5477 = vsel %vm1344, %v3749, -inf
      %v5478 = vmax.f32 %v5476, %v5477
      %v5479 = vsel %vm1344, %v3752, -inf
      %v5480 = vmax.f32 %v5478, %v5479
      %v5481 = vsel %vm1344, %v3757, -inf
      %v5482 = vmax.f32 %v5480, %v5481
      %v5483 = vsel %vm1344, %v3760, -inf
      %v5484 = vmax.f32 %v5482, %v5483
      %v5485 = vrot.slane %v5484, 4
      %v5486 = vmax.f32 %v5484, %v5485
      %v5487 = vrot.slane %v5486, 2
      %v5488 = vmax.f32 %v5486, %v5487
      %v5489 = vrot.slane %v5488, 1
      %v5490 = vmax.f32 %v5488, %v5489
      %v5491 = vsel %vm1344, %v3765, -inf
      %v5492 = vsel %vm1344, %v3768, -inf
      %v5493 = vmax.f32 %v5491, %v5492
      %v5494 = vsel %vm1344, %v3773, -inf
      %v5495 = vmax.f32 %v5493, %v5494
      %v5496 = vsel %vm1344, %v3776, -inf
      %v5497 = vmax.f32 %v5495, %v5496
      %v5498 = vsel %vm1344, %v3781, -inf
      %v5499 = vmax.f32 %v5497, %v5498
      %v5500 = vsel %vm1344, %v3784, -inf
      %v5501 = vmax.f32 %v5499, %v5500
      %v5502 = vsel %vm1344, %v3789, -inf
      %v5503 = vmax.f32 %v5501, %v5502
      %v5504 = vsel %vm1344, %v3792, -inf
      %v5505 = vmax.f32 %v5503, %v5504
      %v5506 = vrot.slane %v5505, 4
      %v5507 = vmax.f32 %v5505, %v5506
      %v5508 = vrot.slane %v5507, 2
      %v5509 = vmax.f32 %v5507, %v5508
      %v5510 = vrot.slane %v5509, 1
      %v5511 = vmax.f32 %v5509, %v5510
      %v5512 = vsel %vm1344, %v3797, -inf
      %v5513 = vsel %vm1344, %v3800, -inf
      %v5514 = vmax.f32 %v5512, %v5513
      %v5515 = vsel %vm1344, %v3805, -inf
      %v5516 = vmax.f32 %v5514, %v5515
      %v5517 = vsel %vm1344, %v3808, -inf
      %v5518 = vmax.f32 %v5516, %v5517
      %v5519 = vsel %vm1344, %v3813, -inf
      %v5520 = vmax.f32 %v5518, %v5519
      %v5521 = vsel %vm1344, %v3816, -inf
      %v5522 = vmax.f32 %v5520, %v5521
      %v5523 = vsel %vm1344, %v3821, -inf
      %v5524 = vmax.f32 %v5522, %v5523
      %v5525 = vsel %vm1344, %v3824, -inf
      %v5526 = vmax.f32 %v5524, %v5525
      %v5527 = vrot.slane %v5526, 4
      %v5528 = vmax.f32 %v5526, %v5527
      %v5529 = vrot.slane %v5528, 2
      %v5530 = vmax.f32 %v5528, %v5529
      %v5531 = vrot.slane %v5530, 1
      %v5532 = vmax.f32 %v5530, %v5531
      %v5533 = vsel %vm1344, %v3829, -inf
      %v5534 = vsel %vm1344, %v3832, -inf
      %v5535 = vmax.f32 %v5533, %v5534
      %v5536 = vsel %vm1344, %v3837, -inf
      %v5537 = vmax.f32 %v5535, %v5536
      %v5538 = vsel %vm1344, %v3840, -inf
      %v5539 = vmax.f32 %v5537, %v5538
      %v5540 = vsel %vm1344, %v3845, -inf
      %v5541 = vmax.f32 %v5539, %v5540
      %v5542 = vsel %vm1344, %v3848, -inf
      %v5543 = vmax.f32 %v5541, %v5542
      %v5544 = vsel %vm1344, %v3853, -inf
      %v5545 = vmax.f32 %v5543, %v5544
      %v5546 = vsel %vm1344, %v3856, -inf
      %v5547 = vmax.f32 %v5545, %v5546
      %v5548 = vrot.slane %v5547, 4
      %v5549 = vmax.f32 %v5547, %v5548
      %v5550 = vrot.slane %v5549, 2
      %v5551 = vmax.f32 %v5549, %v5550
      %v5552 = vrot.slane %v5551, 1
      %v5553 = vmax.f32 %v5551, %v5552
      %v5554 = vsel %vm1344, %v3861, -inf
      %v5555 = vsel %vm1344, %v3864, -inf
      %v5556 = vmax.f32 %v5554, %v5555
      %v5557 = vsel %vm1344, %v3869, -inf
      %v5558 = vmax.f32 %v5556, %v5557
      %v5559 = vsel %vm1344, %v3872, -inf
      %v5560 = vmax.f32 %v5558, %v5559
      %v5561 = vsel %vm1344, %v3877, -inf
      %v5562 = vmax.f32 %v5560, %v5561
      %v5563 = vsel %vm1344, %v3880, -inf
      %v5564 = vmax.f32 %v5562, %v5563
      %v5565 = vsel %vm1344, %v3885, -inf
      %v5566 = vmax.f32 %v5564, %v5565
      %v5567 = vsel %vm1344, %v3888, -inf
      %v5568 = vmax.f32 %v5566, %v5567
      %v5569 = vrot.slane %v5568, 4
      %v5570 = vmax.f32 %v5568, %v5569
      %v5571 = vrot.slane %v5570, 2
      %v5572 = vmax.f32 %v5570, %v5571
      %v5573 = vrot.slane %v5572, 1
      %v5574 = vmax.f32 %v5572, %v5573
      %v5575 = vsel %vm1344, %v3893, -inf
      %v5576 = vsel %vm1344, %v3896, -inf
      %v5577 = vmax.f32 %v5575, %v5576
      %v5578 = vsel %vm1344, %v3901, -inf
      %v5579 = vmax.f32 %v5577, %v5578
      %v5580 = vsel %vm1344, %v3904, -inf
      %v5581 = vmax.f32 %v5579, %v5580
      %v5582 = vsel %vm1344, %v3909, -inf
      %v5583 = vmax.f32 %v5581, %v5582
      %v5584 = vsel %vm1344, %v3912, -inf
      %v5585 = vmax.f32 %v5583, %v5584
      %v5586 = vsel %vm1344, %v3917, -inf
      %v5587 = vmax.f32 %v5585, %v5586
      %v5588 = vsel %vm1344, %v3920, -inf
      %v5589 = vmax.f32 %v5587, %v5588
      %v5590 = vrot.slane %v5589, 4
      %v5591 = vmax.f32 %v5589, %v5590
      %v5592 = vrot.slane %v5591, 2
      %v5593 = vmax.f32 %v5591, %v5592
      %v5594 = vrot.slane %v5593, 1
      %v5595 = vmax.f32 %v5593, %v5594
      %v5596 = vsel %vm1344, %v3925, -inf
      %v5597 = vsel %vm1344, %v3928, -inf
      %v5598 = vmax.f32 %v5596, %v5597
      %v5599 = vsel %vm1344, %v3933, -inf
      %v5600 = vmax.f32 %v5598, %v5599
      %v5601 = vsel %vm1344, %v3936, -inf
      %v5602 = vmax.f32 %v5600, %v5601
      %v5603 = vsel %vm1344, %v3941, -inf
      %v5604 = vmax.f32 %v5602, %v5603
      %v5605 = vsel %vm1344, %v3944, -inf
      %v5606 = vmax.f32 %v5604, %v5605
      %v5607 = vsel %vm1344, %v3949, -inf
      %v5608 = vmax.f32 %v5606, %v5607
      %v5609 = vsel %vm1344, %v3952, -inf
      %v5610 = vmax.f32 %v5608, %v5609
      %v5611 = vrot.slane %v5610, 4
      %v5612 = vmax.f32 %v5610, %v5611
      %v5613 = vrot.slane %v5612, 2
      %v5614 = vmax.f32 %v5612, %v5613
      %v5615 = vrot.slane %v5614, 1
      %v5616 = vmax.f32 %v5614, %v5615
      %v5617 = vsel %vm1344, %v3957, -inf
      %v5618 = vsel %vm1344, %v3960, -inf
      %v5619 = vmax.f32 %v5617, %v5618
      %v5620 = vsel %vm1344, %v3965, -inf
      %v5621 = vmax.f32 %v5619, %v5620
      %v5622 = vsel %vm1344, %v3968, -inf
      %v5623 = vmax.f32 %v5621, %v5622
      %v5624 = vsel %vm1344, %v3973, -inf
      %v5625 = vmax.f32 %v5623, %v5624
      %v5626 = vsel %vm1344, %v3976, -inf
      %v5627 = vmax.f32 %v5625, %v5626
      %v5628 = vsel %vm1344, %v3981, -inf
      %v5629 = vmax.f32 %v5627, %v5628
      %v5630 = vsel %vm1344, %v3984, -inf
      %v5631 = vmax.f32 %v5629, %v5630
      %v5632 = vrot.slane %v5631, 4
      %v5633 = vmax.f32 %v5631, %v5632
      %v5634 = vrot.slane %v5633, 2
      %v5635 = vmax.f32 %v5633, %v5634
      %v5636 = vrot.slane %v5635, 1
      %v5637 = vmax.f32 %v5635, %v5636
      %v5638 = vsel %vm1344, %v3989, -inf
      %v5639 = vsel %vm1344, %v3992, -inf
      %v5640 = vmax.f32 %v5638, %v5639
      %v5641 = vsel %vm1344, %v3997, -inf
      %v5642 = vmax.f32 %v5640, %v5641
      %v5643 = vsel %vm1344, %v4000, -inf
      %v5644 = vmax.f32 %v5642, %v5643
      %v5645 = vsel %vm1344, %v4005, -inf
      %v5646 = vmax.f32 %v5644, %v5645
      %v5647 = vsel %vm1344, %v4008, -inf
      %v5648 = vmax.f32 %v5646, %v5647
      %v5649 = vsel %vm1344, %v4013, -inf
      %v5650 = vmax.f32 %v5648, %v5649
      %v5651 = vsel %vm1344, %v4016, -inf
      %v5652 = vmax.f32 %v5650, %v5651
      %v5653 = vrot.slane %v5652, 4
      %v5654 = vmax.f32 %v5652, %v5653
      %v5655 = vrot.slane %v5654, 2
      %v5656 = vmax.f32 %v5654, %v5655
      %v5657 = vrot.slane %v5656, 1
      %v5658 = vmax.f32 %v5656, %v5657
      %v5659 = vsel %vm1344, %v4021, -inf
      %v5660 = vsel %vm1344, %v4024, -inf
      %v5661 = vmax.f32 %v5659, %v5660
      %v5662 = vsel %vm1344, %v4029, -inf
      %v5663 = vmax.f32 %v5661, %v5662
      %v5664 = vsel %vm1344, %v4032, -inf
      %v5665 = vmax.f32 %v5663, %v5664
      %v5666 = vsel %vm1344, %v4037, -inf
      %v5667 = vmax.f32 %v5665, %v5666
      %v5668 = vsel %vm1344, %v4040, -inf
      %v5669 = vmax.f32 %v5667, %v5668
      %v5670 = vsel %vm1344, %v4045, -inf
      %v5671 = vmax.f32 %v5669, %v5670
      %v5672 = vsel %vm1344, %v4048, -inf
      %v5673 = vmax.f32 %v5671, %v5672
      %v5674 = vrot.slane %v5673, 4
      %v5675 = vmax.f32 %v5673, %v5674
      %v5676 = vrot.slane %v5675, 2
      %v5677 = vmax.f32 %v5675, %v5676
      %v5678 = vrot.slane %v5677, 1
      %v5679 = vmax.f32 %v5677, %v5678
      %v5680 = vsel %vm1344, %v4053, -inf
      %v5681 = vsel %vm1344, %v4056, -inf
      %v5682 = vmax.f32 %v5680, %v5681
      %v5683 = vsel %vm1344, %v4061, -inf
      %v5684 = vmax.f32 %v5682, %v5683
      %v5685 = vsel %vm1344, %v4064, -inf
      %v5686 = vmax.f32 %v5684, %v5685
      %v5687 = vsel %vm1344, %v4069, -inf
      %v5688 = vmax.f32 %v5686, %v5687
      %v5689 = vsel %vm1344, %v4072, -inf
      %v5690 = vmax.f32 %v5688, %v5689
      %v5691 = vsel %vm1344, %v4077, -inf
      %v5692 = vmax.f32 %v5690, %v5691
      %v5693 = vsel %vm1344, %v4080, -inf
      %v5694 = vmax.f32 %v5692, %v5693
      %v5695 = vrot.slane %v5694, 4
      %v5696 = vmax.f32 %v5694, %v5695
      %v5697 = vrot.slane %v5696, 2
      %v5698 = vmax.f32 %v5696, %v5697
      %v5699 = vrot.slane %v5698, 1
      %v5700 = vmax.f32 %v5698, %v5699
      %v5701 = vsel %vm1344, %v4085, -inf
      %v5702 = vsel %vm1344, %v4088, -inf
      %v5703 = vmax.f32 %v5701, %v5702
      %v5704 = vsel %vm1344, %v4093, -inf
      %v5705 = vmax.f32 %v5703, %v5704
      %v5706 = vsel %vm1344, %v4096, -inf
      %v5707 = vmax.f32 %v5705, %v5706
      %v5708 = vsel %vm1344, %v4101, -inf
      %v5709 = vmax.f32 %v5707, %v5708
      %v5710 = vsel %vm1344, %v4104, -inf
      %v5711 = vmax.f32 %v5709, %v5710
      %v5712 = vsel %vm1344, %v4109, -inf
      %v5713 = vmax.f32 %v5711, %v5712
      %v5714 = vsel %vm1344, %v4112, -inf
      %v5715 = vmax.f32 %v5713, %v5714
      %v5716 = vrot.slane %v5715, 4
      %v5717 = vmax.f32 %v5715, %v5716
      %v5718 = vrot.slane %v5717, 2
      %v5719 = vmax.f32 %v5717, %v5718
      %v5720 = vrot.slane %v5719, 1
      %v5721 = vmax.f32 %v5719, %v5720
      %v5722 = vsel %vm1344, %v4117, -inf
      %v5723 = vsel %vm1344, %v4120, -inf
      %v5724 = vmax.f32 %v5722, %v5723
      %v5725 = vsel %vm1344, %v4125, -inf
      %v5726 = vmax.f32 %v5724, %v5725
      %v5727 = vsel %vm1344, %v4128, -inf
      %v5728 = vmax.f32 %v5726, %v5727
      %v5729 = vsel %vm1344, %v4133, -inf
      %v5730 = vmax.f32 %v5728, %v5729
      %v5731 = vsel %vm1344, %v4136, -inf
      %v5732 = vmax.f32 %v5730, %v5731
      %v5733 = vsel %vm1344, %v4141, -inf
      %v5734 = vmax.f32 %v5732, %v5733
      %v5735 = vsel %vm1344, %v4144, -inf
      %v5736 = vmax.f32 %v5734, %v5735
      %v5737 = vrot.slane %v5736, 4
      %v5738 = vmax.f32 %v5736, %v5737
      %v5739 = vrot.slane %v5738, 2
      %v5740 = vmax.f32 %v5738, %v5739
      %v5741 = vrot.slane %v5740, 1
      %v5742 = vmax.f32 %v5740, %v5741
      %v5743 = vsel %vm1344, %v4149, -inf
      %v5744 = vsel %vm1344, %v4152, -inf
      %v5745 = vmax.f32 %v5743, %v5744
      %v5746 = vsel %vm1344, %v4157, -inf
      %v5747 = vmax.f32 %v5745, %v5746
      %v5748 = vsel %vm1344, %v4160, -inf
      %v5749 = vmax.f32 %v5747, %v5748
      %v5750 = vsel %vm1344, %v4165, -inf
      %v5751 = vmax.f32 %v5749, %v5750
      %v5752 = vsel %vm1344, %v4168, -inf
      %v5753 = vmax.f32 %v5751, %v5752
      %v5754 = vsel %vm1344, %v4173, -inf
      %v5755 = vmax.f32 %v5753, %v5754
      %v5756 = vsel %vm1344, %v4176, -inf
      %v5757 = vmax.f32 %v5755, %v5756
      %v5758 = vrot.slane %v5757, 4
      %v5759 = vmax.f32 %v5757, %v5758
      %v5760 = vrot.slane %v5759, 2
      %v5761 = vmax.f32 %v5759, %v5760
      %v5762 = vrot.slane %v5761, 1
      %v5763 = vmax.f32 %v5761, %v5762
      %v5764 = vsel %vm1344, %v4181, -inf
      %v5765 = vsel %vm1344, %v4184, -inf
      %v5766 = vmax.f32 %v5764, %v5765
      %v5767 = vsel %vm1344, %v4189, -inf
      %v5768 = vmax.f32 %v5766, %v5767
      %v5769 = vsel %vm1344, %v4192, -inf
      %v5770 = vmax.f32 %v5768, %v5769
      %v5771 = vsel %vm1344, %v4197, -inf
      %v5772 = vmax.f32 %v5770, %v5771
      %v5773 = vsel %vm1344, %v4200, -inf
      %v5774 = vmax.f32 %v5772, %v5773
      %v5775 = vsel %vm1344, %v4205, -inf
      %v5776 = vmax.f32 %v5774, %v5775
      %v5777 = vsel %vm1344, %v4208, -inf
      %v5778 = vmax.f32 %v5776, %v5777
      %v5779 = vrot.slane %v5778, 4
      %v5780 = vmax.f32 %v5778, %v5779
      %v5781 = vrot.slane %v5780, 2
      %v5782 = vmax.f32 %v5780, %v5781
      %v5783 = vrot.slane %v5782, 1
      %v5784 = vmax.f32 %v5782, %v5783
      %v5785 = vsel %vm1344, %v4213, -inf
      %v5786 = vsel %vm1344, %v4216, -inf
      %v5787 = vmax.f32 %v5785, %v5786
      %v5788 = vsel %vm1344, %v4221, -inf
      %v5789 = vmax.f32 %v5787, %v5788
      %v5790 = vsel %vm1344, %v4224, -inf
      %v5791 = vmax.f32 %v5789, %v5790
      %v5792 = vsel %vm1344, %v4229, -inf
      %v5793 = vmax.f32 %v5791, %v5792
      %v5794 = vsel %vm1344, %v4232, -inf
      %v5795 = vmax.f32 %v5793, %v5794
      %v5796 = vsel %vm1344, %v4237, -inf
      %v5797 = vmax.f32 %v5795, %v5796
      %v5798 = vsel %vm1344, %v4240, -inf
      %v5799 = vmax.f32 %v5797, %v5798
      %v5800 = vrot.slane %v5799, 4
      %v5801 = vmax.f32 %v5799, %v5800
      %v5802 = vrot.slane %v5801, 2
      %v5803 = vmax.f32 %v5801, %v5802
      %v5804 = vrot.slane %v5803, 1
      %v5805 = vmax.f32 %v5803, %v5804
      %v5806 = vsel %vm1344, %v4245, -inf
      %v5807 = vsel %vm1344, %v4248, -inf
      %v5808 = vmax.f32 %v5806, %v5807
      %v5809 = vsel %vm1344, %v4253, -inf
      %v5810 = vmax.f32 %v5808, %v5809
      %v5811 = vsel %vm1344, %v4256, -inf
      %v5812 = vmax.f32 %v5810, %v5811
      %v5813 = vsel %vm1344, %v4261, -inf
      %v5814 = vmax.f32 %v5812, %v5813
      %v5815 = vsel %vm1344, %v4264, -inf
      %v5816 = vmax.f32 %v5814, %v5815
      %v5817 = vsel %vm1344, %v4269, -inf
      %v5818 = vmax.f32 %v5816, %v5817
      %v5819 = vsel %vm1344, %v4272, -inf
      %v5820 = vmax.f32 %v5818, %v5819
      %v5821 = vrot.slane %v5820, 4
      %v5822 = vmax.f32 %v5820, %v5821
      %v5823 = vrot.slane %v5822, 2
      %v5824 = vmax.f32 %v5822, %v5823
      %v5825 = vrot.slane %v5824, 1
      %v5826 = vmax.f32 %v5824, %v5825
      %v5827 = vsel %vm1344, %v4277, -inf
      %v5828 = vsel %vm1344, %v4280, -inf
      %v5829 = vmax.f32 %v5827, %v5828
      %v5830 = vsel %vm1344, %v4285, -inf
      %v5831 = vmax.f32 %v5829, %v5830
      %v5832 = vsel %vm1344, %v4288, -inf
      %v5833 = vmax.f32 %v5831, %v5832
      %v5834 = vsel %vm1344, %v4293, -inf
      %v5835 = vmax.f32 %v5833, %v5834
      %v5836 = vsel %vm1344, %v4296, -inf
      %v5837 = vmax.f32 %v5835, %v5836
      %v5838 = vsel %vm1344, %v4301, -inf
      %v5839 = vmax.f32 %v5837, %v5838
      %v5840 = vsel %vm1344, %v4304, -inf
      %v5841 = vmax.f32 %v5839, %v5840
      %v5842 = vrot.slane %v5841, 4
      %v5843 = vmax.f32 %v5841, %v5842
      %v5844 = vrot.slane %v5843, 2
      %v5845 = vmax.f32 %v5843, %v5844
      %v5846 = vrot.slane %v5845, 1
      %v5847 = vmax.f32 %v5845, %v5846
      %v5848 = vsel %vm1344, %v4309, -inf
      %v5849 = vsel %vm1344, %v4312, -inf
      %v5850 = vmax.f32 %v5848, %v5849
      %v5851 = vsel %vm1344, %v4317, -inf
      %v5852 = vmax.f32 %v5850, %v5851
      %v5853 = vsel %vm1344, %v4320, -inf
      %v5854 = vmax.f32 %v5852, %v5853
      %v5855 = vsel %vm1344, %v4325, -inf
      %v5856 = vmax.f32 %v5854, %v5855
      %v5857 = vsel %vm1344, %v4328, -inf
      %v5858 = vmax.f32 %v5856, %v5857
      %v5859 = vsel %vm1344, %v4333, -inf
      %v5860 = vmax.f32 %v5858, %v5859
      %v5861 = vsel %vm1344, %v4336, -inf
      %v5862 = vmax.f32 %v5860, %v5861
      %v5863 = vrot.slane %v5862, 4
      %v5864 = vmax.f32 %v5862, %v5863
      %v5865 = vrot.slane %v5864, 2
      %v5866 = vmax.f32 %v5864, %v5865
      %v5867 = vrot.slane %v5866, 1
      %v5868 = vmax.f32 %v5866, %v5867
      %v5869 = vsel %vm1344, %v4341, -inf
      %v5870 = vsel %vm1344, %v4344, -inf
      %v5871 = vmax.f32 %v5869, %v5870
      %v5872 = vsel %vm1344, %v4349, -inf
      %v5873 = vmax.f32 %v5871, %v5872
      %v5874 = vsel %vm1344, %v4352, -inf
      %v5875 = vmax.f32 %v5873, %v5874
      %v5876 = vsel %vm1344, %v4357, -inf
      %v5877 = vmax.f32 %v5875, %v5876
      %v5878 = vsel %vm1344, %v4360, -inf
      %v5879 = vmax.f32 %v5877, %v5878
      %v5880 = vsel %vm1344, %v4365, -inf
      %v5881 = vmax.f32 %v5879, %v5880
      %v5882 = vsel %vm1344, %v4368, -inf
      %v5883 = vmax.f32 %v5881, %v5882
      %v5884 = vrot.slane %v5883, 4
      %v5885 = vmax.f32 %v5883, %v5884
      %v5886 = vrot.slane %v5885, 2
      %v5887 = vmax.f32 %v5885, %v5886
      %v5888 = vrot.slane %v5887, 1
      %v5889 = vmax.f32 %v5887, %v5888
      %v5890 = vsel %vm1344, %v4373, -inf
      %v5891 = vsel %vm1344, %v4376, -inf
      %v5892 = vmax.f32 %v5890, %v5891
      %v5893 = vsel %vm1344, %v4381, -inf
      %v5894 = vmax.f32 %v5892, %v5893
      %v5895 = vsel %vm1344, %v4384, -inf
      %v5896 = vmax.f32 %v5894, %v5895
      %v5897 = vsel %vm1344, %v4389, -inf
      %v5898 = vmax.f32 %v5896, %v5897
      %v5899 = vsel %vm1344, %v4392, -inf
      %v5900 = vmax.f32 %v5898, %v5899
      %v5901 = vsel %vm1344, %v4397, -inf
      %v5902 = vmax.f32 %v5900, %v5901
      %v5903 = vsel %vm1344, %v4400, -inf
      %v5904 = vmax.f32 %v5902, %v5903
      %v5905 = vrot.slane %v5904, 4
      %v5906 = vmax.f32 %v5904, %v5905
      %v5907 = vrot.slane %v5906, 2
      %v5908 = vmax.f32 %v5906, %v5907
      %v5909 = vrot.slane %v5908, 1
      %v5910 = vmax.f32 %v5908, %v5909
      %v5911 = vsel %vm1344, %v4405, -inf
      %v5912 = vsel %vm1344, %v4408, -inf
      %v5913 = vmax.f32 %v5911, %v5912
      %v5914 = vsel %vm1344, %v4413, -inf
      %v5915 = vmax.f32 %v5913, %v5914
      %v5916 = vsel %vm1344, %v4416, -inf
      %v5917 = vmax.f32 %v5915, %v5916
      %v5918 = vsel %vm1344, %v4421, -inf
      %v5919 = vmax.f32 %v5917, %v5918
      %v5920 = vsel %vm1344, %v4424, -inf
      %v5921 = vmax.f32 %v5919, %v5920
      %v5922 = vsel %vm1344, %v4429, -inf
      %v5923 = vmax.f32 %v5921, %v5922
      %v5924 = vsel %vm1344, %v4432, -inf
      %v5925 = vmax.f32 %v5923, %v5924
      %v5926 = vrot.slane %v5925, 4
      %v5927 = vmax.f32 %v5925, %v5926
      %v5928 = vrot.slane %v5927, 2
      %v5929 = vmax.f32 %v5927, %v5928
      %v5930 = vrot.slane %v5929, 1
      %v5931 = vmax.f32 %v5929, %v5930
      %v5932 = vsel %vm1344, %v4437, -inf
      %v5933 = vsel %vm1344, %v4440, -inf
      %v5934 = vmax.f32 %v5932, %v5933
      %v5935 = vsel %vm1344, %v4445, -inf
      %v5936 = vmax.f32 %v5934, %v5935
      %v5937 = vsel %vm1344, %v4448, -inf
      %v5938 = vmax.f32 %v5936, %v5937
      %v5939 = vsel %vm1344, %v4453, -inf
      %v5940 = vmax.f32 %v5938, %v5939
      %v5941 = vsel %vm1344, %v4456, -inf
      %v5942 = vmax.f32 %v5940, %v5941
      %v5943 = vsel %vm1344, %v4461, -inf
      %v5944 = vmax.f32 %v5942, %v5943
      %v5945 = vsel %vm1344, %v4464, -inf
      %v5946 = vmax.f32 %v5944, %v5945
      %v5947 = vrot.slane %v5946, 4
      %v5948 = vmax.f32 %v5946, %v5947
      %v5949 = vrot.slane %v5948, 2
      %v5950 = vmax.f32 %v5948, %v5949
      %v5951 = vrot.slane %v5950, 1
      %v5952 = vmax.f32 %v5950, %v5951
      %v5953 = vsel %vm1344, %v4469, -inf
      %v5954 = vsel %vm1344, %v4472, -inf
      %v5955 = vmax.f32 %v5953, %v5954
      %v5956 = vsel %vm1344, %v4477, -inf
      %v5957 = vmax.f32 %v5955, %v5956
      %v5958 = vsel %vm1344, %v4480, -inf
      %v5959 = vmax.f32 %v5957, %v5958
      %v5960 = vsel %vm1344, %v4485, -inf
      %v5961 = vmax.f32 %v5959, %v5960
      %v5962 = vsel %vm1344, %v4488, -inf
      %v5963 = vmax.f32 %v5961, %v5962
      %v5964 = vsel %vm1344, %v4493, -inf
      %v5965 = vmax.f32 %v5963, %v5964
      %v5966 = vsel %vm1344, %v4496, -inf
      %v5967 = vmax.f32 %v5965, %v5966
      %v5968 = vrot.slane %v5967, 4
      %v5969 = vmax.f32 %v5967, %v5968
      %v5970 = vrot.slane %v5969, 2
      %v5971 = vmax.f32 %v5969, %v5970
      %v5972 = vrot.slane %v5971, 1
      %v5973 = vmax.f32 %v5971, %v5972
      %v5974 = vsel %vm1344, %v4501, -inf
      %v5975 = vsel %vm1344, %v4504, -inf
      %v5976 = vmax.f32 %v5974, %v5975
      %v5977 = vsel %vm1344, %v4509, -inf
      %v5978 = vmax.f32 %v5976, %v5977
      %v5979 = vsel %vm1344, %v4512, -inf
      %v5980 = vmax.f32 %v5978, %v5979
      %v5981 = vsel %vm1344, %v4517, -inf
      %v5982 = vmax.f32 %v5980, %v5981
      %v5983 = vsel %vm1344, %v4520, -inf
      %v5984 = vmax.f32 %v5982, %v5983
      %v5985 = vsel %vm1344, %v4525, -inf
      %v5986 = vmax.f32 %v5984, %v5985
      %v5987 = vsel %vm1344, %v4528, -inf
      %v5988 = vmax.f32 %v5986, %v5987
      %v5989 = vrot.slane %v5988, 4
      %v5990 = vmax.f32 %v5988, %v5989
      %v5991 = vrot.slane %v5990, 2
      %v5992 = vmax.f32 %v5990, %v5991
      %v5993 = vrot.slane %v5992, 1
      %v5994 = vmax.f32 %v5992, %v5993
      %v5995 = vsel %vm1344, %v4533, -inf
      %v5996 = vsel %vm1344, %v4536, -inf
      %v5997 = vmax.f32 %v5995, %v5996
      %v5998 = vsel %vm1344, %v4541, -inf
      %v5999 = vmax.f32 %v5997, %v5998
      %v6000 = vsel %vm1344, %v4544, -inf
      %v6001 = vmax.f32 %v5999, %v6000
      %v6002 = vsel %vm1344, %v4549, -inf
      %v6003 = vmax.f32 %v6001, %v6002
      %v6004 = vsel %vm1344, %v4552, -inf
      %v6005 = vmax.f32 %v6003, %v6004
      %v6006 = vsel %vm1344, %v4557, -inf
      %v6007 = vmax.f32 %v6005, %v6006
      %v6008 = vsel %vm1344, %v4560, -inf
      %v6009 = vmax.f32 %v6007, %v6008
      %v6010 = vrot.slane %v6009, 4
      %v6011 = vmax.f32 %v6009, %v6010
      %v6012 = vrot.slane %v6011, 2
      %v6013 = vmax.f32 %v6011, %v6012
      %v6014 = vrot.slane %v6013, 1
      %v6015 = vmax.f32 %v6013, %v6014
      %v6016 = vsel %vm1344, %v4565, -inf
      %v6017 = vsel %vm1344, %v4568, -inf
      %v6018 = vmax.f32 %v6016, %v6017
      %v6019 = vsel %vm1344, %v4573, -inf
      %v6020 = vmax.f32 %v6018, %v6019
      %v6021 = vsel %vm1344, %v4576, -inf
      %v6022 = vmax.f32 %v6020, %v6021
      %v6023 = vsel %vm1344, %v4581, -inf
      %v6024 = vmax.f32 %v6022, %v6023
      %v6025 = vsel %vm1344, %v4584, -inf
      %v6026 = vmax.f32 %v6024, %v6025
      %v6027 = vsel %vm1344, %v4589, -inf
      %v6028 = vmax.f32 %v6026, %v6027
      %v6029 = vsel %vm1344, %v4592, -inf
      %v6030 = vmax.f32 %v6028, %v6029
      %v6031 = vrot.slane %v6030, 4
      %v6032 = vmax.f32 %v6030, %v6031
      %v6033 = vrot.slane %v6032, 2
      %v6034 = vmax.f32 %v6032, %v6033
      %v6035 = vrot.slane %v6034, 1
      %v6036 = vmax.f32 %v6034, %v6035
      %v6037 = vsel %vm1344, %v4597, -inf
      %v6038 = vsel %vm1344, %v4600, -inf
      %v6039 = vmax.f32 %v6037, %v6038
      %v6040 = vsel %vm1344, %v4605, -inf
      %v6041 = vmax.f32 %v6039, %v6040
      %v6042 = vsel %vm1344, %v4608, -inf
      %v6043 = vmax.f32 %v6041, %v6042
      %v6044 = vsel %vm1344, %v4613, -inf
      %v6045 = vmax.f32 %v6043, %v6044
      %v6046 = vsel %vm1344, %v4616, -inf
      %v6047 = vmax.f32 %v6045, %v6046
      %v6048 = vsel %vm1344, %v4621, -inf
      %v6049 = vmax.f32 %v6047, %v6048
      %v6050 = vsel %vm1344, %v4624, -inf
      %v6051 = vmax.f32 %v6049, %v6050
      %v6052 = vrot.slane %v6051, 4
      %v6053 = vmax.f32 %v6051, %v6052
      %v6054 = vrot.slane %v6053, 2
      %v6055 = vmax.f32 %v6053, %v6054
      %v6056 = vrot.slane %v6055, 1
      %v6057 = vmax.f32 %v6055, %v6056
      %v6090 = vsel %vm5335, %v5427, %v5406
      %v6091 = vsel %vm5337, %v5448, %v6090
      %v6092 = vsel %vm5339, %v5469, %v6091
      %v6093 = vsel %vm5341, %v5490, %v6092
      %v6094 = vsel %vm5343, %v5511, %v6093
      %v6095 = vsel %vm5345, %v5532, %v6094
      %v6096 = vsel %vm5347, %v5553, %v6095
      %v6097 = vsel %vm5335, %v5595, %v5574
      %v6098 = vsel %vm5337, %v5616, %v6097
      %v6099 = vsel %vm5339, %v5637, %v6098
      %v6100 = vsel %vm5341, %v5658, %v6099
      %v6101 = vsel %vm5343, %v5679, %v6100
      %v6102 = vsel %vm5345, %v5700, %v6101
      %v6103 = vsel %vm5347, %v5721, %v6102
      %v6104 = vsel %vm5335, %v5763, %v5742
      %v6105 = vsel %vm5337, %v5784, %v6104
      %v6106 = vsel %vm5339, %v5805, %v6105
      %v6107 = vsel %vm5341, %v5826, %v6106
      %v6108 = vsel %vm5343, %v5847, %v6107
      %v6109 = vsel %vm5345, %v5868, %v6108
      %v6110 = vsel %vm5347, %v5889, %v6109
      %v6111 = vsel %vm5335, %v5931, %v5910
      %v6112 = vsel %vm5337, %v5952, %v6111
      %v6113 = vsel %vm5339, %v5973, %v6112
      %v6114 = vsel %vm5341, %v5994, %v6113
      %v6115 = vsel %vm5343, %v6015, %v6114
      %v6116 = vsel %vm5345, %v6036, %v6115
      %v6117 = vsel %vm5347, %v6057, %v6116
      %v6122 = vmax.f32 %v5382, %v6096
      %v6123 = vmax.f32 %v5383, %v6103
      %v6124 = vmax.f32 %v5384, %v6110
      %v6125 = vmax.f32 %v5385, %v6117
      %6126 = vst.msk [vmem:[#allocation3] sm:$0xff] %vm1344, %v6122
      %6127 = vst.msk [vmem:[#allocation3 + $0x8] sm:$0xff] %vm1344, %v6123
      %6128 = vst.msk [vmem:[#allocation3 + $0x10] sm:$0xff] %vm1344, %v6124
      %6129 = vst.msk [vmem:[#allocation3 + $0x18] sm:$0xff] %vm1344, %v6125
      // Predicated region
      $region61: #{tpu_custom_call.1} parent=55 // pred_check
        %p6130 = pneg %p412
      $region62: #{tpu_custom_call.1} parent=55 // pred_check_branch
        %6132 = sbr.rel (%p6130) target = $region64
      $region63: #{tpu_custom_call.1} parent=55 // pred_region
        %v6133 = vld [vmem:[%s6] sm:$0x1]
        %v6134 = vld [vmem:[%s397] sm:$0xf]
        %v6135 = vld [vmem:[%s397 + $0x4] sm:$0xf]
        %v6136 = vld [vmem:[%s397 + $0x8] sm:$0xf]
        %v6137 = vld [vmem:[%s397 + $0xc] sm:$0xf]
        %v6138 = vld [vmem:[%s3] sm:$0xf]
        %v6139 = vld [vmem:[%s3 + $0x4] sm:$0xf]
        %v6140 = vld [vmem:[%s3 + $0x8] sm:$0xf]
        %v6141 = vld [vmem:[%s3 + $0xc] sm:$0xf]
        %v6142 = vld [vmem:[%s4] sm:$0x1]
        %v6144 = vlaneseq
        %v6145 = vshrl.u32 %v6144, 7
        %v6146 = vsub.s32 0, %v6145
        %v6147 = vrot.slane %v6142, %v6146
        %v6153 = vunpack.c.l.b16 %v6134
        %v6154 = vunpack.c.l.b16 %v6135
        %v6155 = vunpack.c.l.b16 %v6136
        %v6156 = vunpack.c.l.b16 %v6137
        %v6157 = vpack.c.b16 %v6154, %v6153
        %v6158 = vpack.c.b16 %v6156, %v6155
        %v6163 = vunpack.c.l.b16 %v6138
        %v6164 = vunpack.c.l.b16 %v6139
        %v6165 = vunpack.c.l.b16 %v6140
        %v6166 = vunpack.c.l.b16 %v6141
        %v6167 = vpack.c.b16 %v6164, %v6163
        %v6168 = vpack.c.b16 %v6166, %v6165
        %v6172 = vsel %vm1344, %v6157, 0
        %v6175 = vsel %vm1344, %v6158, 0
        %6177 = vmatprep.subr.bf16.mxu0 0
        %6178 = vmatpush1.bf16.msra.mxu0 %v6167
        %6179 = vmatprep.subr.bf16.mxu0 0
        %6180 = vmatpush1.bf16.msra.mxu0 %v6168
        %6181 = vmatprep.subr.bf16.mxu0 0
        %6182 = vmatpush1.bf16.msra.mxu0 0
        %6183 = vmatprep.subr.bf16.mxu0 0
        %6184 = vmatpush1.bf16.msra.mxu0 0
        %6185 = vmatprep.subr.bf16.mxu0 0
        %6186 = vmatpush1.bf16.msra.mxu0 0
        %6187 = vmatprep.subr.bf16.mxu0 0
        %6188 = vmatpush1.bf16.msra.mxu0 0
        %6189 = vmatprep.subr.bf16.mxu0 0
        %6190 = vmatpush1.bf16.msra.mxu0 0
        %6191 = vmatprep.subr.bf16.mxu0 0
        %6192 = vmatpush1.bf16.msra.mxu0 0
        %6193 = vmatprep.subr.bf16.mxu0 0
        %6194 = vmatpush1.bf16.msra.mxu0 0
        %6195 = vmatprep.subr.bf16.mxu0 0
        %6196 = vmatpush1.bf16.msra.mxu0 0
        %6197 = vmatprep.subr.bf16.mxu0 0
        %6198 = vmatpush1.bf16.msra.mxu0 0
        %6199 = vmatprep.subr.bf16.mxu0 0
        %6200 = vmatpush1.bf16.msra.mxu0 0
        %6201 = vmatprep.subr.bf16.mxu0 0
        %6202 = vmatpush1.bf16.msra.mxu0 0
        %6203 = vmatprep.subr.bf16.mxu0 0
        %6204 = vmatpush1.bf16.msra.mxu0 0
        %6205 = vmatprep.subr.bf16.mxu0 0
        %6206 = vmatpush1.bf16.msra.mxu0 0
        %6207 = vmatprep.subr.bf16.mxu0 0
        %6208 = vmatpush1.bf16.msra.mxu0 0
        %6209 = vmatprep.mubr.bf16.mxu0 0
        %6210 = vmatmul.mubr.bf16.gmra.mrb[0].mxu0 %v6172
        %v6211 = vpop.f32.mrb[0].mxu0
        %v6212 = vadd.f32 %v6147, %v6211
        %v6213 = vpop.f32.mrb[0].mxu0
        %v6214 = vpop.f32.mrb[0].mxu0
        %v6215 = vadd.f32 %v6147, %v6214
        %v6216 = vpop.f32.mrb[0].mxu0
        %6217 = vmatprep.mubr.bf16.mxu0 0
        %6218 = vmatmul.mubr.bf16.gmra.mrb[0].mxu0 %v6175
        %v6219 = vpop.f32.mrb[0].mxu0
        %v6220 = vadd.f32 %v6147, %v6219
        %v6221 = vpop.f32.mrb[0].mxu0
        %v6222 = vpop.f32.mrb[0].mxu0
        %v6223 = vadd.f32 %v6147, %v6222
        %v6224 = vpop.f32.mrb[0].mxu0
        %6225 = vdwg.mxu0
        %v6226 = vmax.f32 %v6212, 0.0
        %v6227 = vmax.f32 %v6215, 0.0
        %v6228 = vmax.f32 %v6220, 0.0
        %v6229 = vmax.f32 %v6223, 0.0
        %v6230 = vpack.c.bf16 %v6227, %v6226
        %v6231 = vpack.c.bf16 %v6229, %v6228
        %v6232 = vld [vmem:[%s5] sm:$0xf]
        %v6233 = vld [vmem:[%s5 + $0x4] sm:$0xf]
        %v6234 = vld [vmem:[%s5 + $0x8] sm:$0xf]
        %v6235 = vld [vmem:[%s5 + $0xc] sm:$0xf]
        %v6237 = vlaneseq
        %v6238 = vshrl.u32 %v6237, 7
        %v6239 = vsub.s32 0, %v6238
        %v6240 = vrot.slane %v6133, %v6239
        %v6246 = vunpack.c.l.b16 %v6232
        %v6247 = vunpack.c.l.b16 %v6233
        %v6248 = vunpack.c.l.b16 %v6234
        %v6249 = vunpack.c.l.b16 %v6235
        %v6250 = vpack.c.b16 %v6247, %v6246
        %v6251 = vpack.c.b16 %v6249, %v6248
        %v6255 = vsel %vm1344, %v6230, 0
        %v6258 = vsel %vm1344, %v6231, 0
        %6260 = vmatprep.subr.bf16.mxu0 0
        %6261 = vmatpush1.bf16.msra.mxu0 %v6250
        %6262 = vmatprep.subr.bf16.mxu0 0
        %6263 = vmatpush1.bf16.msra.mxu0 %v6251
        %6264 = vmatprep.subr.bf16.mxu0 0
        %6265 = vmatpush1.bf16.msra.mxu0 0
        %6266 = vmatprep.subr.bf16.mxu0 0
        %6267 = vmatpush1.bf16.msra.mxu0 0
        %6268 = vmatprep.subr.bf16.mxu0 0
        %6269 = vmatpush1.bf16.msra.mxu0 0
        %6270 = vmatprep.subr.bf16.mxu0 0
        %6271 = vmatpush1.bf16.msra.mxu0 0
        %6272 = vmatprep.subr.bf16.mxu0 0
        %6273 = vmatpush1.bf16.msra.mxu0 0
        %6274 = vmatprep.subr.bf16.mxu0 0
        %6275 = vmatpush1.bf16.msra.mxu0 0
        %6276 = vmatprep.subr.bf16.mxu0 0
        %6277 = vmatpush1.bf16.msra.mxu0 0
        %6278 = vmatprep.subr.bf16.mxu0 0
        %6279 = vmatpush1.bf16.msra.mxu0 0
        %6280 = vmatprep.subr.bf16.mxu0 0
        %6281 = vmatpush1.bf16.msra.mxu0 0
        %6282 = vmatprep.subr.bf16.mxu0 0
        %6283 = vmatpush1.bf16.msra.mxu0 0
        %6284 = vmatprep.subr.bf16.mxu0 0
        %6285 = vmatpush1.bf16.msra.mxu0 0
        %6286 = vmatprep.subr.bf16.mxu0 0
        %6287 = vmatpush1.bf16.msra.mxu0 0
        %6288 = vmatprep.subr.bf16.mxu0 0
        %6289 = vmatpush1.bf16.msra.mxu0 0
        %6290 = vmatprep.subr.bf16.mxu0 0
        %6291 = vmatpush1.bf16.msra.mxu0 0
        %6292 = vmatprep.mubr.bf16.mxu0 0
        %6293 = vmatmul.mubr.bf16.gmra.mrb[0].mxu0 %v6255
        %v6294 = vpop.f32.mrb[0].mxu0
        %v6295 = vadd.f32 %v6240, %v6294
        %v6296 = vpop.f32.mrb[0].mxu0
        %v6297 = vpop.f32.mrb[0].mxu0
        %v6298 = vadd.f32 %v6240, %v6297
        %v6299 = vpop.f32.mrb[0].mxu0
        %6300 = vmatprep.mubr.bf16.mxu0 0
        %6301 = vmatmul.mubr.bf16.gmra.mrb[0].mxu0 %v6258
        %v6302 = vpop.f32.mrb[0].mxu0
        %v6303 = vadd.f32 %v6240, %v6302
        %v6304 = vpop.f32.mrb[0].mxu0
        %v6305 = vpop.f32.mrb[0].mxu0
        %v6306 = vadd.f32 %v6240, %v6305
        %v6307 = vpop.f32.mrb[0].mxu0
        %6308 = vdwg.mxu0
        %v6309 = vld [vmem:[%s403] sm:$0xff]
        %v6310 = vld [vmem:[%s403 + $0x8] sm:$0xff]
        %v6311 = vld [vmem:[%s403 + $0x10] sm:$0xff]
        %v6312 = vld [vmem:[%s403 + $0x18] sm:$0xff]
        %v6313 = vrcp.pop %v6309
        %v6314 = vrcp.pop %v6310
        %v6315 = vrcp.pop %v6311
        %v6316 = vrcp.pop %v6312
        %v6317 = vld [vmem:[#allocation2] sm:$0xff]
        %v6318 = vld [vmem:[#allocation2 + $0x8] sm:$0xff]
        %v6319 = vld [vmem:[#allocation2 + $0x10] sm:$0xff]
        %v6320 = vld [vmem:[#allocation2 + $0x18] sm:$0xff]
        %v6321 = vmul.f32 %v6133, 64.0
        %v6323 = vlaneseq
        %v6324 = vshrl.u32 %v6323, 7
        %v6325 = vsub.s32 0, %v6324
        %v6326 = vrot.slane %v6321, %v6325
        %v6328 = vadd.f32 %v6317, %v6326
        %v6329 = vadd.f32 %v6318, %v6326
        %v6330 = vadd.f32 %v6319, %v6326
        %v6331 = vadd.f32 %v6320, %v6326
        %6333 = vset.pattern.permute.xlu0 0
        %6334 = vperm.xlu0 %6333, %v6313
        %v6335 = vpop.permute.xlu0 %6334
        %6338 = vset.pattern.permute.xlu0 0
        %6339 = vperm.xlu0 %6338, %v6314
        %v6340 = vpop.permute.xlu0 %6339
        %6343 = vset.pattern.permute.xlu0 0
        %6344 = vperm.xlu0 %6343, %v6315
        %v6345 = vpop.permute.xlu0 %6344
        %6348 = vset.pattern.permute.xlu0 0
        %6349 = vperm.xlu0 %6348, %v6316
        %v6350 = vpop.permute.xlu0 %6349
        %v6352 = vmul.f32 %v6328, %v6335
        %v6353 = vmul.f32 %v6329, %v6340
        %v6354 = vmul.f32 %v6330, %v6345
        %v6355 = vmul.f32 %v6331, %v6350
        %v6356 = vld [vmem:[#allocation3] sm:$0xff]
        %v6357 = vld [vmem:[#allocation3 + $0x8] sm:$0xff]
        %v6358 = vld [vmem:[#allocation3 + $0x10] sm:$0xff]
        %v6359 = vld [vmem:[#allocation3 + $0x18] sm:$0xff]
        %v6360 = vadd.f32 %v6356, %v6240
        %v6361 = vadd.f32 %v6357, %v6240
        %v6362 = vadd.f32 %v6358, %v6240
        %v6363 = vadd.f32 %v6359, %v6240
        %6368 = vrot.lane.b32.xlu0 %v6352, 32
        %v6369 = vpop.permute.xlu0 %6368
        %6370 = vrot.lane.b32.xlu0 %v6353, 32
        %v6371 = vpop.permute.xlu0 %6370
        %6372 = vrot.lane.b32.xlu0 %v6354, 32
        %v6373 = vpop.permute.xlu0 %6372
        %6374 = vrot.lane.b32.xlu0 %v6355, 32
        %v6375 = vpop.permute.xlu0 %6374
        %6384 = vrot.lane.b32.xlu0 %v6360, 64
        %v6385 = vpop.permute.xlu0 %6384
        %6386 = vrot.lane.b32.xlu0 %v6361, 64
        %v6387 = vpop.permute.xlu0 %6386
        %6388 = vrot.lane.b32.xlu0 %v6362, 64
        %v6389 = vpop.permute.xlu0 %6388
        %6390 = vrot.lane.b32.xlu0 %v6363, 64
        %v6391 = vpop.permute.xlu0 %6390
        %v6396 = vsel %vm1344, %v6295, %v6369
        %v6397 = vsel %vm1344, %v6298, %v6371
        %v6398 = vsel %vm1344, %v6303, %v6373
        %v6399 = vsel %vm1344, %v6306, %v6375
        %vm6400 = vcmask 523264
        %v6401 = vsel %vm6400, %v6396, %v6385
        %v6402 = vsel %vm6400, %v6397, %v6387
        %v6403 = vsel %vm6400, %v6398, %v6389
        %v6404 = vsel %vm6400, %v6399, %v6391
        %v6405 = vld [vmem:[%s7] sm:$0xff]
        %v6406 = vld [vmem:[%s7 + $0x8] sm:$0xff]
        %v6407 = vld [vmem:[%s7 + $0x10] sm:$0xff]
        %v6408 = vld [vmem:[%s7 + $0x18] sm:$0xff]
        %v6409 = vld [vmem:[%s7 + $0x20] sm:$0xff]
        %v6410 = vld [vmem:[%s7 + $0x28] sm:$0xff]
        %v6411 = vld [vmem:[%s7 + $0x30] sm:$0xff]
        %v6412 = vld [vmem:[%s7 + $0x38] sm:$0xff]
        %v6413 = vld [vmem:[%s7 + $0x40] sm:$0xff]
        %v6414 = vld [vmem:[%s7 + $0x48] sm:$0xff]
        %v6415 = vld [vmem:[%s7 + $0x50] sm:$0xff]
        %v6416 = vld [vmem:[%s7 + $0x58] sm:$0xff]
        %v6417 = vld [vmem:[%s8] sm:$0x1]
        %v6419 = vlaneseq
        %v6420 = vshrl.u32 %v6419, 7
        %v6421 = vsub.s32 0, %v6420
        %v6422 = vrot.slane %v6417, %v6421
        %vm6424 = vcmask 785408
        %v6426 = vsel %vm6424, %v6401, 0
        %v6429 = vsel %vm6424, %v6402, 0
        %v6432 = vsel %vm6424, %v6403, 0
        %v6435 = vsel %vm6424, %v6404, 0
        %6437 = vmatprep.subr.mxu0 0.0
        %6438 = vmatpush1.msra.mxu0 %v6405
        %6439 = vmatprep.subr.mxu0 0.0
        %6440 = vmatpush1.msra.mxu0 %v6406
        %6441 = vmatprep.subr.mxu0 0.0
        %6442 = vmatpush1.msra.mxu0 %v6407
        %6443 = vmatprep.subr.mxu0 0.0
        %6444 = vmatpush1.msra.mxu0 %v6408
        %6445 = vmatprep.subr.mxu0 0.0
        %6446 = vmatpush1.msra.mxu0 %v6409
        %6447 = vmatprep.subr.mxu0 0.0
        %6448 = vmatpush1.msra.mxu0 %v6410
        %6449 = vmatprep.subr.mxu0 0.0
        %6450 = vmatpush1.msra.mxu0 %v6411
        %6451 = vmatprep.subr.mxu0 0.0
        %6452 = vmatpush1.msra.mxu0 %v6412
        %6453 = vmatprep.subr.mxu0 0.0
        %6454 = vmatpush1.msra.mxu0 %v6413
        %6455 = vmatprep.subr.mxu0 0.0
        %6456 = vmatpush1.msra.mxu0 %v6414
        %6457 = vmatprep.subr.mxu0 0.0
        %6458 = vmatpush1.msra.mxu0 %v6415
        %6459 = vmatprep.subr.mxu0 0.0
        %6460 = vmatpush1.msra.mxu0 %v6416
        %6461 = vmatprep.subr.mxu0 0.0
        %6462 = vmatpush1.msra.mxu0 0.0
        %6463 = vmatprep.subr.mxu0 0.0
        %6464 = vmatpush1.msra.mxu0 0.0
        %6465 = vmatprep.subr.mxu0 0.0
        %6466 = vmatpush1.msra.mxu0 0.0
        %6467 = vmatprep.subr.mxu0 0.0
        %6468 = vmatpush1.msra.mxu0 0.0
        %6469 = vmatprep.subr.mxu0 0.0
        %6470 = vmatpush1.msra.mxu0 0.0
        %6471 = vmatprep.subr.mxu0 0.0
        %6472 = vmatpush1.msra.mxu0 0.0
        %6473 = vmatprep.subr.mxu0 0.0
        %6474 = vmatpush1.msra.mxu0 0.0
        %6475 = vmatprep.subr.mxu0 0.0
        %6476 = vmatpush1.msra.mxu0 0.0
        %6477 = vmatprep.subr.mxu0 0.0
        %6478 = vmatpush1.msra.mxu0 0.0
        %6479 = vmatprep.subr.mxu0 0.0
        %6480 = vmatpush1.msra.mxu0 0.0
        %6481 = vmatprep.subr.mxu0 0.0
        %6482 = vmatpush1.msra.mxu0 0.0
        %6483 = vmatprep.subr.mxu0 0.0
        %6484 = vmatpush1.msra.mxu0 0.0
        %6485 = vmatprep.subr.mxu0 0.0
        %6486 = vmatpush1.msra.mxu0 0.0
        %6487 = vmatprep.subr.mxu0 0.0
        %6488 = vmatpush1.msra.mxu0 0.0
        %6489 = vmatprep.subr.mxu0 0.0
        %6490 = vmatpush1.msra.mxu0 0.0
        %6491 = vmatprep.subr.mxu0 0.0
        %6492 = vmatpush1.msra.mxu0 0.0
        %6493 = vmatprep.subr.mxu0 0.0
        %6494 = vmatpush1.msra.mxu0 0.0
        %6495 = vmatprep.subr.mxu0 0.0
        %6496 = vmatpush1.msra.mxu0 0.0
        %6497 = vmatprep.subr.mxu0 0.0
        %6498 = vmatpush1.msra.mxu0 0.0
        %6499 = vmatprep.subr.mxu0 0.0
        %6500 = vmatpush1.msra.mxu0 0.0
        %6501 = vmatprep.mubr.f32.mxu0 0.0
        %6502 = vmatmul.mubr.f32.gmra.mrb[0].mxu0 %v6426
        %v6503 = vpop.f32.mrb[0].mxu0
        %v6504 = vadd.f32 %v6422, %v6503
        %v6505 = vpop.f32.mrb[0].mxu0
        %6506 = vmatprep.mubr.f32.mxu0 0.0
        %6507 = vmatmul.mubr.f32.gmra.mrb[0].mxu0 %v6429
        %v6508 = vpop.f32.mrb[0].mxu0
        %v6509 = vadd.f32 %v6422, %v6508
        %v6510 = vpop.f32.mrb[0].mxu0
        %6511 = vmatprep.mubr.f32.mxu0 0.0
        %6512 = vmatmul.mubr.f32.gmra.mrb[0].mxu0 %v6432
        %v6513 = vpop.f32.mrb[0].mxu0
        %v6514 = vadd.f32 %v6422, %v6513
        %v6515 = vpop.f32.mrb[0].mxu0
        %6516 = vmatprep.mubr.f32.mxu0 0.0
        %6517 = vmatmul.mubr.f32.gmra.mrb[0].mxu0 %v6435
        %v6518 = vpop.f32.mrb[0].mxu0
        %v6519 = vadd.f32 %v6422, %v6518
        %v6520 = vpop.f32.mrb[0].mxu0
        %6521 = vdwg.mxu0
        %6522 = vst.msk [vmem:[%s409] sm:$0xff] %vm1344, %v6504
        %6523 = vst.msk [vmem:[%s409 + $0x8] sm:$0xff] %vm1344, %v6509
        %6524 = vst.msk [vmem:[%s409 + $0x10] sm:$0xff] %vm1344, %v6514
        %6525 = vst.msk [vmem:[%s409 + $0x18] sm:$0xff] %vm1344, %v6519
      $region64: #{tpu_custom_call.1} parent=55 // pred_fallthru
        _
      %s6526 = smul.u32 4, %s24
      %p6527 = scmp.lt.s32.totalorder %s6526, 7
      %s6528 = scalar_select %p6527, %s6526, 7
      %s6529 = smul.addr %s6528, 8
      %s6530 = scalar_lea.vmem %s9, %s6529
      // Predicated region
      $region65: #{tpu_custom_call.1} parent=55 // pred_check
        %p6531 = pneg %p256
      $region66: #{tpu_custom_call.1} parent=55 // pred_check_branch
        %6533 = sbr.rel (%p6531) target = $region68
      $region67: #{tpu_custom_call.1} parent=55 // pred_region
        %s6534 = smul.u32 4, %s24
      $region68: #{tpu_custom_call.1} parent=55 // pred_fallthru
        _
    $region56: #{tpu_custom_call.1} parent=5 // pred_fallthru
      _
    %p6535 = scmp.le.s32.totalorder 2, %s15
    // Predicated region
    $region69: #{tpu_custom_call.1} parent=5 // pred_check
      %p6536 = pneg %p6535
    $region70: #{tpu_custom_call.1} parent=5 // pred_check_branch
      %6538 = sbr.rel (%p6536) target = $region72
    $region71: #{tpu_custom_call.1} parent=5 // pred_region
      %s6539 = ssub.s32 %s15, 2
      // Predicated region
      $region73: #{tpu_custom_call.1} parent=71 // pred_check
        %p6540 = pneg %p262
      $region74: #{tpu_custom_call.1} parent=71 // pred_check_branch
        %6542 = sbr.rel (%p6540) target = $region76
      $region75: #{tpu_custom_call.1} parent=71 // pred_region
        %s6543 = smul.u32 4, %s26
        %p6544 = scmp.lt.s32.totalorder %s6543, 7
        %s6545 = scalar_select %p6544, %s6543, 7
        %s6546 = smul.addr %s6545, 8
        %s6547 = scalar_lea.vmem %s9, %s6546
      $region76: #{tpu_custom_call.1} parent=71 // pred_fallthru
        _
    $region72: #{tpu_custom_call.1} parent=5 // pred_fallthru
      _
  $region6: #{tpu_custom_call.1} parent=0 // loop_footer
    %s19 = sadd.s32 1, %s15
  $region7: #{tpu_custom_call.1} parent=0 // loop_footer_branch
    %14 = sbr.rel target = $region3
  $region8: #{tpu_custom_call.1} parent=0 // loop_exit
    _

</llo_original>
